<compile_context>
chip_gen: v7x
topology: tpu7x:2x2x1
jax: 0.10.0
libtpu: 0.0.40
codegen_flags: <defaults>
</compile_context>

<pallas_src>
import math

import jax
import jax.numpy as jnp
from jax.experimental import pallas as pl
from jax.experimental.pallas import tpu as pltpu


def _attn_kernel(hid_ref, amask_ref, hmask_ref, wqkv_ref, bqkv_ref,
                 ctx_ref, probs_ref):
    # hid_ref   : (S, D)          f32 hidden states (cast to bf16 in-kernel)
    # amask_ref : (1, S)          f32 additive attention mask (key axis)
    # hmask_ref : (1, S)          f32 multiplicative head_mask (key axis, torch broadcast)
    # wqkv_ref  : (D, 3*nblk)     bf16 fused [Wq_g | Wk_g | Wv_g] column block (scale folded into Wq)
    # bqkv_ref  : (1, 3*nblk)     f32 fused bias block (scale folded into bq)
    # ctx_ref   : (S, nblk)       f32 column slice of the final (S, D) context layout
    # probs_ref : (hpb, S, S)     f32 attention probabilities for this program's heads
    hpb, S, _ = probs_ref.shape
    nblk = ctx_ref.shape[-1]
    hd = nblk // hpb

    hid = hid_ref[...].astype(jnp.bfloat16)                                   # (S, D)

    # One fused wide projection for q|k|v of this program's heads
    # (bf16 MXU inputs, f32 accumulation).  Scale is pre-folded into Wq/bq.
    qkv = jnp.dot(hid, wqkv_ref[...], preferred_element_type=jnp.float32)
    qkv = qkv + bqkv_ref[...]                                                 # (S, 3*nblk)

    q = qkv[:, 0:nblk]                                                        # (S, nblk)
    k = qkv[:, nblk:2 * nblk]                                                 # (S, nblk)
    v = qkv[:, 2 * nblk:3 * nblk]                                             # (S, nblk)
    kt = k.T                                                                  # one XLU transpose per program

    amask = amask_ref[...]                                                    # (1, S)
    hmask = hmask_ref[...]                                                    # (1, S)

    # Per-head attention math is tiny ((S,hd)x(hd,S)); static unroll.
    ctx_parts = []
    for j in range(hpb):
        sl = slice(j * hd, (j + 1) * hd)
        qj = q[:, sl]                                                         # (S, hd)
        ktj = kt[sl, :]                                                       # (hd, S) 8-aligned sublane slice
        s = jnp.dot(qj, ktj, preferred_element_type=jnp.float32)              # (S, S)
        s = s + amask
        m = jnp.max(s, axis=-1, keepdims=True)
        e = jnp.exp(s - m)
        p = e * pl.reciprocal(jnp.sum(e, axis=-1, keepdims=True), approx=True)
        p = p * hmask                           # torch trailing-dim broadcast semantics
        probs_ref[j] = p
        ctx_parts.append(jnp.dot(p, v[:, sl], preferred_element_type=jnp.float32))

    # Single unmasked lane-dense 384-wide store instead of six 64-lane stores.
    ctx_ref[...] = jnp.concatenate(ctx_parts, axis=-1)


def pack_qkv_weights(wq, bq, wk, bk, wv, bv, num_heads, *, head_blocks=2):
    """One-time (model-load) packing: fused bf16 QKV weight + f32 bias.

    Layout per head block g: [Wq_g | Wk_g | Wv_g] so each grid program reads
    one contiguous (D, 3*nblk) column block.  1/sqrt(hd) is folded into the
    query columns (exact: 0.125 is a power of two)."""
    D = wq.shape[0]
    hd = D // num_heads
    nblk = (num_heads // head_blocks) * hd
    scale = 1.0 / math.sqrt(hd)
    wq_s = wq * scale
    bq_s = bq * scale
    w_blocks, b_blocks = [], []
    for g in range(head_blocks):
        sl = slice(g * nblk, (g + 1) * nblk)
        w_blocks += [wq_s[:, sl], wk[:, sl], wv[:, sl]]
        b_blocks += [bq_s[sl], bk[sl], bv[sl]]
    wqkv = jnp.concatenate(w_blocks, axis=1).astype(jnp.bfloat16)             # (D, 3*D)
    bqkv = jnp.concatenate(b_blocks, axis=0).reshape(1, -1).astype(jnp.float32)
    return wqkv, bqkv


def bert_self_attention(hidden_states, attention_mask, head_mask,
                        wqkv, bqkv, num_heads, *, head_blocks=2):
    """hidden_states: (1, S, D); wqkv/bqkv from pack_qkv_weights (bf16/f32)."""
    B, S, D = hidden_states.shape
    assert B == 1                              # spec module's example is batch=1
    assert D % num_heads == 0
    hd = D // num_heads
    assert num_heads % head_blocks == 0
    hpb = num_heads // head_blocks             # heads per program
    nblk = hpb * hd                            # output-column slice width per program
    assert nblk % 128 == 0, "per-program column slice must be lane-aligned"
    assert wqkv.shape == (D, 3 * D) and bqkv.shape == (1, 3 * D)

    hid = hidden_states[0]                                            # (S, D) f32 (cast in-kernel)
    amask = attention_mask.reshape(1, S).astype(jnp.float32)          # (1, S)
    # PyTorch: probs (1,H,S,S) * head_mask (1,H) aligns trailing dims -> mask
    # applied along the key axis, identical for every head (H == S here).
    hmask = head_mask.reshape(1, num_heads).astype(jnp.float32)
    assert hmask.shape[-1] == S, "torch trailing-dim broadcast requires H == S"

    full = lambda g: (0, 0)
    col = lambda g: (0, g)

    ctx, probs_h = pl.pallas_call(
        _attn_kernel,
        out_shape=(
            jax.ShapeDtypeStruct((S, D), jnp.float32),                # final layout, no transpose
            jax.ShapeDtypeStruct((num_heads, S, S), jnp.float32),
        ),
        grid_spec=pltpu.PrefetchScalarGridSpec(
            num_scalar_prefetch=0,
            grid=(head_blocks,),
            in_specs=[
                pl.BlockSpec((S, D), full),            # hidden states (f32, tiny)
                pl.BlockSpec((1, S), full),            # additive attention mask
                pl.BlockSpec((1, S), full),            # head mask (key-axis broadcast)
                pl.BlockSpec((D, 3 * nblk), col),      # fused QKV weight column block (bf16)
                pl.BlockSpec((1, 3 * nblk), col),      # fused QKV bias block (f32)
            ],
            out_specs=[
                pl.BlockSpec((S, nblk), col),                    # ctx columns (lane-dense 384)
                pl.BlockSpec((hpb, S, S), lambda g: (g, 0, 0)),  # probs for this head block
            ],
        ),
        compiler_params=pltpu.CompilerParams(
            dimension_semantics=("parallel",)),        # 2 programs -> both TCs on v7x
        cost_estimate=pl.CostEstimate(
            flops=21_000_000,
            bytes_accessed=3_700_000,
            transcendentals=1_700),
    )(hid, amask, hmask, wqkv, bqkv)

    context_layer = ctx[None]                      # (1, S, D) — already final layout
    attention_probs = probs_h[None]                # (1, H, S, S)
    return context_layer, attention_probs


def _reference(hidden_states, attention_mask, head_mask,
               wq, bq, wk, bk, wv, bv, num_heads):
    B, S, D = hidden_states.shape
    hd = D // num_heads

    def split(x):  # (B,S,D) -> (B,H,S,hd)
        return x.reshape(B, S, num_heads, hd).transpose(0, 2, 1, 3)

    q = split(hidden_states @ wq + bq)
    k = split(hidden_states @ wk + bk)
    v = split(hidden_states @ wv + bv)
    scores = jnp.einsum("bhqd,bhkd->bhqk", q, k) / math.sqrt(hd)
    scores = scores + attention_mask
    probs = jax.nn.softmax(scores, axis=-1)
    probs = probs * head_mask  # trailing-dim broadcast, same as torch
    ctx = jnp.einsum("bhqk,bhkd->bhqd", probs, v)
    ctx = ctx.transpose(0, 2, 1, 3).reshape(B, S, D)
    return ctx, probs


if __name__ == "__main__":
    num_heads = 12
    hidden_size = 768
    seq = 12
    batch = 1

    key = jax.random.PRNGKey(0)
    ks = jax.random.split(key, 9)
    hidden_states = jax.random.normal(ks[0], (batch, seq, hidden_size), jnp.float32)
    attention_mask = jnp.round(jax.random.normal(ks[1], (1, 1, 1, seq), jnp.float32))
    head_mask = jax.random.normal(ks[2], (1, num_heads), jnp.float32)

    scale = 1.0 / math.sqrt(hidden_size)
    wq = jax.random.normal(ks[3], (hidden_size, hidden_size), jnp.float32) * scale
    wk = jax.random.normal(ks[4], (hidden_size, hidden_size), jnp.float32) * scale
    wv = jax.random.normal(ks[5], (hidden_size, hidden_size), jnp.float32) * scale
    bq = jax.random.normal(ks[6], (hidden_size,), jnp.float32) * 0.01
    bk = jax.random.normal(ks[7], (hidden_size,), jnp.float32) * 0.01
    bv = jax.random.normal(ks[8], (hidden_size,), jnp.float32) * 0.01

    # One-time weight packing (model-load time, not per call).
    wqkv, bqkv = pack_qkv_weights(wq, bq, wk, bk, wv, bv, num_heads, head_blocks=2)
    jax.block_until_ready((wqkv, bqkv))

    ctx, probs = bert_self_attention(
        hidden_states, attention_mask, head_mask,
        wqkv, bqkv, num_heads, head_blocks=2)
    jax.block_until_ready((ctx, probs))

    # Reference mirrors the kernel's intentional bf16 quantization of hidden /
    # weights (f32 math thereafter), isolating algorithmic correctness.
    # Tolerance covers the EUP approximate reciprocal in the softmax denominator.
    cast = lambda x: x.astype(jnp.bfloat16).astype(jnp.float32)
    ctx_ref, probs_ref = _reference(
        cast(hidden_states), attention_mask, head_mask,
        cast(wq), bq, cast(wk), bk, cast(wv), bv, num_heads)

    assert ctx.shape == (batch, seq, hidden_size)
    assert probs.shape == (batch, num_heads, seq, seq)
    assert jnp.allclose(ctx, ctx_ref, atol=1e-2, rtol=1e-2)
    assert jnp.allclose(probs, probs_ref, atol=1e-2, rtol=1e-2)

    print("KERNEL_OK")
</pallas_src>

<mosaic_0001>
module attributes {stable_mosaic.version = 11 : i64} {
  func.func @_attn_kernel(%arg0: i32, %arg1: memref<12x768xf32, #tpu.memory_space<vmem>>, %arg2: memref<1x12xf32, #tpu.memory_space<vmem>>, %arg3: memref<1x12xf32, #tpu.memory_space<vmem>>, %arg4: memref<768x1152xbf16, #tpu.memory_space<vmem>>, %arg5: memref<1x1152xf32, #tpu.memory_space<vmem>>, %arg6: memref<12x384xf32, #tpu.memory_space<vmem>>, %arg7: memref<6x12x12xf32, #tpu.memory_space<vmem>>) attributes {dimension_semantics = [#tpu.dimension_semantics<parallel>], iteration_bounds = array<i64: 2>, scalar_prefetch = 0 : i64, scratch_operands = 0 : i64, tpu.core_type = #tpu.core_type<tc>, window_params = [{pipeline_mode = #tpu.pipeline_mode<synchronous>, transform_indices = @transform_0, window_bounds = array<i64: 12, 768>}, {pipeline_mode = #tpu.pipeline_mode<synchronous>, transform_indices = @transform_1, window_bounds = array<i64: 1, 12>}, {pipeline_mode = #tpu.pipeline_mode<synchronous>, transform_indices = @transform_2, window_bounds = array<i64: 1, 12>}, {transform_indices = @transform_3, window_bounds = array<i64: 768, 1152>}, {transform_indices = @transform_4, window_bounds = array<i64: 1, 1152>}, {transform_indices = @transform_5, window_bounds = array<i64: 12, 384>}, {transform_indices = @transform_6, window_bounds = array<i64: 6, 12, 12>}]} {
    %c0 = arith.constant 0 : index
    %c0_0 = arith.constant 0 : index
    %0 = vector.load %arg1[%c0, %c0_0] : memref<12x768xf32, #tpu.memory_space<vmem>>, vector<12x768xf32>
    %1 = arith.truncf %0 : vector<12x768xf32> to vector<12x768xbf16>
    %c0_1 = arith.constant 0 : index
    %c0_2 = arith.constant 0 : index
    %2 = vector.load %arg4[%c0_1, %c0_2] : memref<768x1152xbf16, #tpu.memory_space<vmem>>, vector<768x1152xbf16>
    %cst = arith.constant dense<0.000000e+00> : vector<12x1152xf32>
    %3 = tpu.matmul %1, %2, %cst {dimension_numbers = #tpu.dot_dimension_numbers<[1], [0], [0], [1], [0, 0, 1, 1], [], []>} : vector<12x768xbf16>, vector<768x1152xbf16>, vector<12x1152xf32> -> vector<12x1152xf32>
    %c0_3 = arith.constant 0 : index
    %c0_4 = arith.constant 0 : index
    %4 = vector.load %arg5[%c0_3, %c0_4] : memref<1x1152xf32, #tpu.memory_space<vmem>>, vector<1x1152xf32>
    %5 = vector.broadcast %4 : vector<1x1152xf32> to vector<12x1152xf32>
    %6 = arith.addf %3, %5 : vector<12x1152xf32>
    %7 = vector.extract_strided_slice %6 {offsets = [0, 0], sizes = [12, 384], strides = [1, 1]} : vector<12x1152xf32> to vector<12x384xf32>
    %8 = vector.extract_strided_slice %6 {offsets = [0, 384], sizes = [12, 384], strides = [1, 1]} : vector<12x1152xf32> to vector<12x384xf32>
    %9 = vector.extract_strided_slice %6 {offsets = [0, 768], sizes = [12, 384], strides = [1, 1]} : vector<12x1152xf32> to vector<12x384xf32>
    %10 = tpu.transpose %8, [1, 0] : vector<12x384xf32> -> vector<384x12xf32>
    %c0_5 = arith.constant 0 : index
    %c0_6 = arith.constant 0 : index
    %11 = vector.load %arg2[%c0_5, %c0_6] : memref<1x12xf32, #tpu.memory_space<vmem>>, vector<1x12xf32>
    %c0_7 = arith.constant 0 : index
    %c0_8 = arith.constant 0 : index
    %12 = vector.load %arg3[%c0_7, %c0_8] : memref<1x12xf32, #tpu.memory_space<vmem>>, vector<1x12xf32>
    %13 = vector.extract_strided_slice %7 {offsets = [0, 0], sizes = [12, 64], strides = [1, 1]} : vector<12x384xf32> to vector<12x64xf32>
    %14 = vector.extract_strided_slice %10 {offsets = [0, 0], sizes = [64, 12], strides = [1, 1]} : vector<384x12xf32> to vector<64x12xf32>
    %cst_9 = arith.constant dense<0.000000e+00> : vector<12x12xf32>
    %15 = tpu.matmul %13, %14, %cst_9 {dimension_numbers = #tpu.dot_dimension_numbers<[1], [0], [0], [1], [0, 0, 1, 1], [], []>} : vector<12x64xf32>, vector<64x12xf32>, vector<12x12xf32> -> vector<12x12xf32>
    %16 = vector.broadcast %11 : vector<1x12xf32> to vector<12x12xf32>
    %17 = arith.addf %15, %16 : vector<12x12xf32>
    %cst_10 = arith.constant dense<0xFF800000> : vector<12xf32>
    %18 = vector.multi_reduction <maximumf>, %17, %cst_10 [1] : vector<12x12xf32> to vector<12xf32>
    %19 = vector.shape_cast %18 : vector<12xf32> to vector<12x1xf32>
    %20 = vector.broadcast %19 : vector<12x1xf32> to vector<12x12xf32>
    %21 = arith.subf %17, %20 : vector<12x12xf32>
    %22 = math.exp %21 : vector<12x12xf32>
    %cst_11 = arith.constant dense<0.000000e+00> : vector<12xf32>
    %23 = vector.multi_reduction <add>, %22, %cst_11 [1] : vector<12x12xf32> to vector<12xf32>
    %24 = vector.shape_cast %23 : vector<12xf32> to vector<12x1xf32>
    %25 = tpu.reciprocal %24 {approx = true} : vector<12x1xf32> -> vector<12x1xf32>
    %26 = vector.broadcast %25 : vector<12x1xf32> to vector<12x12xf32>
    %27 = arith.mulf %22, %26 : vector<12x12xf32>
    %28 = vector.broadcast %12 : vector<1x12xf32> to vector<12x12xf32>
    %29 = arith.mulf %27, %28 : vector<12x12xf32>
    %c0_12 = arith.constant 0 : index
    %c0_13 = arith.constant 0 : index
    %c0_14 = arith.constant 0 : index
    %30 = vector.load %arg7[%c0_12, %c0_13, %c0_14] : memref<6x12x12xf32, #tpu.memory_space<vmem>>, vector<1x12x12xf32>
    %31 = vector.shape_cast %30 : vector<1x12x12xf32> to vector<12x12xf32>
    %32 = vector.shape_cast %29 : vector<12x12xf32> to vector<1x12x12xf32>
    tpu.vector_store %arg7[%c0_12, %c0_13, %c0_14], %32 {strides = array<i32>} : memref<6x12x12xf32, #tpu.memory_space<vmem>>, vector<1x12x12xf32>,
    %33 = vector.extract_strided_slice %9 {offsets = [0, 0], sizes = [12, 64], strides = [1, 1]} : vector<12x384xf32> to vector<12x64xf32>
    %cst_15 = arith.constant dense<0.000000e+00> : vector<12x64xf32>
    %34 = tpu.matmul %29, %33, %cst_15 {dimension_numbers = #tpu.dot_dimension_numbers<[1], [0], [0], [1], [0, 0, 1, 1], [], []>} : vector<12x12xf32>, vector<12x64xf32>, vector<12x64xf32> -> vector<12x64xf32>
    %35 = vector.extract_strided_slice %7 {offsets = [0, 64], sizes = [12, 64], strides = [1, 1]} : vector<12x384xf32> to vector<12x64xf32>
    %36 = vector.extract_strided_slice %10 {offsets = [64, 0], sizes = [64, 12], strides = [1, 1]} : vector<384x12xf32> to vector<64x12xf32>
    %cst_16 = arith.constant dense<0.000000e+00> : vector<12x12xf32>
    %37 = tpu.matmul %35, %36, %cst_16 {dimension_numbers = #tpu.dot_dimension_numbers<[1], [0], [0], [1], [0, 0, 1, 1], [], []>} : vector<12x64xf32>, vector<64x12xf32>, vector<12x12xf32> -> vector<12x12xf32>
    %38 = vector.broadcast %11 : vector<1x12xf32> to vector<12x12xf32>
    %39 = arith.addf %37, %38 : vector<12x12xf32>
    %cst_17 = arith.constant dense<0xFF800000> : vector<12xf32>
    %40 = vector.multi_reduction <maximumf>, %39, %cst_17 [1] : vector<12x12xf32> to vector<12xf32>
    %41 = vector.shape_cast %40 : vector<12xf32> to vector<12x1xf32>
    %42 = vector.broadcast %41 : vector<12x1xf32> to vector<12x12xf32>
    %43 = arith.subf %39, %42 : vector<12x12xf32>
    %44 = math.exp %43 : vector<12x12xf32>
    %cst_18 = arith.constant dense<0.000000e+00> : vector<12xf32>
    %45 = vector.multi_reduction <add>, %44, %cst_18 [1] : vector<12x12xf32> to vector<12xf32>
    %46 = vector.shape_cast %45 : vector<12xf32> to vector<12x1xf32>
    %47 = tpu.reciprocal %46 {approx = true} : vector<12x1xf32> -> vector<12x1xf32>
    %48 = vector.broadcast %47 : vector<12x1xf32> to vector<12x12xf32>
    %49 = arith.mulf %44, %48 : vector<12x12xf32>
    %50 = vector.broadcast %12 : vector<1x12xf32> to vector<12x12xf32>
    %51 = arith.mulf %49, %50 : vector<12x12xf32>
    %c1 = arith.constant 1 : index
    %c0_19 = arith.constant 0 : index
    %c0_20 = arith.constant 0 : index
    %52 = vector.load %arg7[%c1, %c0_19, %c0_20] : memref<6x12x12xf32, #tpu.memory_space<vmem>>, vector<1x12x12xf32>
    %53 = vector.shape_cast %52 : vector<1x12x12xf32> to vector<12x12xf32>
    %54 = vector.shape_cast %51 : vector<12x12xf32> to vector<1x12x12xf32>
    tpu.vector_store %arg7[%c1, %c0_19, %c0_20], %54 {strides = array<i32>} : memref<6x12x12xf32, #tpu.memory_space<vmem>>, vector<1x12x12xf32>,
    %55 = vector.extract_strided_slice %9 {offsets = [0, 64], sizes = [12, 64], strides = [1, 1]} : vector<12x384xf32> to vector<12x64xf32>
    %cst_21 = arith.constant dense<0.000000e+00> : vector<12x64xf32>
    %56 = tpu.matmul %51, %55, %cst_21 {dimension_numbers = #tpu.dot_dimension_numbers<[1], [0], [0], [1], [0, 0, 1, 1], [], []>} : vector<12x12xf32>, vector<12x64xf32>, vector<12x64xf32> -> vector<12x64xf32>
    %57 = vector.extract_strided_slice %7 {offsets = [0, 128], sizes = [12, 64], strides = [1, 1]} : vector<12x384xf32> to vector<12x64xf32>
    %58 = vector.extract_strided_slice %10 {offsets = [128, 0], sizes = [64, 12], strides = [1, 1]} : vector<384x12xf32> to vector<64x12xf32>
    %cst_22 = arith.constant dense<0.000000e+00> : vector<12x12xf32>
    %59 = tpu.matmul %57, %58, %cst_22 {dimension_numbers = #tpu.dot_dimension_numbers<[1], [0], [0], [1], [0, 0, 1, 1], [], []>} : vector<12x64xf32>, vector<64x12xf32>, vector<12x12xf32> -> vector<12x12xf32>
    %60 = vector.broadcast %11 : vector<1x12xf32> to vector<12x12xf32>
    %61 = arith.addf %59, %60 : vector<12x12xf32>
    %cst_23 = arith.constant dense<0xFF800000> : vector<12xf32>
    %62 = vector.multi_reduction <maximumf>, %61, %cst_23 [1] : vector<12x12xf32> to vector<12xf32>
    %63 = vector.shape_cast %62 : vector<12xf32> to vector<12x1xf32>
    %64 = vector.broadcast %63 : vector<12x1xf32> to vector<12x12xf32>
    %65 = arith.subf %61, %64 : vector<12x12xf32>
    %66 = math.exp %65 : vector<12x12xf32>
    %cst_24 = arith.constant dense<0.000000e+00> : vector<12xf32>
    %67 = vector.multi_reduction <add>, %66, %cst_24 [1] : vector<12x12xf32> to vector<12xf32>
    %68 = vector.shape_cast %67 : vector<12xf32> to vector<12x1xf32>
    %69 = tpu.reciprocal %68 {approx = true} : vector<12x1xf32> -> vector<12x1xf32>
    %70 = vector.broadcast %69 : vector<12x1xf32> to vector<12x12xf32>
    %71 = arith.mulf %66, %70 : vector<12x12xf32>
    %72 = vector.broadcast %12 : vector<1x12xf32> to vector<12x12xf32>
    %73 = arith.mulf %71, %72 : vector<12x12xf32>
    %c2 = arith.constant 2 : index
    %c0_25 = arith.constant 0 : index
    %c0_26 = arith.constant 0 : index
    %74 = vector.load %arg7[%c2, %c0_25, %c0_26] : memref<6x12x12xf32, #tpu.memory_space<vmem>>, vector<1x12x12xf32>
    %75 = vector.shape_cast %74 : vector<1x12x12xf32> to vector<12x12xf32>
    %76 = vector.shape_cast %73 : vector<12x12xf32> to vector<1x12x12xf32>
    tpu.vector_store %arg7[%c2, %c0_25, %c0_26], %76 {strides = array<i32>} : memref<6x12x12xf32, #tpu.memory_space<vmem>>, vector<1x12x12xf32>,
    %77 = vector.extract_strided_slice %9 {offsets = [0, 128], sizes = [12, 64], strides = [1, 1]} : vector<12x384xf32> to vector<12x64xf32>
    %cst_27 = arith.constant dense<0.000000e+00> : vector<12x64xf32>
    %78 = tpu.matmul %73, %77, %cst_27 {dimension_numbers = #tpu.dot_dimension_numbers<[1], [0], [0], [1], [0, 0, 1, 1], [], []>} : vector<12x12xf32>, vector<12x64xf32>, vector<12x64xf32> -> vector<12x64xf32>
    %79 = vector.extract_strided_slice %7 {offsets = [0, 192], sizes = [12, 64], strides = [1, 1]} : vector<12x384xf32> to vector<12x64xf32>
    %80 = vector.extract_strided_slice %10 {offsets = [192, 0], sizes = [64, 12], strides = [1, 1]} : vector<384x12xf32> to vector<64x12xf32>
    %cst_28 = arith.constant dense<0.000000e+00> : vector<12x12xf32>
    %81 = tpu.matmul %79, %80, %cst_28 {dimension_numbers = #tpu.dot_dimension_numbers<[1], [0], [0], [1], [0, 0, 1, 1], [], []>} : vector<12x64xf32>, vector<64x12xf32>, vector<12x12xf32> -> vector<12x12xf32>
    %82 = vector.broadcast %11 : vector<1x12xf32> to vector<12x12xf32>
    %83 = arith.addf %81, %82 : vector<12x12xf32>
    %cst_29 = arith.constant dense<0xFF800000> : vector<12xf32>
    %84 = vector.multi_reduction <maximumf>, %83, %cst_29 [1] : vector<12x12xf32> to vector<12xf32>
    %85 = vector.shape_cast %84 : vector<12xf32> to vector<12x1xf32>
    %86 = vector.broadcast %85 : vector<12x1xf32> to vector<12x12xf32>
    %87 = arith.subf %83, %86 : vector<12x12xf32>
    %88 = math.exp %87 : vector<12x12xf32>
    %cst_30 = arith.constant dense<0.000000e+00> : vector<12xf32>
    %89 = vector.multi_reduction <add>, %88, %cst_30 [1] : vector<12x12xf32> to vector<12xf32>
    %90 = vector.shape_cast %89 : vector<12xf32> to vector<12x1xf32>
    %91 = tpu.reciprocal %90 {approx = true} : vector<12x1xf32> -> vector<12x1xf32>
    %92 = vector.broadcast %91 : vector<12x1xf32> to vector<12x12xf32>
    %93 = arith.mulf %88, %92 : vector<12x12xf32>
    %94 = vector.broadcast %12 : vector<1x12xf32> to vector<12x12xf32>
    %95 = arith.mulf %93, %94 : vector<12x12xf32>
    %c3 = arith.constant 3 : index
    %c0_31 = arith.constant 0 : index
    %c0_32 = arith.constant 0 : index
    %96 = vector.load %arg7[%c3, %c0_31, %c0_32] : memref<6x12x12xf32, #tpu.memory_space<vmem>>, vector<1x12x12xf32>
    %97 = vector.shape_cast %96 : vector<1x12x12xf32> to vector<12x12xf32>
    %98 = vector.shape_cast %95 : vector<12x12xf32> to vector<1x12x12xf32>
    tpu.vector_store %arg7[%c3, %c0_31, %c0_32], %98 {strides = array<i32>} : memref<6x12x12xf32, #tpu.memory_space<vmem>>, vector<1x12x12xf32>,
    %99 = vector.extract_strided_slice %9 {offsets = [0, 192], sizes = [12, 64], strides = [1, 1]} : vector<12x384xf32> to vector<12x64xf32>
    %cst_33 = arith.constant dense<0.000000e+00> : vector<12x64xf32>
    %100 = tpu.matmul %95, %99, %cst_33 {dimension_numbers = #tpu.dot_dimension_numbers<[1], [0], [0], [1], [0, 0, 1, 1], [], []>} : vector<12x12xf32>, vector<12x64xf32>, vector<12x64xf32> -> vector<12x64xf32>
    %101 = vector.extract_strided_slice %7 {offsets = [0, 256], sizes = [12, 64], strides = [1, 1]} : vector<12x384xf32> to vector<12x64xf32>
    %102 = vector.extract_strided_slice %10 {offsets = [256, 0], sizes = [64, 12], strides = [1, 1]} : vector<384x12xf32> to vector<64x12xf32>
    %cst_34 = arith.constant dense<0.000000e+00> : vector<12x12xf32>
    %103 = tpu.matmul %101, %102, %cst_34 {dimension_numbers = #tpu.dot_dimension_numbers<[1], [0], [0], [1], [0, 0, 1, 1], [], []>} : vector<12x64xf32>, vector<64x12xf32>, vector<12x12xf32> -> vector<12x12xf32>
    %104 = vector.broadcast %11 : vector<1x12xf32> to vector<12x12xf32>
    %105 = arith.addf %103, %104 : vector<12x12xf32>
    %cst_35 = arith.constant dense<0xFF800000> : vector<12xf32>
    %106 = vector.multi_reduction <maximumf>, %105, %cst_35 [1] : vector<12x12xf32> to vector<12xf32>
    %107 = vector.shape_cast %106 : vector<12xf32> to vector<12x1xf32>
    %108 = vector.broadcast %107 : vector<12x1xf32> to vector<12x12xf32>
    %109 = arith.subf %105, %108 : vector<12x12xf32>
    %110 = math.exp %109 : vector<12x12xf32>
    %cst_36 = arith.constant dense<0.000000e+00> : vector<12xf32>
    %111 = vector.multi_reduction <add>, %110, %cst_36 [1] : vector<12x12xf32> to vector<12xf32>
    %112 = vector.shape_cast %111 : vector<12xf32> to vector<12x1xf32>
    %113 = tpu.reciprocal %112 {approx = true} : vector<12x1xf32> -> vector<12x1xf32>
    %114 = vector.broadcast %113 : vector<12x1xf32> to vector<12x12xf32>
    %115 = arith.mulf %110, %114 : vector<12x12xf32>
    %116 = vector.broadcast %12 : vector<1x12xf32> to vector<12x12xf32>
    %117 = arith.mulf %115, %116 : vector<12x12xf32>
    %c4 = arith.constant 4 : index
    %c0_37 = arith.constant 0 : index
    %c0_38 = arith.constant 0 : index
    %118 = vector.load %arg7[%c4, %c0_37, %c0_38] : memref<6x12x12xf32, #tpu.memory_space<vmem>>, vector<1x12x12xf32>
    %119 = vector.shape_cast %118 : vector<1x12x12xf32> to vector<12x12xf32>
    %120 = vector.shape_cast %117 : vector<12x12xf32> to vector<1x12x12xf32>
    tpu.vector_store %arg7[%c4, %c0_37, %c0_38], %120 {strides = array<i32>} : memref<6x12x12xf32, #tpu.memory_space<vmem>>, vector<1x12x12xf32>,
    %121 = vector.extract_strided_slice %9 {offsets = [0, 256], sizes = [12, 64], strides = [1, 1]} : vector<12x384xf32> to vector<12x64xf32>
    %cst_39 = arith.constant dense<0.000000e+00> : vector<12x64xf32>
    %122 = tpu.matmul %117, %121, %cst_39 {dimension_numbers = #tpu.dot_dimension_numbers<[1], [0], [0], [1], [0, 0, 1, 1], [], []>} : vector<12x12xf32>, vector<12x64xf32>, vector<12x64xf32> -> vector<12x64xf32>
    %123 = vector.extract_strided_slice %7 {offsets = [0, 320], sizes = [12, 64], strides = [1, 1]} : vector<12x384xf32> to vector<12x64xf32>
    %124 = vector.extract_strided_slice %10 {offsets = [320, 0], sizes = [64, 12], strides = [1, 1]} : vector<384x12xf32> to vector<64x12xf32>
    %cst_40 = arith.constant dense<0.000000e+00> : vector<12x12xf32>
    %125 = tpu.matmul %123, %124, %cst_40 {dimension_numbers = #tpu.dot_dimension_numbers<[1], [0], [0], [1], [0, 0, 1, 1], [], []>} : vector<12x64xf32>, vector<64x12xf32>, vector<12x12xf32> -> vector<12x12xf32>
    %126 = vector.broadcast %11 : vector<1x12xf32> to vector<12x12xf32>
    %127 = arith.addf %125, %126 : vector<12x12xf32>
    %cst_41 = arith.constant dense<0xFF800000> : vector<12xf32>
    %128 = vector.multi_reduction <maximumf>, %127, %cst_41 [1] : vector<12x12xf32> to vector<12xf32>
    %129 = vector.shape_cast %128 : vector<12xf32> to vector<12x1xf32>
    %130 = vector.broadcast %129 : vector<12x1xf32> to vector<12x12xf32>
    %131 = arith.subf %127, %130 : vector<12x12xf32>
    %132 = math.exp %131 : vector<12x12xf32>
    %cst_42 = arith.constant dense<0.000000e+00> : vector<12xf32>
    %133 = vector.multi_reduction <add>, %132, %cst_42 [1] : vector<12x12xf32> to vector<12xf32>
    %134 = vector.shape_cast %133 : vector<12xf32> to vector<12x1xf32>
    %135 = tpu.reciprocal %134 {approx = true} : vector<12x1xf32> -> vector<12x1xf32>
    %136 = vector.broadcast %135 : vector<12x1xf32> to vector<12x12xf32>
    %137 = arith.mulf %132, %136 : vector<12x12xf32>
    %138 = vector.broadcast %12 : vector<1x12xf32> to vector<12x12xf32>
    %139 = arith.mulf %137, %138 : vector<12x12xf32>
    %c5 = arith.constant 5 : index
    %c0_43 = arith.constant 0 : index
    %c0_44 = arith.constant 0 : index
    %140 = vector.load %arg7[%c5, %c0_43, %c0_44] : memref<6x12x12xf32, #tpu.memory_space<vmem>>, vector<1x12x12xf32>
    %141 = vector.shape_cast %140 : vector<1x12x12xf32> to vector<12x12xf32>
    %142 = vector.shape_cast %139 : vector<12x12xf32> to vector<1x12x12xf32>
    tpu.vector_store %arg7[%c5, %c0_43, %c0_44], %142 {strides = array<i32>} : memref<6x12x12xf32, #tpu.memory_space<vmem>>, vector<1x12x12xf32>,
    %143 = vector.extract_strided_slice %9 {offsets = [0, 320], sizes = [12, 64], strides = [1, 1]} : vector<12x384xf32> to vector<12x64xf32>
    %cst_45 = arith.constant dense<0.000000e+00> : vector<12x64xf32>
    %144 = tpu.matmul %139, %143, %cst_45 {dimension_numbers = #tpu.dot_dimension_numbers<[1], [0], [0], [1], [0, 0, 1, 1], [], []>} : vector<12x12xf32>, vector<12x64xf32>, vector<12x64xf32> -> vector<12x64xf32>
    %145 = tpu.concatenate %34, %56, %78, %100, %122, %144 in 1 : vector<12x64xf32>, vector<12x64xf32>, vector<12x64xf32>, vector<12x64xf32>, vector<12x64xf32>, vector<12x64xf32> -> vector<12x384xf32>
    %c0_46 = arith.constant 0 : index
    %c0_47 = arith.constant 0 : index
    %146 = vector.load %arg6[%c0_46, %c0_47] : memref<12x384xf32, #tpu.memory_space<vmem>>, vector<12x384xf32>
    tpu.vector_store %arg6[%c0_46, %c0_47], %145 {strides = array<i32>} : memref<12x384xf32, #tpu.memory_space<vmem>>, vector<12x384xf32>,
    return
  }
  func.func @transform_0(%arg0: i32) -> (i32, i32) {
    %c0_i32 = arith.constant 0 : i32
    %c0_i32_0 = arith.constant 0 : i32
    %c0_i32_1 = arith.constant 0 : i32
    return %c0_i32, %c0_i32_0 : i32, i32
  }
  func.func @transform_1(%arg0: i32) -> (i32, i32) {
    %c0_i32 = arith.constant 0 : i32
    %c0_i32_0 = arith.constant 0 : i32
    %c0_i32_1 = arith.constant 0 : i32
    return %c0_i32, %c0_i32_0 : i32, i32
  }
  func.func @transform_2(%arg0: i32) -> (i32, i32) {
    %c0_i32 = arith.constant 0 : i32
    %c0_i32_0 = arith.constant 0 : i32
    %c0_i32_1 = arith.constant 0 : i32
    return %c0_i32, %c0_i32_0 : i32, i32
  }
  func.func @transform_3(%arg0: i32) -> (i32, i32) {
    %c0_i32 = arith.constant 0 : i32
    %c0_i32_0 = arith.constant 0 : i32
    return %c0_i32, %arg0 : i32, i32
  }
  func.func @transform_4(%arg0: i32) -> (i32, i32) {
    %c0_i32 = arith.constant 0 : i32
    %c0_i32_0 = arith.constant 0 : i32
    return %c0_i32, %arg0 : i32, i32
  }
  func.func @transform_5(%arg0: i32) -> (i32, i32) {
    %c0_i32 = arith.constant 0 : i32
    %c0_i32_0 = arith.constant 0 : i32
    return %c0_i32, %arg0 : i32, i32
  }
  func.func @transform_6(%arg0: i32) -> (i32, i32, i32) {
    %c0_i32 = arith.constant 0 : i32
    %c0_i32_0 = arith.constant 0 : i32
    %c0_i32_1 = arith.constant 0 : i32
    return %arg0, %c0_i32, %c0_i32_0 : i32, i32, i32
  }
}

</mosaic_0001>

<llo_original>
// kernel: tpu_custom_call.1
$region0: #{tpu_custom_call.1}
  #allocation0 [shape = 'u32[]', space=smem, size = 0x4, offset = 0x4, fixed_abs, tag = 'smem constant byte address 0x4 - core index']
  #allocation1 [shape = 'u32[144,128]{1,0:T(1,128)}', space=vmem, size = 0x12000, scoped, tag = 'internal scratch']
  %s0 = inlined_call_operand.hbm [shape: f32[12,768], index: 0, kind: input, shape index: {}]
  %s1 = inlined_call_operand.hbm [shape: f32[1,12], index: 1, kind: input, shape index: {}]
  %s2 = inlined_call_operand.hbm [shape: f32[1,12], index: 2, kind: input, shape index: {}]
  %s3 = inlined_call_operand.hbm [shape: bf16[768,2304], index: 3, kind: input, shape index: {}]
  %s4 = inlined_call_operand.hbm [shape: f32[1,2304], index: 4, kind: input, shape index: {}]
  %s5 = inlined_call_operand.hbm [shape: f32[12,768], index: 5, kind: output, shape index: {0}]
  %s6 = inlined_call_operand.hbm [shape: f32[12,12,12], index: 6, kind: output, shape index: {1}]
  %7 = xla_tuple %s5, %s6
  %s8 = sld [smem:[#allocation0]]
  $region81: #{tpu_custom_call.1} parent=0
    _
  %s10 = ssub.s32 1, %s8
  %s11 = scalar_select 0, %s10, %s8
  $region1: #{tpu_custom_call.1} parent=0
    #allocation2 [shape = 'u8[49152]{0}', space=vmem, size = 0xc000, scoped, tag = 'input window, operand 0, single buffered']
    #allocation3 [shape = 's32[2]{0}', space=sflag, size = 0x8, scoped, tag = 'scoped memory for tpu_custom_call.1']
    #allocation4 [shape = 's32[2]{0}', space=sflag, size = 0x8, scoped, tag = 'scoped memory for tpu_custom_call.1']
    #allocation5 [shape = 'u8[512]{0}', space=vmem, size = 0x400, scoped, tag = 'input window, operand 1, single buffered']
    #allocation6 [shape = 's32[1]{0}', space=sflag, size = 0x4, scoped, tag = 'scoped memory for tpu_custom_call.1']
    #allocation7 [shape = 'u8[512]{0}', space=vmem, size = 0x400, scoped, tag = 'input window, operand 2, single buffered']
    #allocation8 [shape = 'u8[3538944]{0}', space=vmem, size = 0x360000, scoped, tag = 'input window, operand 3']
    #allocation9 [shape = 's32[2]{0}', space=sflag, size = 0x8, scoped, tag = 'scoped memory for tpu_custom_call.1']
    #allocation10 [shape = 'u8[9216]{0}', space=vmem, size = 0x2400, scoped, tag = 'input window, operand 4']
    #allocation11 [shape = 'u8[49152]{0}', space=vmem, size = 0xc000, scoped, tag = 'output window, operand 0']
    #allocation12 [shape = 'u8[98304]{0}', space=vmem, size = 0x18000, scoped, tag = 'output window, operand 1']
    #allocation13 [shape = 's32[2]{0}', space=sflag, size = 0x8, scoped, tag = 'scoped memory for tpu_custom_call.1']
    %12 = vsyncpa [#allocation3], 0
    %13 = vsyncpa [#allocation6], 0
    %14 = vsyncpa [#allocation9], 0
    %s15 = scalar_lea.sflag [#allocation9], 1
    %16 = vsyncpa %s15, 0
    %17 = vsyncpa [#allocation4], 0
    %s18 = scalar_lea.sflag [#allocation4], 1
    %19 = vsyncpa %s18, 0
    %20 = vsyncpa [#allocation13], 0
    %s21 = scalar_lea.sflag [#allocation13], 1
    %22 = vsyncpa %s21, 0
    loop: start=0, step=1, limit=4
    $region2: #{tpu_custom_call.1} parent=1 // loop_pre_header
      _
    $region3: #{tpu_custom_call.1} parent=1 // loop_header
      %s24 = sphi 0, %s28
      %p25 = scmp.ge.s32.totalorder %s24, 4
      %s32 = sphi 0, %s32
      %s34 = sphi 0, %s32
      %s35 = sphi 0, %s34
      %s49 = sphi 0, %s35
      %s53 = sphi 0, %s53
      %s55 = sphi 0, %s53
      %s56 = sphi 0, %s55
      %s70 = sphi 0, %s56
      %s74 = sphi 0, %s74
      %s76 = sphi 0, %s74
      %s77 = sphi 0, %s76
      %s91 = sphi 0, %s77
      %s97 = sphi 0, %s99
      %s100 = sphi 0, %s97
      %s101 = sphi 0, %s100
      %s117 = sphi 0, %s101
      %s123 = sphi 0, %s125
      %s126 = sphi 0, %s123
      %s127 = sphi 0, %s126
      %s143 = sphi 0, %s127
      %s149 = sphi 0, %s151
      %s152 = sphi 0, %s149
      %s153 = sphi 0, %s152
      %s169 = sphi 0, %s153
      %s175 = sphi 0, %s177
      %s178 = sphi 0, %s175
      %s179 = sphi 0, %s178
      %s195 = sphi 0, %s179
    $region4: #{tpu_custom_call.1} parent=1 // loop_header_branch
      %27 = sbr.rel (%p25) target = $region8
    $region5: #{tpu_custom_call.1} parent=1 // loop_body
      %s29 = ssub.s32 %s24, 1
      %s30 = ssub.s32 %s24, 2
      %s31 = sadd.s32 %s24, 1
      %s33 = sadd.s32 %s32, 1
      %p36 = scmp.eq.s32.totalorder %s24, 1
      %p37 = scmp.ne.s32.totalorder %s32, %s34
      %p38 = scmp.eq.s32.totalorder %s24, 0
      %p39 = por %p37, %p38
      %p40 = scmp.ne.s32.totalorder %s32, %s34
      %p41 = scmp.eq.s32.totalorder %s29, 1
      %p42 = por %p40, %p41
      %p43 = scmp.ne.s32.totalorder %s34, %s35
      %p44 = scmp.eq.s32.totalorder %s29, 0
      %p45 = por %p43, %p44
      %p46 = scmp.ne.s32.totalorder %s34, %s35
      %p47 = scmp.eq.s32.totalorder %s30, 1
      %p48 = por %p46, %p47
      %p50 = scmp.ne.s32.totalorder %s35, %s49
      %p51 = scmp.eq.s32.totalorder %s30, 0
      %p52 = por %p50, %p51
      %s54 = sadd.s32 %s53, 1
      %p57 = scmp.eq.s32.totalorder %s24, 1
      %p58 = scmp.ne.s32.totalorder %s53, %s55
      %p59 = scmp.eq.s32.totalorder %s24, 0
      %p60 = por %p58, %p59
      %p61 = scmp.ne.s32.totalorder %s53, %s55
      %p62 = scmp.eq.s32.totalorder %s29, 1
      %p63 = por %p61, %p62
      %p64 = scmp.ne.s32.totalorder %s55, %s56
      %p65 = scmp.eq.s32.totalorder %s29, 0
      %p66 = por %p64, %p65
      %p67 = scmp.ne.s32.totalorder %s55, %s56
      %p68 = scmp.eq.s32.totalorder %s30, 1
      %p69 = por %p67, %p68
      %p71 = scmp.ne.s32.totalorder %s56, %s70
      %p72 = scmp.eq.s32.totalorder %s30, 0
      %p73 = por %p71, %p72
      %s75 = sadd.s32 %s74, 1
      %p78 = scmp.eq.s32.totalorder %s24, 1
      %p79 = scmp.ne.s32.totalorder %s74, %s76
      %p80 = scmp.eq.s32.totalorder %s24, 0
      %p81 = por %p79, %p80
      %p82 = scmp.ne.s32.totalorder %s74, %s76
      %p83 = scmp.eq.s32.totalorder %s29, 1
      %p84 = por %p82, %p83
      %p85 = scmp.ne.s32.totalorder %s76, %s77
      %p86 = scmp.eq.s32.totalorder %s29, 0
      %p87 = por %p85, %p86
      %p88 = scmp.ne.s32.totalorder %s76, %s77
      %p89 = scmp.eq.s32.totalorder %s30, 1
      %p90 = por %p88, %p89
      %p92 = scmp.ne.s32.totalorder %s77, %s91
      %p93 = scmp.eq.s32.totalorder %s30, 0
      %p94 = por %p92, %p93
      %s95 = ssub.s32 %s24, %s31
      %p96 = scmp.eq.s32.totalorder %s95, 0
      %s98 = sadd.s32 %s97, 1
      %s99 = scalar_select %p96, %s97, %s98
      %p102 = pneg %p96
      %p103 = scmp.eq.s32.totalorder %s24, 1
      %p104 = por %p102, %p103
      %p105 = scmp.ne.s32.totalorder %s97, %s100
      %p106 = scmp.eq.s32.totalorder %s24, 0
      %p107 = por %p105, %p106
      %p108 = scmp.ne.s32.totalorder %s97, %s100
      %p109 = scmp.eq.s32.totalorder %s29, 1
      %p110 = por %p108, %p109
      %p111 = scmp.ne.s32.totalorder %s100, %s101
      %p112 = scmp.eq.s32.totalorder %s29, 0
      %p113 = por %p111, %p112
      %p114 = scmp.ne.s32.totalorder %s100, %s101
      %p115 = scmp.eq.s32.totalorder %s30, 1
      %p116 = por %p114, %p115
      %p118 = scmp.ne.s32.totalorder %s101, %s117
      %p119 = scmp.eq.s32.totalorder %s30, 0
      %p120 = por %p118, %p119
      %s121 = ssub.s32 %s24, %s31
      %p122 = scmp.eq.s32.totalorder %s121, 0
      %s124 = sadd.s32 %s123, 1
      %s125 = scalar_select %p122, %s123, %s124
      %p128 = pneg %p122
      %p129 = scmp.eq.s32.totalorder %s24, 1
      %p130 = por %p128, %p129
      %p131 = scmp.ne.s32.totalorder %s123, %s126
      %p132 = scmp.eq.s32.totalorder %s24, 0
      %p133 = por %p131, %p132
      %p134 = scmp.ne.s32.totalorder %s123, %s126
      %p135 = scmp.eq.s32.totalorder %s29, 1
      %p136 = por %p134, %p135
      %p137 = scmp.ne.s32.totalorder %s126, %s127
      %p138 = scmp.eq.s32.totalorder %s29, 0
      %p139 = por %p137, %p138
      %p140 = scmp.ne.s32.totalorder %s126, %s127
      %p141 = scmp.eq.s32.totalorder %s30, 1
      %p142 = por %p140, %p141
      %p144 = scmp.ne.s32.totalorder %s127, %s143
      %p145 = scmp.eq.s32.totalorder %s30, 0
      %p146 = por %p144, %p145
      %s147 = ssub.s32 %s24, %s31
      %p148 = scmp.eq.s32.totalorder %s147, 0
      %s150 = sadd.s32 %s149, 1
      %s151 = scalar_select %p148, %s149, %s150
      %p154 = pneg %p148
      %p155 = scmp.eq.s32.totalorder %s24, 1
      %p156 = por %p154, %p155
      %p157 = scmp.ne.s32.totalorder %s149, %s152
      %p158 = scmp.eq.s32.totalorder %s24, 0
      %p159 = por %p157, %p158
      %p160 = scmp.ne.s32.totalorder %s149, %s152
      %p161 = scmp.eq.s32.totalorder %s29, 1
      %p162 = por %p160, %p161
      %p163 = scmp.ne.s32.totalorder %s152, %s153
      %p164 = scmp.eq.s32.totalorder %s29, 0
      %p165 = por %p163, %p164
      %p166 = scmp.ne.s32.totalorder %s152, %s153
      %p167 = scmp.eq.s32.totalorder %s30, 1
      %p168 = por %p166, %p167
      %p170 = scmp.ne.s32.totalorder %s153, %s169
      %p171 = scmp.eq.s32.totalorder %s30, 0
      %p172 = por %p170, %p171
      %s173 = ssub.s32 %s24, %s31
      %p174 = scmp.eq.s32.totalorder %s173, 0
      %s176 = sadd.s32 %s175, 1
      %s177 = scalar_select %p174, %s175, %s176
      %p180 = pneg %p174
      %p181 = scmp.eq.s32.totalorder %s24, 1
      %p182 = por %p180, %p181
      %p183 = scmp.ne.s32.totalorder %s175, %s178
      %p184 = scmp.eq.s32.totalorder %s24, 0
      %p185 = por %p183, %p184
      %p186 = scmp.ne.s32.totalorder %s175, %s178
      %p187 = scmp.eq.s32.totalorder %s29, 1
      %p188 = por %p186, %p187
      %p189 = scmp.ne.s32.totalorder %s178, %s179
      %p190 = scmp.eq.s32.totalorder %s29, 0
      %p191 = por %p189, %p190
      %p192 = scmp.ne.s32.totalorder %s178, %s179
      %p193 = scmp.eq.s32.totalorder %s30, 1
      %p194 = por %p192, %p193
      %p196 = scmp.ne.s32.totalorder %s179, %s195
      %p197 = scmp.eq.s32.totalorder %s30, 0
      %p198 = por %p196, %p197
      %p199 = scmp.le.s32.totalorder 1, %s24
      %p200 = scmp.lt.s32.totalorder %s24, 3
      %p201 = pnand %p199, %p200
      %p202 = pneg %p201
      // Predicated region
      $region9: #{tpu_custom_call.1} parent=5 // pred_check
        _
      $region10: #{tpu_custom_call.1} parent=5 // pred_check_branch
        %204 = sbr.rel (%p201) target = $region12
      $region11: #{tpu_custom_call.1} parent=5 // pred_region
        %s205 = ssub.s32 %s24, 1
        // Predicated region
        $region13: #{tpu_custom_call.1} parent=11 // pred_check
          %p206 = pneg %p45
        $region14: #{tpu_custom_call.1} parent=11 // pred_check_branch
          %208 = sbr.rel (%p206) target = $region16
        $region15: #{tpu_custom_call.1} parent=11 // pred_region
          %s210 = ssub.s32 1536, 1536
          %211 = vsyncadd [#allocation3], %s210
          %s212 = sshll.u32 [#allocation2], 4
          %s213 = int_to_ptr.vmem [resolvable:$true] %s212
          %218 = dma.hbm_to_vmem [thread:$0]  %s0, 1536, %s213, [#allocation3], 768, 768, 48
        $region16: #{tpu_custom_call.1} parent=11 // pred_fallthru
          _
        // Predicated region
        $region17: #{tpu_custom_call.1} parent=11 // pred_check
          %p219 = pneg %p66
        $region18: #{tpu_custom_call.1} parent=11 // pred_check_branch
          %221 = sbr.rel (%p219) target = $region20
        $region19: #{tpu_custom_call.1} parent=11 // pred_region
          %s223 = ssub.s32 16, 16
          %224 = vsyncadd [#allocation6], %s223
          %s226 = sshll.u32 [#allocation5], 4
          %s227 = int_to_ptr.vmem [resolvable:$true] %s226
          %229 = dma.hbm_to_vmem [thread:$0]  %s1, 16, %s227, [#allocation6]
        $region20: #{tpu_custom_call.1} parent=11 // pred_fallthru
          _
        // Predicated region
        $region21: #{tpu_custom_call.1} parent=11 // pred_check
          %p230 = pneg %p87
        $region22: #{tpu_custom_call.1} parent=11 // pred_check_branch
          %232 = sbr.rel (%p230) target = $region24
        $region23: #{tpu_custom_call.1} parent=11 // pred_region
          %s234 = ssub.s32 16, 16
          %235 = vsyncadd [#allocation6], %s234
          %s237 = sshll.u32 [#allocation7], 4
          %s238 = int_to_ptr.vmem [resolvable:$true] %s237
          %240 = dma.hbm_to_vmem [thread:$0]  %s2, 16, %s238, [#allocation6]
        $region24: #{tpu_custom_call.1} parent=11 // pred_fallthru
          _
      $region12: #{tpu_custom_call.1} parent=5 // pred_fallthru
        _
      %p241 = scmp.lt.s32.totalorder %s24, 2
      // Predicated region
      $region25: #{tpu_custom_call.1} parent=5 // pred_check
        %p242 = pneg %p241
      $region26: #{tpu_custom_call.1} parent=5 // pred_check_branch
        %244 = sbr.rel (%p242) target = $region28
      $region27: #{tpu_custom_call.1} parent=5 // pred_region
        // Predicated region
        $region29: #{tpu_custom_call.1} parent=27 // pred_check
          %p245 = pneg %p107
        $region30: #{tpu_custom_call.1} parent=27 // pred_check_branch
          %247 = sbr.rel (%p245) target = $region32
        $region31: #{tpu_custom_call.1} parent=27 // pred_region
          %s248 = sand.u32 %s24, 1
          %s249 = scalar_lea.sflag [#allocation9], %s248
          %s250 = sand.u32 %s97, 1
          %s251 = smul.addr %s250, 3456
          %s252 = scalar_lea.vmem [#allocation8], %s251
          %s253 = smul.u32 9, %s24
          %s255 = ssub.s32 55296, 55296
          %256 = vsyncadd %s249, %s255
          %s257 = smul.addr %s253, 64
          %s258 = scalar_lea.hbm %s3, %s257
          %s259 = sshll.u32 %s252, 4
          %s260 = int_to_ptr.vmem [resolvable:$true] %s259
          %265 = dma.hbm_to_vmem [thread:$0]  %s258, 55296, %s260, %s249, 1152, 576, 36
        $region32: #{tpu_custom_call.1} parent=27 // pred_fallthru
          _
        // Predicated region
        $region33: #{tpu_custom_call.1} parent=27 // pred_check
          %p266 = pneg %p133
        $region34: #{tpu_custom_call.1} parent=27 // pred_check_branch
          %268 = sbr.rel (%p266) target = $region36
        $region35: #{tpu_custom_call.1} parent=27 // pred_region
          %s269 = sand.u32 %s24, 1
          %s270 = scalar_lea.sflag [#allocation9], %s269
          %s271 = sand.u32 %s123, 1
          %s272 = smul.addr %s271, 9
          %s273 = scalar_lea.vmem [#allocation10], %s272
          %s274 = smul.u32 9, %s24
          %s276 = ssub.s32 144, 144
          %277 = vsyncadd %s270, %s276
          %s278 = smul.addr %s274, 16
          %s279 = scalar_lea.hbm %s4, %s278
          %s281 = sshll.u32 %s273, 4
          %s282 = int_to_ptr.vmem [resolvable:$true] %s281
          %284 = dma.hbm_to_vmem [thread:$0]  %s279, 144, %s282, %s270
        $region36: #{tpu_custom_call.1} parent=27 // pred_fallthru
          _
      $region28: #{tpu_custom_call.1} parent=5 // pred_fallthru
        _
      %p285 = scmp.le.s32.totalorder 1, %s24
      %p286 = scmp.lt.s32.totalorder %s24, 3
      %p287 = pnand %p285, %p286
      %p288 = pneg %p287
      // Predicated region
      $region37: #{tpu_custom_call.1} parent=5 // pred_check
        _
      $region38: #{tpu_custom_call.1} parent=5 // pred_check_branch
        %290 = sbr.rel (%p287) target = $region40
      $region39: #{tpu_custom_call.1} parent=5 // pred_region
        %s291 = ssub.s32 %s24, 1
        // Predicated region
        $region41: #{tpu_custom_call.1} parent=39 // pred_check
          %p292 = pneg %p45
        $region42: #{tpu_custom_call.1} parent=39 // pred_check_branch
          %294 = sbr.rel (%p292) target = $region44
        $region43: #{tpu_custom_call.1} parent=39 // pred_region
          %295 = dma.done [#allocation3], 1536
        $region44: #{tpu_custom_call.1} parent=39 // pred_fallthru
          _
        // Predicated region
        $region45: #{tpu_custom_call.1} parent=39 // pred_check
          %p296 = pneg %p66
        $region46: #{tpu_custom_call.1} parent=39 // pred_check_branch
          %298 = sbr.rel (%p296) target = $region48
        $region47: #{tpu_custom_call.1} parent=39 // pred_region
          %299 = dma.done [#allocation6], 16
        $region48: #{tpu_custom_call.1} parent=39 // pred_fallthru
          _
        // Predicated region
        $region49: #{tpu_custom_call.1} parent=39 // pred_check
          %p300 = pneg %p87
        $region50: #{tpu_custom_call.1} parent=39 // pred_check_branch
          %302 = sbr.rel (%p300) target = $region52
        $region51: #{tpu_custom_call.1} parent=39 // pred_region
          %303 = dma.done [#allocation6], 16
        $region52: #{tpu_custom_call.1} parent=39 // pred_fallthru
          _
        %s304 = sand.u32 %s29, 1
        %s305 = scalar_lea.sflag [#allocation9], %s304
        %s306 = sand.u32 %s100, 1
        %s307 = smul.addr %s306, 3456
        %s308 = scalar_lea.vmem [#allocation8], %s307
        // Predicated region
        $region53: #{tpu_custom_call.1} parent=39 // pred_check
          %p309 = pneg %p113
        $region54: #{tpu_custom_call.1} parent=39 // pred_check_branch
          %311 = sbr.rel (%p309) target = $region56
        $region55: #{tpu_custom_call.1} parent=39 // pred_region
          %312 = dma.done %s305, 55296
        $region56: #{tpu_custom_call.1} parent=39 // pred_fallthru
          _
        %s313 = sand.u32 %s29, 1
        %s314 = scalar_lea.sflag [#allocation9], %s313
        %s315 = sand.u32 %s126, 1
        %s316 = smul.addr %s315, 9
        %s317 = scalar_lea.vmem [#allocation10], %s316
        // Predicated region
        $region57: #{tpu_custom_call.1} parent=39 // pred_check
          %p318 = pneg %p139
        $region58: #{tpu_custom_call.1} parent=39 // pred_check_branch
          %320 = sbr.rel (%p318) target = $region60
        $region59: #{tpu_custom_call.1} parent=39 // pred_region
          %321 = dma.done %s314, 144
        $region60: #{tpu_custom_call.1} parent=39 // pred_fallthru
          _
        %p322 = pneg %p45
        %p323 = pneg %p42
        %p324 = pneg %p66
        %p325 = pneg %p63
        %p326 = pneg %p87
        %p327 = pneg %p84
        %s328 = sand.u32 %s29, 1
        %s329 = scalar_lea.sflag [#allocation9], %s328
        %s330 = sand.u32 %s100, 1
        %s331 = smul.addr %s330, 3456
        %s332 = scalar_lea.vmem [#allocation8], %s331
        %p333 = pneg %p113
        %p334 = pneg %p110
        %s335 = sand.u32 %s29, 1
        %s336 = scalar_lea.sflag [#allocation9], %s335
        %s337 = sand.u32 %s126, 1
        %s338 = smul.addr %s337, 9
        %s339 = scalar_lea.vmem [#allocation10], %s338
        %p340 = pneg %p139
        %p341 = pneg %p136
        %p342 = pneg %p165
        %p343 = pneg %p162
        %s344 = sand.u32 %s152, 1
        %s345 = scalar_lea.sflag [#allocation4], %s344
        %s346 = sand.u32 %s152, 1
        %s347 = smul.addr %s346, 48
        %s348 = scalar_lea.vmem [#allocation11], %s347
        %p349 = pneg %p191
        %p350 = pneg %p188
        %s351 = sand.u32 %s178, 1
        %s352 = scalar_lea.sflag [#allocation13], %s351
        %s353 = sand.u32 %s178, 1
        %s354 = smul.addr %s353, 96
        %s355 = scalar_lea.vmem [#allocation12], %s354
        %s356 = smul.u32 9, %s29
        %s357 = smul.u32 9, %s29
        %s358 = smul.u32 3, %s29
        %s359 = smul.u32 6, %s29
        %v361 = vld [vmem:[#allocation2] sm:$0xff]
        %v362 = vld [vmem:[#allocation2 + $0x8] sm:$0xff]
        %v363 = vld [vmem:[#allocation2 + $0x10] sm:$0xff]
        %v364 = vld [vmem:[#allocation2 + $0x18] sm:$0xff]
        %v365 = vld [vmem:[#allocation2 + $0x20] sm:$0xff]
        %v366 = vld [vmem:[#allocation2 + $0x28] sm:$0xff]
        %v367 = vld [vmem:[#allocation2 + $0x30] sm:$0xf]
        %v368 = vld [vmem:[#allocation2 + $0x38] sm:$0xf]
        %v369 = vld [vmem:[#allocation2 + $0x40] sm:$0xf]
        %v370 = vld [vmem:[#allocation2 + $0x48] sm:$0xf]
        %v371 = vld [vmem:[#allocation2 + $0x50] sm:$0xf]
        %v372 = vld [vmem:[#allocation2 + $0x58] sm:$0xf]
        %v373 = vpack.c.bf16 %v367, %v361
        %v374 = vpack.c.bf16 %v368, %v362
        %v375 = vpack.c.bf16 %v369, %v363
        %v376 = vpack.c.bf16 %v370, %v364
        %v377 = vpack.c.bf16 %v371, %v365
        %v378 = vpack.c.bf16 %v372, %v366
        %v379 = vld [vmem:[%s308] sm:$0xff]
        %v380 = vld [vmem:[%s308 + $0x8] sm:$0xff]
        %v381 = vld [vmem:[%s308 + $0x10] sm:$0xff]
        %v382 = vld [vmem:[%s308 + $0x18] sm:$0xff]
        %v383 = vld [vmem:[%s308 + $0x20] sm:$0xf]
        %v384 = vld [vmem:[%s308 + $0x24] sm:$0xff]
        %v385 = vld [vmem:[%s308 + $0x2c] sm:$0xff]
        %v386 = vld [vmem:[%s308 + $0x34] sm:$0xff]
        %v387 = vld [vmem:[%s308 + $0x3c] sm:$0xff]
        %v388 = vld [vmem:[%s308 + $0x44] sm:$0xf]
        %v389 = vld [vmem:[%s308 + $0x48] sm:$0xff]
        %v390 = vld [vmem:[%s308 + $0x50] sm:$0xff]
        %v391 = vld [vmem:[%s308 + $0x58] sm:$0xff]
        %v392 = vld [vmem:[%s308 + $0x60] sm:$0xff]
        %v393 = vld [vmem:[%s308 + $0x68] sm:$0xf]
        %v394 = vld [vmem:[%s308 + $0x6c] sm:$0xff]
        %v395 = vld [vmem:[%s308 + $0x74] sm:$0xff]
        %v396 = vld [vmem:[%s308 + $0x7c] sm:$0xff]
        %v397 = vld [vmem:[%s308 + $0x84] sm:$0xff]
        %v398 = vld [vmem:[%s308 + $0x8c] sm:$0xf]
        %v399 = vld [vmem:[%s308 + $0x90] sm:$0xff]
        %v400 = vld [vmem:[%s308 + $0x98] sm:$0xff]
        %v401 = vld [vmem:[%s308 + $0xa0] sm:$0xff]
        %v402 = vld [vmem:[%s308 + $0xa8] sm:$0xff]
        %v403 = vld [vmem:[%s308 + $0xb0] sm:$0xf]
        %v404 = vld [vmem:[%s308 + $0xb4] sm:$0xff]
        %v405 = vld [vmem:[%s308 + $0xbc] sm:$0xff]
        %v406 = vld [vmem:[%s308 + $0xc4] sm:$0xff]
        %v407 = vld [vmem:[%s308 + $0xcc] sm:$0xff]
        %v408 = vld [vmem:[%s308 + $0xd4] sm:$0xf]
        %v409 = vld [vmem:[%s308 + $0xd8] sm:$0xff]
        %v410 = vld [vmem:[%s308 + $0xe0] sm:$0xff]
        %v411 = vld [vmem:[%s308 + $0xe8] sm:$0xff]
        %v412 = vld [vmem:[%s308 + $0xf0] sm:$0xff]
        %v413 = vld [vmem:[%s308 + $0xf8] sm:$0xf]
        %v414 = vld [vmem:[%s308 + $0xfc] sm:$0xff]
        %v415 = vld [vmem:[%s308 + $0x104] sm:$0xff]
        %v416 = vld [vmem:[%s308 + $0x10c] sm:$0xff]
        %v417 = vld [vmem:[%s308 + $0x114] sm:$0xff]
        %v418 = vld [vmem:[%s308 + $0x11c] sm:$0xf]
        %v419 = vld [vmem:[%s308 + $0x120] sm:$0xff]
        %v420 = vld [vmem:[%s308 + $0x128] sm:$0xff]
        %v421 = vld [vmem:[%s308 + $0x130] sm:$0xff]
        %v422 = vld [vmem:[%s308 + $0x138] sm:$0xff]
        %v423 = vld [vmem:[%s308 + $0x140] sm:$0xf]
        %v424 = vld [vmem:[%s308 + $0x144] sm:$0xff]
        %v425 = vld [vmem:[%s308 + $0x14c] sm:$0xff]
        %v426 = vld [vmem:[%s308 + $0x154] sm:$0xff]
        %v427 = vld [vmem:[%s308 + $0x15c] sm:$0xff]
        %v428 = vld [vmem:[%s308 + $0x164] sm:$0xf]
        %v429 = vld [vmem:[%s308 + $0x168] sm:$0xff]
        %v430 = vld [vmem:[%s308 + $0x170] sm:$0xff]
        %v431 = vld [vmem:[%s308 + $0x178] sm:$0xff]
        %v432 = vld [vmem:[%s308 + $0x180] sm:$0xff]
        %v433 = vld [vmem:[%s308 + $0x188] sm:$0xf]
        %v434 = vld [vmem:[%s308 + $0x18c] sm:$0xff]
        %v435 = vld [vmem:[%s308 + $0x194] sm:$0xff]
        %v436 = vld [vmem:[%s308 + $0x19c] sm:$0xff]
        %v437 = vld [vmem:[%s308 + $0x1a4] sm:$0xff]
        %v438 = vld [vmem:[%s308 + $0x1ac] sm:$0xf]
        %v439 = vld [vmem:[%s308 + $0x1b0] sm:$0xff]
        %v440 = vld [vmem:[%s308 + $0x1b8] sm:$0xff]
        %v441 = vld [vmem:[%s308 + $0x1c0] sm:$0xff]
        %v442 = vld [vmem:[%s308 + $0x1c8] sm:$0xff]
        %v443 = vld [vmem:[%s308 + $0x1d0] sm:$0xf]
        %v444 = vld [vmem:[%s308 + $0x1d4] sm:$0xff]
        %v445 = vld [vmem:[%s308 + $0x1dc] sm:$0xff]
        %v446 = vld [vmem:[%s308 + $0x1e4] sm:$0xff]
        %v447 = vld [vmem:[%s308 + $0x1ec] sm:$0xff]
        %v448 = vld [vmem:[%s308 + $0x1f4] sm:$0xf]
        %v449 = vld [vmem:[%s308 + $0x1f8] sm:$0xff]
        %v450 = vld [vmem:[%s308 + $0x200] sm:$0xff]
        %v451 = vld [vmem:[%s308 + $0x208] sm:$0xff]
        %v452 = vld [vmem:[%s308 + $0x210] sm:$0xff]
        %v453 = vld [vmem:[%s308 + $0x218] sm:$0xf]
        %v454 = vld [vmem:[%s308 + $0x21c] sm:$0xff]
        %v455 = vld [vmem:[%s308 + $0x224] sm:$0xff]
        %v456 = vld [vmem:[%s308 + $0x22c] sm:$0xff]
        %v457 = vld [vmem:[%s308 + $0x234] sm:$0xff]
        %v458 = vld [vmem:[%s308 + $0x23c] sm:$0xf]
        %v459 = vld [vmem:[%s308 + $0x240] sm:$0xff]
        %v460 = vld [vmem:[%s308 + $0x248] sm:$0xff]
        %v461 = vld [vmem:[%s308 + $0x250] sm:$0xff]
        %v462 = vld [vmem:[%s308 + $0x258] sm:$0xff]
        %v463 = vld [vmem:[%s308 + $0x260] sm:$0xf]
        %v464 = vld [vmem:[%s308 + $0x264] sm:$0xff]
        %v465 = vld [vmem:[%s308 + $0x26c] sm:$0xff]
        %v466 = vld [vmem:[%s308 + $0x274] sm:$0xff]
        %v467 = vld [vmem:[%s308 + $0x27c] sm:$0xff]
        %v468 = vld [vmem:[%s308 + $0x284] sm:$0xf]
        %v469 = vld [vmem:[%s308 + $0x288] sm:$0xff]
        %v470 = vld [vmem:[%s308 + $0x290] sm:$0xff]
        %v471 = vld [vmem:[%s308 + $0x298] sm:$0xff]
        %v472 = vld [vmem:[%s308 + $0x2a0] sm:$0xff]
        %v473 = vld [vmem:[%s308 + $0x2a8] sm:$0xf]
        %v474 = vld [vmem:[%s308 + $0x2ac] sm:$0xff]
        %v475 = vld [vmem:[%s308 + $0x2b4] sm:$0xff]
        %v476 = vld [vmem:[%s308 + $0x2bc] sm:$0xff]
        %v477 = vld [vmem:[%s308 + $0x2c4] sm:$0xff]
        %v478 = vld [vmem:[%s308 + $0x2cc] sm:$0xf]
        %v479 = vld [vmem:[%s308 + $0x2d0] sm:$0xff]
        %v480 = vld [vmem:[%s308 + $0x2d8] sm:$0xff]
        %v481 = vld [vmem:[%s308 + $0x2e0] sm:$0xff]
        %v482 = vld [vmem:[%s308 + $0x2e8] sm:$0xff]
        %v483 = vld [vmem:[%s308 + $0x2f0] sm:$0xf]
        %v484 = vld [vmem:[%s308 + $0x2f4] sm:$0xff]
        %v485 = vld [vmem:[%s308 + $0x2fc] sm:$0xff]
        %v486 = vld [vmem:[%s308 + $0x304] sm:$0xff]
        %v487 = vld [vmem:[%s308 + $0x30c] sm:$0xff]
        %v488 = vld [vmem:[%s308 + $0x314] sm:$0xf]
        %v489 = vld [vmem:[%s308 + $0x318] sm:$0xff]
        %v490 = vld [vmem:[%s308 + $0x320] sm:$0xff]
        %v491 = vld [vmem:[%s308 + $0x328] sm:$0xff]
        %v492 = vld [vmem:[%s308 + $0x330] sm:$0xff]
        %v493 = vld [vmem:[%s308 + $0x338] sm:$0xf]
        %v494 = vld [vmem:[%s308 + $0x33c] sm:$0xff]
        %v495 = vld [vmem:[%s308 + $0x344] sm:$0xff]
        %v496 = vld [vmem:[%s308 + $0x34c] sm:$0xff]
        %v497 = vld [vmem:[%s308 + $0x354] sm:$0xff]
        %v498 = vld [vmem:[%s308 + $0x35c] sm:$0xf]
        %v499 = vld [vmem:[%s308 + $0x360] sm:$0xff]
        %v500 = vld [vmem:[%s308 + $0x368] sm:$0xff]
        %v501 = vld [vmem:[%s308 + $0x370] sm:$0xff]
        %v502 = vld [vmem:[%s308 + $0x378] sm:$0xff]
        %v503 = vld [vmem:[%s308 + $0x380] sm:$0xf]
        %v504 = vld [vmem:[%s308 + $0x384] sm:$0xff]
        %v505 = vld [vmem:[%s308 + $0x38c] sm:$0xff]
        %v506 = vld [vmem:[%s308 + $0x394] sm:$0xff]
        %v507 = vld [vmem:[%s308 + $0x39c] sm:$0xff]
        %v508 = vld [vmem:[%s308 + $0x3a4] sm:$0xf]
        %v509 = vld [vmem:[%s308 + $0x3a8] sm:$0xff]
        %v510 = vld [vmem:[%s308 + $0x3b0] sm:$0xff]
        %v511 = vld [vmem:[%s308 + $0x3b8] sm:$0xff]
        %v512 = vld [vmem:[%s308 + $0x3c0] sm:$0xff]
        %v513 = vld [vmem:[%s308 + $0x3c8] sm:$0xf]
        %v514 = vld [vmem:[%s308 + $0x3cc] sm:$0xff]
        %v515 = vld [vmem:[%s308 + $0x3d4] sm:$0xff]
        %v516 = vld [vmem:[%s308 + $0x3dc] sm:$0xff]
        %v517 = vld [vmem:[%s308 + $0x3e4] sm:$0xff]
        %v518 = vld [vmem:[%s308 + $0x3ec] sm:$0xf]
        %v519 = vld [vmem:[%s308 + $0x3f0] sm:$0xff]
        %v520 = vld [vmem:[%s308 + $0x3f8] sm:$0xff]
        %v521 = vld [vmem:[%s308 + $0x400] sm:$0xff]
        %v522 = vld [vmem:[%s308 + $0x408] sm:$0xff]
        %v523 = vld [vmem:[%s308 + $0x410] sm:$0xf]
        %v524 = vld [vmem:[%s308 + $0x414] sm:$0xff]
        %v525 = vld [vmem:[%s308 + $0x41c] sm:$0xff]
        %v526 = vld [vmem:[%s308 + $0x424] sm:$0xff]
        %v527 = vld [vmem:[%s308 + $0x42c] sm:$0xff]
        %v528 = vld [vmem:[%s308 + $0x434] sm:$0xf]
        %v529 = vld [vmem:[%s308 + $0x438] sm:$0xff]
        %v530 = vld [vmem:[%s308 + $0x440] sm:$0xff]
        %v531 = vld [vmem:[%s308 + $0x448] sm:$0xff]
        %v532 = vld [vmem:[%s308 + $0x450] sm:$0xff]
        %v533 = vld [vmem:[%s308 + $0x458] sm:$0xf]
        %v534 = vld [vmem:[%s308 + $0x45c] sm:$0xff]
        %v535 = vld [vmem:[%s308 + $0x464] sm:$0xff]
        %v536 = vld [vmem:[%s308 + $0x46c] sm:$0xff]
        %v537 = vld [vmem:[%s308 + $0x474] sm:$0xff]
        %v538 = vld [vmem:[%s308 + $0x47c] sm:$0xf]
        %v539 = vld [vmem:[%s308 + $0x480] sm:$0xff]
        %v540 = vld [vmem:[%s308 + $0x488] sm:$0xff]
        %v541 = vld [vmem:[%s308 + $0x490] sm:$0xff]
        %v542 = vld [vmem:[%s308 + $0x498] sm:$0xff]
        %v543 = vld [vmem:[%s308 + $0x4a0] sm:$0xf]
        %v544 = vld [vmem:[%s308 + $0x4a4] sm:$0xff]
        %v545 = vld [vmem:[%s308 + $0x4ac] sm:$0xff]
        %v546 = vld [vmem:[%s308 + $0x4b4] sm:$0xff]
        %v547 = vld [vmem:[%s308 + $0x4bc] sm:$0xff]
        %v548 = vld [vmem:[%s308 + $0x4c4] sm:$0xf]
        %v549 = vld [vmem:[%s308 + $0x4c8] sm:$0xff]
        %v550 = vld [vmem:[%s308 + $0x4d0] sm:$0xff]
        %v551 = vld [vmem:[%s308 + $0x4d8] sm:$0xff]
        %v552 = vld [vmem:[%s308 + $0x4e0] sm:$0xff]
        %v553 = vld [vmem:[%s308 + $0x4e8] sm:$0xf]
        %v554 = vld [vmem:[%s308 + $0x4ec] sm:$0xff]
        %v555 = vld [vmem:[%s308 + $0x4f4] sm:$0xff]
        %v556 = vld [vmem:[%s308 + $0x4fc] sm:$0xff]
        %v557 = vld [vmem:[%s308 + $0x504] sm:$0xff]
        %v558 = vld [vmem:[%s308 + $0x50c] sm:$0xf]
        %v559 = vld [vmem:[%s308 + $0x510] sm:$0xff]
        %v560 = vld [vmem:[%s308 + $0x518] sm:$0xff]
        %v561 = vld [vmem:[%s308 + $0x520] sm:$0xff]
        %v562 = vld [vmem:[%s308 + $0x528] sm:$0xff]
        %v563 = vld [vmem:[%s308 + $0x530] sm:$0xf]
        %v564 = vld [vmem:[%s308 + $0x534] sm:$0xff]
        %v565 = vld [vmem:[%s308 + $0x53c] sm:$0xff]
        %v566 = vld [vmem:[%s308 + $0x544] sm:$0xff]
        %v567 = vld [vmem:[%s308 + $0x54c] sm:$0xff]
        %v568 = vld [vmem:[%s308 + $0x554] sm:$0xf]
        %v569 = vld [vmem:[%s308 + $0x558] sm:$0xff]
        %v570 = vld [vmem:[%s308 + $0x560] sm:$0xff]
        %v571 = vld [vmem:[%s308 + $0x568] sm:$0xff]
        %v572 = vld [vmem:[%s308 + $0x570] sm:$0xff]
        %v573 = vld [vmem:[%s308 + $0x578] sm:$0xf]
        %v574 = vld [vmem:[%s308 + $0x57c] sm:$0xff]
        %v575 = vld [vmem:[%s308 + $0x584] sm:$0xff]
        %v576 = vld [vmem:[%s308 + $0x58c] sm:$0xff]
        %v577 = vld [vmem:[%s308 + $0x594] sm:$0xff]
        %v578 = vld [vmem:[%s308 + $0x59c] sm:$0xf]
        %v579 = vld [vmem:[%s308 + $0x5a0] sm:$0xff]
        %v580 = vld [vmem:[%s308 + $0x5a8] sm:$0xff]
        %v581 = vld [vmem:[%s308 + $0x5b0] sm:$0xff]
        %v582 = vld [vmem:[%s308 + $0x5b8] sm:$0xff]
        %v583 = vld [vmem:[%s308 + $0x5c0] sm:$0xf]
        %v584 = vld [vmem:[%s308 + $0x5c4] sm:$0xff]
        %v585 = vld [vmem:[%s308 + $0x5cc] sm:$0xff]
        %v586 = vld [vmem:[%s308 + $0x5d4] sm:$0xff]
        %v587 = vld [vmem:[%s308 + $0x5dc] sm:$0xff]
        %v588 = vld [vmem:[%s308 + $0x5e4] sm:$0xf]
        %v589 = vld [vmem:[%s308 + $0x5e8] sm:$0xff]
        %v590 = vld [vmem:[%s308 + $0x5f0] sm:$0xff]
        %v591 = vld [vmem:[%s308 + $0x5f8] sm:$0xff]
        %v592 = vld [vmem:[%s308 + $0x600] sm:$0xff]
        %v593 = vld [vmem:[%s308 + $0x608] sm:$0xf]
        %v594 = vld [vmem:[%s308 + $0x60c] sm:$0xff]
        %v595 = vld [vmem:[%s308 + $0x614] sm:$0xff]
        %v596 = vld [vmem:[%s308 + $0x61c] sm:$0xff]
        %v597 = vld [vmem:[%s308 + $0x624] sm:$0xff]
        %v598 = vld [vmem:[%s308 + $0x62c] sm:$0xf]
        %v599 = vld [vmem:[%s308 + $0x630] sm:$0xff]
        %v600 = vld [vmem:[%s308 + $0x638] sm:$0xff]
        %v601 = vld [vmem:[%s308 + $0x640] sm:$0xff]
        %v602 = vld [vmem:[%s308 + $0x648] sm:$0xff]
        %v603 = vld [vmem:[%s308 + $0x650] sm:$0xf]
        %v604 = vld [vmem:[%s308 + $0x654] sm:$0xff]
        %v605 = vld [vmem:[%s308 + $0x65c] sm:$0xff]
        %v606 = vld [vmem:[%s308 + $0x664] sm:$0xff]
        %v607 = vld [vmem:[%s308 + $0x66c] sm:$0xff]
        %v608 = vld [vmem:[%s308 + $0x674] sm:$0xf]
        %v609 = vld [vmem:[%s308 + $0x678] sm:$0xff]
        %v610 = vld [vmem:[%s308 + $0x680] sm:$0xff]
        %v611 = vld [vmem:[%s308 + $0x688] sm:$0xff]
        %v612 = vld [vmem:[%s308 + $0x690] sm:$0xff]
        %v613 = vld [vmem:[%s308 + $0x698] sm:$0xf]
        %v614 = vld [vmem:[%s308 + $0x69c] sm:$0xff]
        %v615 = vld [vmem:[%s308 + $0x6a4] sm:$0xff]
        %v616 = vld [vmem:[%s308 + $0x6ac] sm:$0xff]
        %v617 = vld [vmem:[%s308 + $0x6b4] sm:$0xff]
        %v618 = vld [vmem:[%s308 + $0x6bc] sm:$0xf]
        %v619 = vld [vmem:[%s308 + $0x6c0] sm:$0xff]
        %v620 = vld [vmem:[%s308 + $0x6c8] sm:$0xff]
        %v621 = vld [vmem:[%s308 + $0x6d0] sm:$0xff]
        %v622 = vld [vmem:[%s308 + $0x6d8] sm:$0xff]
        %v623 = vld [vmem:[%s308 + $0x6e0] sm:$0xf]
        %v624 = vld [vmem:[%s308 + $0x6e4] sm:$0xff]
        %v625 = vld [vmem:[%s308 + $0x6ec] sm:$0xff]
        %v626 = vld [vmem:[%s308 + $0x6f4] sm:$0xff]
        %v627 = vld [vmem:[%s308 + $0x6fc] sm:$0xff]
        %v628 = vld [vmem:[%s308 + $0x704] sm:$0xf]
        %v629 = vld [vmem:[%s308 + $0x708] sm:$0xff]
        %v630 = vld [vmem:[%s308 + $0x710] sm:$0xff]
        %v631 = vld [vmem:[%s308 + $0x718] sm:$0xff]
        %v632 = vld [vmem:[%s308 + $0x720] sm:$0xff]
        %v633 = vld [vmem:[%s308 + $0x728] sm:$0xf]
        %v634 = vld [vmem:[%s308 + $0x72c] sm:$0xff]
        %v635 = vld [vmem:[%s308 + $0x734] sm:$0xff]
        %v636 = vld [vmem:[%s308 + $0x73c] sm:$0xff]
        %v637 = vld [vmem:[%s308 + $0x744] sm:$0xff]
        %v638 = vld [vmem:[%s308 + $0x74c] sm:$0xf]
        %v639 = vld [vmem:[%s308 + $0x750] sm:$0xff]
        %v640 = vld [vmem:[%s308 + $0x758] sm:$0xff]
        %v641 = vld [vmem:[%s308 + $0x760] sm:$0xff]
        %v642 = vld [vmem:[%s308 + $0x768] sm:$0xff]
        %v643 = vld [vmem:[%s308 + $0x770] sm:$0xf]
        %v644 = vld [vmem:[%s308 + $0x774] sm:$0xff]
        %v645 = vld [vmem:[%s308 + $0x77c] sm:$0xff]
        %v646 = vld [vmem:[%s308 + $0x784] sm:$0xff]
        %v647 = vld [vmem:[%s308 + $0x78c] sm:$0xff]
        %v648 = vld [vmem:[%s308 + $0x794] sm:$0xf]
        %v649 = vld [vmem:[%s308 + $0x798] sm:$0xff]
        %v650 = vld [vmem:[%s308 + $0x7a0] sm:$0xff]
        %v651 = vld [vmem:[%s308 + $0x7a8] sm:$0xff]
        %v652 = vld [vmem:[%s308 + $0x7b0] sm:$0xff]
        %v653 = vld [vmem:[%s308 + $0x7b8] sm:$0xf]
        %v654 = vld [vmem:[%s308 + $0x7bc] sm:$0xff]
        %v655 = vld [vmem:[%s308 + $0x7c4] sm:$0xff]
        %v656 = vld [vmem:[%s308 + $0x7cc] sm:$0xff]
        %v657 = vld [vmem:[%s308 + $0x7d4] sm:$0xff]
        %v658 = vld [vmem:[%s308 + $0x7dc] sm:$0xf]
        %v659 = vld [vmem:[%s308 + $0x7e0] sm:$0xff]
        %v660 = vld [vmem:[%s308 + $0x7e8] sm:$0xff]
        %v661 = vld [vmem:[%s308 + $0x7f0] sm:$0xff]
        %v662 = vld [vmem:[%s308 + $0x7f8] sm:$0xff]
        %v663 = vld [vmem:[%s308 + $0x800] sm:$0xf]
        %v664 = vld [vmem:[%s308 + $0x804] sm:$0xff]
        %v665 = vld [vmem:[%s308 + $0x80c] sm:$0xff]
        %v666 = vld [vmem:[%s308 + $0x814] sm:$0xff]
        %v667 = vld [vmem:[%s308 + $0x81c] sm:$0xff]
        %v668 = vld [vmem:[%s308 + $0x824] sm:$0xf]
        %v669 = vld [vmem:[%s308 + $0x828] sm:$0xff]
        %v670 = vld [vmem:[%s308 + $0x830] sm:$0xff]
        %v671 = vld [vmem:[%s308 + $0x838] sm:$0xff]
        %v672 = vld [vmem:[%s308 + $0x840] sm:$0xff]
        %v673 = vld [vmem:[%s308 + $0x848] sm:$0xf]
        %v674 = vld [vmem:[%s308 + $0x84c] sm:$0xff]
        %v675 = vld [vmem:[%s308 + $0x854] sm:$0xff]
        %v676 = vld [vmem:[%s308 + $0x85c] sm:$0xff]
        %v677 = vld [vmem:[%s308 + $0x864] sm:$0xff]
        %v678 = vld [vmem:[%s308 + $0x86c] sm:$0xf]
        %v679 = vld [vmem:[%s308 + $0x870] sm:$0xff]
        %v680 = vld [vmem:[%s308 + $0x878] sm:$0xff]
        %v681 = vld [vmem:[%s308 + $0x880] sm:$0xff]
        %v682 = vld [vmem:[%s308 + $0x888] sm:$0xff]
        %v683 = vld [vmem:[%s308 + $0x890] sm:$0xf]
        %v684 = vld [vmem:[%s308 + $0x894] sm:$0xff]
        %v685 = vld [vmem:[%s308 + $0x89c] sm:$0xff]
        %v686 = vld [vmem:[%s308 + $0x8a4] sm:$0xff]
        %v687 = vld [vmem:[%s308 + $0x8ac] sm:$0xff]
        %v688 = vld [vmem:[%s308 + $0x8b4] sm:$0xf]
        %v689 = vld [vmem:[%s308 + $0x8b8] sm:$0xff]
        %v690 = vld [vmem:[%s308 + $0x8c0] sm:$0xff]
        %v691 = vld [vmem:[%s308 + $0x8c8] sm:$0xff]
        %v692 = vld [vmem:[%s308 + $0x8d0] sm:$0xff]
        %v693 = vld [vmem:[%s308 + $0x8d8] sm:$0xf]
        %v694 = vld [vmem:[%s308 + $0x8dc] sm:$0xff]
        %v695 = vld [vmem:[%s308 + $0x8e4] sm:$0xff]
        %v696 = vld [vmem:[%s308 + $0x8ec] sm:$0xff]
        %v697 = vld [vmem:[%s308 + $0x8f4] sm:$0xff]
        %v698 = vld [vmem:[%s308 + $0x8fc] sm:$0xf]
        %v699 = vld [vmem:[%s308 + $0x900] sm:$0xff]
        %v700 = vld [vmem:[%s308 + $0x908] sm:$0xff]
        %v701 = vld [vmem:[%s308 + $0x910] sm:$0xff]
        %v702 = vld [vmem:[%s308 + $0x918] sm:$0xff]
        %v703 = vld [vmem:[%s308 + $0x920] sm:$0xf]
        %v704 = vld [vmem:[%s308 + $0x924] sm:$0xff]
        %v705 = vld [vmem:[%s308 + $0x92c] sm:$0xff]
        %v706 = vld [vmem:[%s308 + $0x934] sm:$0xff]
        %v707 = vld [vmem:[%s308 + $0x93c] sm:$0xff]
        %v708 = vld [vmem:[%s308 + $0x944] sm:$0xf]
        %v709 = vld [vmem:[%s308 + $0x948] sm:$0xff]
        %v710 = vld [vmem:[%s308 + $0x950] sm:$0xff]
        %v711 = vld [vmem:[%s308 + $0x958] sm:$0xff]
        %v712 = vld [vmem:[%s308 + $0x960] sm:$0xff]
        %v713 = vld [vmem:[%s308 + $0x968] sm:$0xf]
        %v714 = vld [vmem:[%s308 + $0x96c] sm:$0xff]
        %v715 = vld [vmem:[%s308 + $0x974] sm:$0xff]
        %v716 = vld [vmem:[%s308 + $0x97c] sm:$0xff]
        %v717 = vld [vmem:[%s308 + $0x984] sm:$0xff]
        %v718 = vld [vmem:[%s308 + $0x98c] sm:$0xf]
        %v719 = vld [vmem:[%s308 + $0x990] sm:$0xff]
        %v720 = vld [vmem:[%s308 + $0x998] sm:$0xff]
        %v721 = vld [vmem:[%s308 + $0x9a0] sm:$0xff]
        %v722 = vld [vmem:[%s308 + $0x9a8] sm:$0xff]
        %v723 = vld [vmem:[%s308 + $0x9b0] sm:$0xf]
        %v724 = vld [vmem:[%s308 + $0x9b4] sm:$0xff]
        %v725 = vld [vmem:[%s308 + $0x9bc] sm:$0xff]
        %v726 = vld [vmem:[%s308 + $0x9c4] sm:$0xff]
        %v727 = vld [vmem:[%s308 + $0x9cc] sm:$0xff]
        %v728 = vld [vmem:[%s308 + $0x9d4] sm:$0xf]
        %v729 = vld [vmem:[%s308 + $0x9d8] sm:$0xff]
        %v730 = vld [vmem:[%s308 + $0x9e0] sm:$0xff]
        %v731 = vld [vmem:[%s308 + $0x9e8] sm:$0xff]
        %v732 = vld [vmem:[%s308 + $0x9f0] sm:$0xff]
        %v733 = vld [vmem:[%s308 + $0x9f8] sm:$0xf]
        %v734 = vld [vmem:[%s308 + $0x9fc] sm:$0xff]
        %v735 = vld [vmem:[%s308 + $0xa04] sm:$0xff]
        %v736 = vld [vmem:[%s308 + $0xa0c] sm:$0xff]
        %v737 = vld [vmem:[%s308 + $0xa14] sm:$0xff]
        %v738 = vld [vmem:[%s308 + $0xa1c] sm:$0xf]
        %v739 = vld [vmem:[%s308 + $0xa20] sm:$0xff]
        %v740 = vld [vmem:[%s308 + $0xa28] sm:$0xff]
        %v741 = vld [vmem:[%s308 + $0xa30] sm:$0xff]
        %v742 = vld [vmem:[%s308 + $0xa38] sm:$0xff]
        %v743 = vld [vmem:[%s308 + $0xa40] sm:$0xf]
        %v744 = vld [vmem:[%s308 + $0xa44] sm:$0xff]
        %v745 = vld [vmem:[%s308 + $0xa4c] sm:$0xff]
        %v746 = vld [vmem:[%s308 + $0xa54] sm:$0xff]
        %v747 = vld [vmem:[%s308 + $0xa5c] sm:$0xff]
        %v748 = vld [vmem:[%s308 + $0xa64] sm:$0xf]
        %v749 = vld [vmem:[%s308 + $0xa68] sm:$0xff]
        %v750 = vld [vmem:[%s308 + $0xa70] sm:$0xff]
        %v751 = vld [vmem:[%s308 + $0xa78] sm:$0xff]
        %v752 = vld [vmem:[%s308 + $0xa80] sm:$0xff]
        %v753 = vld [vmem:[%s308 + $0xa88] sm:$0xf]
        %v754 = vld [vmem:[%s308 + $0xa8c] sm:$0xff]
        %v755 = vld [vmem:[%s308 + $0xa94] sm:$0xff]
        %v756 = vld [vmem:[%s308 + $0xa9c] sm:$0xff]
        %v757 = vld [vmem:[%s308 + $0xaa4] sm:$0xff]
        %v758 = vld [vmem:[%s308 + $0xaac] sm:$0xf]
        %v759 = vld [vmem:[%s308 + $0xab0] sm:$0xff]
        %v760 = vld [vmem:[%s308 + $0xab8] sm:$0xff]
        %v761 = vld [vmem:[%s308 + $0xac0] sm:$0xff]
        %v762 = vld [vmem:[%s308 + $0xac8] sm:$0xff]
        %v763 = vld [vmem:[%s308 + $0xad0] sm:$0xf]
        %v764 = vld [vmem:[%s308 + $0xad4] sm:$0xff]
        %v765 = vld [vmem:[%s308 + $0xadc] sm:$0xff]
        %v766 = vld [vmem:[%s308 + $0xae4] sm:$0xff]
        %v767 = vld [vmem:[%s308 + $0xaec] sm:$0xff]
        %v768 = vld [vmem:[%s308 + $0xaf4] sm:$0xf]
        %v769 = vld [vmem:[%s308 + $0xaf8] sm:$0xff]
        %v770 = vld [vmem:[%s308 + $0xb00] sm:$0xff]
        %v771 = vld [vmem:[%s308 + $0xb08] sm:$0xff]
        %v772 = vld [vmem:[%s308 + $0xb10] sm:$0xff]
        %v773 = vld [vmem:[%s308 + $0xb18] sm:$0xf]
        %v774 = vld [vmem:[%s308 + $0xb1c] sm:$0xff]
        %v775 = vld [vmem:[%s308 + $0xb24] sm:$0xff]
        %v776 = vld [vmem:[%s308 + $0xb2c] sm:$0xff]
        %v777 = vld [vmem:[%s308 + $0xb34] sm:$0xff]
        %v778 = vld [vmem:[%s308 + $0xb3c] sm:$0xf]
        %v779 = vld [vmem:[%s308 + $0xb40] sm:$0xff]
        %v780 = vld [vmem:[%s308 + $0xb48] sm:$0xff]
        %v781 = vld [vmem:[%s308 + $0xb50] sm:$0xff]
        %v782 = vld [vmem:[%s308 + $0xb58] sm:$0xff]
        %v783 = vld [vmem:[%s308 + $0xb60] sm:$0xf]
        %v784 = vld [vmem:[%s308 + $0xb64] sm:$0xff]
        %v785 = vld [vmem:[%s308 + $0xb6c] sm:$0xff]
        %v786 = vld [vmem:[%s308 + $0xb74] sm:$0xff]
        %v787 = vld [vmem:[%s308 + $0xb7c] sm:$0xff]
        %v788 = vld [vmem:[%s308 + $0xb84] sm:$0xf]
        %v789 = vld [vmem:[%s308 + $0xb88] sm:$0xff]
        %v790 = vld [vmem:[%s308 + $0xb90] sm:$0xff]
        %v791 = vld [vmem:[%s308 + $0xb98] sm:$0xff]
        %v792 = vld [vmem:[%s308 + $0xba0] sm:$0xff]
        %v793 = vld [vmem:[%s308 + $0xba8] sm:$0xf]
        %v794 = vld [vmem:[%s308 + $0xbac] sm:$0xff]
        %v795 = vld [vmem:[%s308 + $0xbb4] sm:$0xff]
        %v796 = vld [vmem:[%s308 + $0xbbc] sm:$0xff]
        %v797 = vld [vmem:[%s308 + $0xbc4] sm:$0xff]
        %v798 = vld [vmem:[%s308 + $0xbcc] sm:$0xf]
        %v799 = vld [vmem:[%s308 + $0xbd0] sm:$0xff]
        %v800 = vld [vmem:[%s308 + $0xbd8] sm:$0xff]
        %v801 = vld [vmem:[%s308 + $0xbe0] sm:$0xff]
        %v802 = vld [vmem:[%s308 + $0xbe8] sm:$0xff]
        %v803 = vld [vmem:[%s308 + $0xbf0] sm:$0xf]
        %v804 = vld [vmem:[%s308 + $0xbf4] sm:$0xff]
        %v805 = vld [vmem:[%s308 + $0xbfc] sm:$0xff]
        %v806 = vld [vmem:[%s308 + $0xc04] sm:$0xff]
        %v807 = vld [vmem:[%s308 + $0xc0c] sm:$0xff]
        %v808 = vld [vmem:[%s308 + $0xc14] sm:$0xf]
        %v809 = vld [vmem:[%s308 + $0xc18] sm:$0xff]
        %v810 = vld [vmem:[%s308 + $0xc20] sm:$0xff]
        %v811 = vld [vmem:[%s308 + $0xc28] sm:$0xff]
        %v812 = vld [vmem:[%s308 + $0xc30] sm:$0xff]
        %v813 = vld [vmem:[%s308 + $0xc38] sm:$0xf]
        %v814 = vld [vmem:[%s308 + $0xc3c] sm:$0xff]
        %v815 = vld [vmem:[%s308 + $0xc44] sm:$0xff]
        %v816 = vld [vmem:[%s308 + $0xc4c] sm:$0xff]
        %v817 = vld [vmem:[%s308 + $0xc54] sm:$0xff]
        %v818 = vld [vmem:[%s308 + $0xc5c] sm:$0xf]
        %v819 = vld [vmem:[%s308 + $0xc60] sm:$0xff]
        %v820 = vld [vmem:[%s308 + $0xc68] sm:$0xff]
        %v821 = vld [vmem:[%s308 + $0xc70] sm:$0xff]
        %v822 = vld [vmem:[%s308 + $0xc78] sm:$0xff]
        %v823 = vld [vmem:[%s308 + $0xc80] sm:$0xf]
        %v824 = vld [vmem:[%s308 + $0xc84] sm:$0xff]
        %v825 = vld [vmem:[%s308 + $0xc8c] sm:$0xff]
        %v826 = vld [vmem:[%s308 + $0xc94] sm:$0xff]
        %v827 = vld [vmem:[%s308 + $0xc9c] sm:$0xff]
        %v828 = vld [vmem:[%s308 + $0xca4] sm:$0xf]
        %v829 = vld [vmem:[%s308 + $0xca8] sm:$0xff]
        %v830 = vld [vmem:[%s308 + $0xcb0] sm:$0xff]
        %v831 = vld [vmem:[%s308 + $0xcb8] sm:$0xff]
        %v832 = vld [vmem:[%s308 + $0xcc0] sm:$0xff]
        %v833 = vld [vmem:[%s308 + $0xcc8] sm:$0xf]
        %v834 = vld [vmem:[%s308 + $0xccc] sm:$0xff]
        %v835 = vld [vmem:[%s308 + $0xcd4] sm:$0xff]
        %v836 = vld [vmem:[%s308 + $0xcdc] sm:$0xff]
        %v837 = vld [vmem:[%s308 + $0xce4] sm:$0xff]
        %v838 = vld [vmem:[%s308 + $0xcec] sm:$0xf]
        %v839 = vld [vmem:[%s308 + $0xcf0] sm:$0xff]
        %v840 = vld [vmem:[%s308 + $0xcf8] sm:$0xff]
        %v841 = vld [vmem:[%s308 + $0xd00] sm:$0xff]
        %v842 = vld [vmem:[%s308 + $0xd08] sm:$0xff]
        %v843 = vld [vmem:[%s308 + $0xd10] sm:$0xf]
        %v844 = vld [vmem:[%s308 + $0xd14] sm:$0xff]
        %v845 = vld [vmem:[%s308 + $0xd1c] sm:$0xff]
        %v846 = vld [vmem:[%s308 + $0xd24] sm:$0xff]
        %v847 = vld [vmem:[%s308 + $0xd2c] sm:$0xff]
        %v848 = vld [vmem:[%s308 + $0xd34] sm:$0xf]
        %v849 = vld [vmem:[%s308 + $0xd38] sm:$0xff]
        %v850 = vld [vmem:[%s308 + $0xd40] sm:$0xff]
        %v851 = vld [vmem:[%s308 + $0xd48] sm:$0xff]
        %v852 = vld [vmem:[%s308 + $0xd50] sm:$0xff]
        %v853 = vld [vmem:[%s308 + $0xd58] sm:$0xf]
        %v854 = vld [vmem:[%s308 + $0xd5c] sm:$0xff]
        %v855 = vld [vmem:[%s308 + $0xd64] sm:$0xff]
        %v856 = vld [vmem:[%s308 + $0xd6c] sm:$0xff]
        %v857 = vld [vmem:[%s308 + $0xd74] sm:$0xff]
        %v858 = vld [vmem:[%s308 + $0xd7c] sm:$0xf]
        %v859 = vld [vmem:[%s317] sm:$0xff]
        %v860 = vld [vmem:[%s317 + $0x8] sm:$0x1]
        %v863 = vlaneseq
        %v864 = vshrl.u32 %v863, 7
        %v865 = vsub.s32 0, %v864
        %v866 = vrot.slane %v859, %v865
        %v867 = vlaneseq
        %v868 = vshrl.u32 %v867, 7
        %v869 = vsub.s32 1, %v868
        %v870 = vrot.slane %v859, %v869
        %v871 = vlaneseq
        %v872 = vshrl.u32 %v871, 7
        %v873 = vsub.s32 2, %v872
        %v874 = vrot.slane %v859, %v873
        %v875 = vlaneseq
        %v876 = vshrl.u32 %v875, 7
        %v877 = vsub.s32 3, %v876
        %v878 = vrot.slane %v859, %v877
        %v879 = vlaneseq
        %v880 = vshrl.u32 %v879, 7
        %v881 = vsub.s32 4, %v880
        %v882 = vrot.slane %v859, %v881
        %v883 = vlaneseq
        %v884 = vshrl.u32 %v883, 7
        %v885 = vsub.s32 5, %v884
        %v886 = vrot.slane %v859, %v885
        %v887 = vlaneseq
        %v888 = vshrl.u32 %v887, 7
        %v889 = vsub.s32 6, %v888
        %v890 = vrot.slane %v859, %v889
        %v891 = vlaneseq
        %v892 = vshrl.u32 %v891, 7
        %v893 = vsub.s32 7, %v892
        %v894 = vrot.slane %v859, %v893
        %v895 = vlaneseq
        %v896 = vshrl.u32 %v895, 7
        %v897 = vsub.s32 0, %v896
        %v898 = vrot.slane %v860, %v897
        %v1388 = vunpack.c.l.b16 %v379
        %v1389 = vunpack.c.h.b16 %v379
        %v1390 = vunpack.c.l.b16 %v380
        %v1391 = vunpack.c.h.b16 %v380
        %v1392 = vunpack.c.l.b16 %v381
        %v1393 = vunpack.c.h.b16 %v381
        %v1394 = vunpack.c.l.b16 %v382
        %v1395 = vunpack.c.h.b16 %v382
        %v1396 = vunpack.c.l.b16 %v383
        %v1397 = vunpack.c.l.b16 %v384
        %v1398 = vunpack.c.h.b16 %v384
        %v1399 = vunpack.c.l.b16 %v385
        %v1400 = vunpack.c.h.b16 %v385
        %v1401 = vunpack.c.l.b16 %v386
        %v1402 = vunpack.c.h.b16 %v386
        %v1403 = vunpack.c.l.b16 %v387
        %v1404 = vunpack.c.h.b16 %v387
        %v1405 = vunpack.c.l.b16 %v388
        %v1406 = vunpack.c.l.b16 %v389
        %v1407 = vunpack.c.h.b16 %v389
        %v1408 = vunpack.c.l.b16 %v390
        %v1409 = vunpack.c.h.b16 %v390
        %v1410 = vunpack.c.l.b16 %v391
        %v1411 = vunpack.c.h.b16 %v391
        %v1412 = vunpack.c.l.b16 %v392
        %v1413 = vunpack.c.h.b16 %v392
        %v1414 = vunpack.c.l.b16 %v393
        %v1415 = vunpack.c.l.b16 %v394
        %v1416 = vunpack.c.h.b16 %v394
        %v1417 = vunpack.c.l.b16 %v395
        %v1418 = vunpack.c.h.b16 %v395
        %v1419 = vunpack.c.l.b16 %v396
        %v1420 = vunpack.c.h.b16 %v396
        %v1421 = vunpack.c.l.b16 %v397
        %v1422 = vunpack.c.h.b16 %v397
        %v1423 = vunpack.c.l.b16 %v398
        %v1424 = vunpack.c.l.b16 %v399
        %v1425 = vunpack.c.h.b16 %v399
        %v1426 = vunpack.c.l.b16 %v400
        %v1427 = vunpack.c.h.b16 %v400
        %v1428 = vunpack.c.l.b16 %v401
        %v1429 = vunpack.c.h.b16 %v401
        %v1430 = vunpack.c.l.b16 %v402
        %v1431 = vunpack.c.h.b16 %v402
        %v1432 = vunpack.c.l.b16 %v403
        %v1433 = vunpack.c.l.b16 %v404
        %v1434 = vunpack.c.h.b16 %v404
        %v1435 = vunpack.c.l.b16 %v405
        %v1436 = vunpack.c.h.b16 %v405
        %v1437 = vunpack.c.l.b16 %v406
        %v1438 = vunpack.c.h.b16 %v406
        %v1439 = vunpack.c.l.b16 %v407
        %v1440 = vunpack.c.h.b16 %v407
        %v1441 = vunpack.c.l.b16 %v408
        %v1442 = vunpack.c.l.b16 %v409
        %v1443 = vunpack.c.h.b16 %v409
        %v1444 = vunpack.c.l.b16 %v410
        %v1445 = vunpack.c.h.b16 %v410
        %v1446 = vunpack.c.l.b16 %v411
        %v1447 = vunpack.c.h.b16 %v411
        %v1448 = vunpack.c.l.b16 %v412
        %v1449 = vunpack.c.h.b16 %v412
        %v1450 = vunpack.c.l.b16 %v413
        %v1451 = vunpack.c.l.b16 %v414
        %v1452 = vunpack.c.h.b16 %v414
        %v1453 = vunpack.c.l.b16 %v415
        %v1454 = vunpack.c.h.b16 %v415
        %v1455 = vunpack.c.l.b16 %v416
        %v1456 = vunpack.c.h.b16 %v416
        %v1457 = vunpack.c.l.b16 %v417
        %v1458 = vunpack.c.h.b16 %v417
        %v1459 = vunpack.c.l.b16 %v418
        %v1460 = vunpack.c.l.b16 %v419
        %v1461 = vunpack.c.h.b16 %v419
        %v1462 = vunpack.c.l.b16 %v420
        %v1463 = vunpack.c.h.b16 %v420
        %v1464 = vunpack.c.l.b16 %v421
        %v1465 = vunpack.c.h.b16 %v421
        %v1466 = vunpack.c.l.b16 %v422
        %v1467 = vunpack.c.h.b16 %v422
        %v1468 = vunpack.c.l.b16 %v423
        %v1469 = vunpack.c.l.b16 %v424
        %v1470 = vunpack.c.h.b16 %v424
        %v1471 = vunpack.c.l.b16 %v425
        %v1472 = vunpack.c.h.b16 %v425
        %v1473 = vunpack.c.l.b16 %v426
        %v1474 = vunpack.c.h.b16 %v426
        %v1475 = vunpack.c.l.b16 %v427
        %v1476 = vunpack.c.h.b16 %v427
        %v1477 = vunpack.c.l.b16 %v428
        %v1478 = vunpack.c.l.b16 %v429
        %v1479 = vunpack.c.h.b16 %v429
        %v1480 = vunpack.c.l.b16 %v430
        %v1481 = vunpack.c.h.b16 %v430
        %v1482 = vunpack.c.l.b16 %v431
        %v1483 = vunpack.c.h.b16 %v431
        %v1484 = vunpack.c.l.b16 %v432
        %v1485 = vunpack.c.h.b16 %v432
        %v1486 = vunpack.c.l.b16 %v433
        %v1487 = vunpack.c.l.b16 %v434
        %v1488 = vunpack.c.h.b16 %v434
        %v1489 = vunpack.c.l.b16 %v435
        %v1490 = vunpack.c.h.b16 %v435
        %v1491 = vunpack.c.l.b16 %v436
        %v1492 = vunpack.c.h.b16 %v436
        %v1493 = vunpack.c.l.b16 %v437
        %v1494 = vunpack.c.h.b16 %v437
        %v1495 = vunpack.c.l.b16 %v438
        %v1496 = vunpack.c.l.b16 %v439
        %v1497 = vunpack.c.h.b16 %v439
        %v1498 = vunpack.c.l.b16 %v440
        %v1499 = vunpack.c.h.b16 %v440
        %v1500 = vunpack.c.l.b16 %v441
        %v1501 = vunpack.c.h.b16 %v441
        %v1502 = vunpack.c.l.b16 %v442
        %v1503 = vunpack.c.h.b16 %v442
        %v1504 = vunpack.c.l.b16 %v443
        %v1505 = vunpack.c.l.b16 %v444
        %v1506 = vunpack.c.h.b16 %v444
        %v1507 = vunpack.c.l.b16 %v445
        %v1508 = vunpack.c.h.b16 %v445
        %v1509 = vunpack.c.l.b16 %v446
        %v1510 = vunpack.c.h.b16 %v446
        %v1511 = vunpack.c.l.b16 %v447
        %v1512 = vunpack.c.h.b16 %v447
        %v1513 = vunpack.c.l.b16 %v448
        %v1514 = vunpack.c.l.b16 %v449
        %v1515 = vunpack.c.h.b16 %v449
        %v1516 = vunpack.c.l.b16 %v450
        %v1517 = vunpack.c.h.b16 %v450
        %v1518 = vunpack.c.l.b16 %v451
        %v1519 = vunpack.c.h.b16 %v451
        %v1520 = vunpack.c.l.b16 %v452
        %v1521 = vunpack.c.h.b16 %v452
        %v1522 = vunpack.c.l.b16 %v453
        %v1523 = vunpack.c.l.b16 %v454
        %v1524 = vunpack.c.h.b16 %v454
        %v1525 = vunpack.c.l.b16 %v455
        %v1526 = vunpack.c.h.b16 %v455
        %v1527 = vunpack.c.l.b16 %v456
        %v1528 = vunpack.c.h.b16 %v456
        %v1529 = vunpack.c.l.b16 %v457
        %v1530 = vunpack.c.h.b16 %v457
        %v1531 = vunpack.c.l.b16 %v458
        %v1532 = vunpack.c.l.b16 %v459
        %v1533 = vunpack.c.h.b16 %v459
        %v1534 = vunpack.c.l.b16 %v460
        %v1535 = vunpack.c.h.b16 %v460
        %v1536 = vunpack.c.l.b16 %v461
        %v1537 = vunpack.c.h.b16 %v461
        %v1538 = vunpack.c.l.b16 %v462
        %v1539 = vunpack.c.h.b16 %v462
        %v1540 = vunpack.c.l.b16 %v463
        %v1541 = vunpack.c.l.b16 %v464
        %v1542 = vunpack.c.h.b16 %v464
        %v1543 = vunpack.c.l.b16 %v465
        %v1544 = vunpack.c.h.b16 %v465
        %v1545 = vunpack.c.l.b16 %v466
        %v1546 = vunpack.c.h.b16 %v466
        %v1547 = vunpack.c.l.b16 %v467
        %v1548 = vunpack.c.h.b16 %v467
        %v1549 = vunpack.c.l.b16 %v468
        %v1550 = vunpack.c.l.b16 %v469
        %v1551 = vunpack.c.h.b16 %v469
        %v1552 = vunpack.c.l.b16 %v470
        %v1553 = vunpack.c.h.b16 %v470
        %v1554 = vunpack.c.l.b16 %v471
        %v1555 = vunpack.c.h.b16 %v471
        %v1556 = vunpack.c.l.b16 %v472
        %v1557 = vunpack.c.h.b16 %v472
        %v1558 = vunpack.c.l.b16 %v473
        %v1559 = vunpack.c.l.b16 %v474
        %v1560 = vunpack.c.h.b16 %v474
        %v1561 = vunpack.c.l.b16 %v475
        %v1562 = vunpack.c.h.b16 %v475
        %v1563 = vunpack.c.l.b16 %v476
        %v1564 = vunpack.c.h.b16 %v476
        %v1565 = vunpack.c.l.b16 %v477
        %v1566 = vunpack.c.h.b16 %v477
        %v1567 = vunpack.c.l.b16 %v478
        %v1568 = vunpack.c.l.b16 %v479
        %v1569 = vunpack.c.h.b16 %v479
        %v1570 = vunpack.c.l.b16 %v480
        %v1571 = vunpack.c.h.b16 %v480
        %v1572 = vunpack.c.l.b16 %v481
        %v1573 = vunpack.c.h.b16 %v481
        %v1574 = vunpack.c.l.b16 %v482
        %v1575 = vunpack.c.h.b16 %v482
        %v1576 = vunpack.c.l.b16 %v483
        %v1577 = vunpack.c.l.b16 %v484
        %v1578 = vunpack.c.h.b16 %v484
        %v1579 = vunpack.c.l.b16 %v485
        %v1580 = vunpack.c.h.b16 %v485
        %v1581 = vunpack.c.l.b16 %v486
        %v1582 = vunpack.c.h.b16 %v486
        %v1583 = vunpack.c.l.b16 %v487
        %v1584 = vunpack.c.h.b16 %v487
        %v1585 = vunpack.c.l.b16 %v488
        %v1586 = vunpack.c.l.b16 %v489
        %v1587 = vunpack.c.h.b16 %v489
        %v1588 = vunpack.c.l.b16 %v490
        %v1589 = vunpack.c.h.b16 %v490
        %v1590 = vunpack.c.l.b16 %v491
        %v1591 = vunpack.c.h.b16 %v491
        %v1592 = vunpack.c.l.b16 %v492
        %v1593 = vunpack.c.h.b16 %v492
        %v1594 = vunpack.c.l.b16 %v493
        %v1595 = vunpack.c.l.b16 %v494
        %v1596 = vunpack.c.h.b16 %v494
        %v1597 = vunpack.c.l.b16 %v495
        %v1598 = vunpack.c.h.b16 %v495
        %v1599 = vunpack.c.l.b16 %v496
        %v1600 = vunpack.c.h.b16 %v496
        %v1601 = vunpack.c.l.b16 %v497
        %v1602 = vunpack.c.h.b16 %v497
        %v1603 = vunpack.c.l.b16 %v498
        %v1604 = vunpack.c.l.b16 %v499
        %v1605 = vunpack.c.h.b16 %v499
        %v1606 = vunpack.c.l.b16 %v500
        %v1607 = vunpack.c.h.b16 %v500
        %v1608 = vunpack.c.l.b16 %v501
        %v1609 = vunpack.c.h.b16 %v501
        %v1610 = vunpack.c.l.b16 %v502
        %v1611 = vunpack.c.h.b16 %v502
        %v1612 = vunpack.c.l.b16 %v503
        %v1613 = vunpack.c.l.b16 %v504
        %v1614 = vunpack.c.h.b16 %v504
        %v1615 = vunpack.c.l.b16 %v505
        %v1616 = vunpack.c.h.b16 %v505
        %v1617 = vunpack.c.l.b16 %v506
        %v1618 = vunpack.c.h.b16 %v506
        %v1619 = vunpack.c.l.b16 %v507
        %v1620 = vunpack.c.h.b16 %v507
        %v1621 = vunpack.c.l.b16 %v508
        %v1622 = vunpack.c.l.b16 %v509
        %v1623 = vunpack.c.h.b16 %v509
        %v1624 = vunpack.c.l.b16 %v510
        %v1625 = vunpack.c.h.b16 %v510
        %v1626 = vunpack.c.l.b16 %v511
        %v1627 = vunpack.c.h.b16 %v511
        %v1628 = vunpack.c.l.b16 %v512
        %v1629 = vunpack.c.h.b16 %v512
        %v1630 = vunpack.c.l.b16 %v513
        %v1631 = vunpack.c.l.b16 %v514
        %v1632 = vunpack.c.h.b16 %v514
        %v1633 = vunpack.c.l.b16 %v515
        %v1634 = vunpack.c.h.b16 %v515
        %v1635 = vunpack.c.l.b16 %v516
        %v1636 = vunpack.c.h.b16 %v516
        %v1637 = vunpack.c.l.b16 %v517
        %v1638 = vunpack.c.h.b16 %v517
        %v1639 = vunpack.c.l.b16 %v518
        %v1640 = vunpack.c.l.b16 %v519
        %v1641 = vunpack.c.h.b16 %v519
        %v1642 = vunpack.c.l.b16 %v520
        %v1643 = vunpack.c.h.b16 %v520
        %v1644 = vunpack.c.l.b16 %v521
        %v1645 = vunpack.c.h.b16 %v521
        %v1646 = vunpack.c.l.b16 %v522
        %v1647 = vunpack.c.h.b16 %v522
        %v1648 = vunpack.c.l.b16 %v523
        %v1649 = vunpack.c.l.b16 %v524
        %v1650 = vunpack.c.h.b16 %v524
        %v1651 = vunpack.c.l.b16 %v525
        %v1652 = vunpack.c.h.b16 %v525
        %v1653 = vunpack.c.l.b16 %v526
        %v1654 = vunpack.c.h.b16 %v526
        %v1655 = vunpack.c.l.b16 %v527
        %v1656 = vunpack.c.h.b16 %v527
        %v1657 = vunpack.c.l.b16 %v528
        %v1658 = vunpack.c.l.b16 %v529
        %v1659 = vunpack.c.h.b16 %v529
        %v1660 = vunpack.c.l.b16 %v530
        %v1661 = vunpack.c.h.b16 %v530
        %v1662 = vunpack.c.l.b16 %v531
        %v1663 = vunpack.c.h.b16 %v531
        %v1664 = vunpack.c.l.b16 %v532
        %v1665 = vunpack.c.h.b16 %v532
        %v1666 = vunpack.c.l.b16 %v533
        %v1667 = vunpack.c.l.b16 %v534
        %v1668 = vunpack.c.h.b16 %v534
        %v1669 = vunpack.c.l.b16 %v535
        %v1670 = vunpack.c.h.b16 %v535
        %v1671 = vunpack.c.l.b16 %v536
        %v1672 = vunpack.c.h.b16 %v536
        %v1673 = vunpack.c.l.b16 %v537
        %v1674 = vunpack.c.h.b16 %v537
        %v1675 = vunpack.c.l.b16 %v538
        %v1676 = vunpack.c.l.b16 %v539
        %v1677 = vunpack.c.h.b16 %v539
        %v1678 = vunpack.c.l.b16 %v540
        %v1679 = vunpack.c.h.b16 %v540
        %v1680 = vunpack.c.l.b16 %v541
        %v1681 = vunpack.c.h.b16 %v541
        %v1682 = vunpack.c.l.b16 %v542
        %v1683 = vunpack.c.h.b16 %v542
        %v1684 = vunpack.c.l.b16 %v543
        %v1685 = vunpack.c.l.b16 %v544
        %v1686 = vunpack.c.h.b16 %v544
        %v1687 = vunpack.c.l.b16 %v545
        %v1688 = vunpack.c.h.b16 %v545
        %v1689 = vunpack.c.l.b16 %v546
        %v1690 = vunpack.c.h.b16 %v546
        %v1691 = vunpack.c.l.b16 %v547
        %v1692 = vunpack.c.h.b16 %v547
        %v1693 = vunpack.c.l.b16 %v548
        %v1694 = vunpack.c.l.b16 %v549
        %v1695 = vunpack.c.h.b16 %v549
        %v1696 = vunpack.c.l.b16 %v550
        %v1697 = vunpack.c.h.b16 %v550
        %v1698 = vunpack.c.l.b16 %v551
        %v1699 = vunpack.c.h.b16 %v551
        %v1700 = vunpack.c.l.b16 %v552
        %v1701 = vunpack.c.h.b16 %v552
        %v1702 = vunpack.c.l.b16 %v553
        %v1703 = vunpack.c.l.b16 %v554
        %v1704 = vunpack.c.h.b16 %v554
        %v1705 = vunpack.c.l.b16 %v555
        %v1706 = vunpack.c.h.b16 %v555
        %v1707 = vunpack.c.l.b16 %v556
        %v1708 = vunpack.c.h.b16 %v556
        %v1709 = vunpack.c.l.b16 %v557
        %v1710 = vunpack.c.h.b16 %v557
        %v1711 = vunpack.c.l.b16 %v558
        %v1712 = vunpack.c.l.b16 %v559
        %v1713 = vunpack.c.h.b16 %v559
        %v1714 = vunpack.c.l.b16 %v560
        %v1715 = vunpack.c.h.b16 %v560
        %v1716 = vunpack.c.l.b16 %v561
        %v1717 = vunpack.c.h.b16 %v561
        %v1718 = vunpack.c.l.b16 %v562
        %v1719 = vunpack.c.h.b16 %v562
        %v1720 = vunpack.c.l.b16 %v563
        %v1721 = vunpack.c.l.b16 %v564
        %v1722 = vunpack.c.h.b16 %v564
        %v1723 = vunpack.c.l.b16 %v565
        %v1724 = vunpack.c.h.b16 %v565
        %v1725 = vunpack.c.l.b16 %v566
        %v1726 = vunpack.c.h.b16 %v566
        %v1727 = vunpack.c.l.b16 %v567
        %v1728 = vunpack.c.h.b16 %v567
        %v1729 = vunpack.c.l.b16 %v568
        %v1730 = vunpack.c.l.b16 %v569
        %v1731 = vunpack.c.h.b16 %v569
        %v1732 = vunpack.c.l.b16 %v570
        %v1733 = vunpack.c.h.b16 %v570
        %v1734 = vunpack.c.l.b16 %v571
        %v1735 = vunpack.c.h.b16 %v571
        %v1736 = vunpack.c.l.b16 %v572
        %v1737 = vunpack.c.h.b16 %v572
        %v1738 = vunpack.c.l.b16 %v573
        %v1739 = vunpack.c.l.b16 %v574
        %v1740 = vunpack.c.h.b16 %v574
        %v1741 = vunpack.c.l.b16 %v575
        %v1742 = vunpack.c.h.b16 %v575
        %v1743 = vunpack.c.l.b16 %v576
        %v1744 = vunpack.c.h.b16 %v576
        %v1745 = vunpack.c.l.b16 %v577
        %v1746 = vunpack.c.h.b16 %v577
        %v1747 = vunpack.c.l.b16 %v578
        %v1748 = vunpack.c.l.b16 %v579
        %v1749 = vunpack.c.h.b16 %v579
        %v1750 = vunpack.c.l.b16 %v580
        %v1751 = vunpack.c.h.b16 %v580
        %v1752 = vunpack.c.l.b16 %v581
        %v1753 = vunpack.c.h.b16 %v581
        %v1754 = vunpack.c.l.b16 %v582
        %v1755 = vunpack.c.h.b16 %v582
        %v1756 = vunpack.c.l.b16 %v583
        %v1757 = vunpack.c.l.b16 %v584
        %v1758 = vunpack.c.h.b16 %v584
        %v1759 = vunpack.c.l.b16 %v585
        %v1760 = vunpack.c.h.b16 %v585
        %v1761 = vunpack.c.l.b16 %v586
        %v1762 = vunpack.c.h.b16 %v586
        %v1763 = vunpack.c.l.b16 %v587
        %v1764 = vunpack.c.h.b16 %v587
        %v1765 = vunpack.c.l.b16 %v588
        %v1766 = vunpack.c.l.b16 %v589
        %v1767 = vunpack.c.h.b16 %v589
        %v1768 = vunpack.c.l.b16 %v590
        %v1769 = vunpack.c.h.b16 %v590
        %v1770 = vunpack.c.l.b16 %v591
        %v1771 = vunpack.c.h.b16 %v591
        %v1772 = vunpack.c.l.b16 %v592
        %v1773 = vunpack.c.h.b16 %v592
        %v1774 = vunpack.c.l.b16 %v593
        %v1775 = vunpack.c.l.b16 %v594
        %v1776 = vunpack.c.h.b16 %v594
        %v1777 = vunpack.c.l.b16 %v595
        %v1778 = vunpack.c.h.b16 %v595
        %v1779 = vunpack.c.l.b16 %v596
        %v1780 = vunpack.c.h.b16 %v596
        %v1781 = vunpack.c.l.b16 %v597
        %v1782 = vunpack.c.h.b16 %v597
        %v1783 = vunpack.c.l.b16 %v598
        %v1784 = vunpack.c.l.b16 %v599
        %v1785 = vunpack.c.h.b16 %v599
        %v1786 = vunpack.c.l.b16 %v600
        %v1787 = vunpack.c.h.b16 %v600
        %v1788 = vunpack.c.l.b16 %v601
        %v1789 = vunpack.c.h.b16 %v601
        %v1790 = vunpack.c.l.b16 %v602
        %v1791 = vunpack.c.h.b16 %v602
        %v1792 = vunpack.c.l.b16 %v603
        %v1793 = vunpack.c.l.b16 %v604
        %v1794 = vunpack.c.h.b16 %v604
        %v1795 = vunpack.c.l.b16 %v605
        %v1796 = vunpack.c.h.b16 %v605
        %v1797 = vunpack.c.l.b16 %v606
        %v1798 = vunpack.c.h.b16 %v606
        %v1799 = vunpack.c.l.b16 %v607
        %v1800 = vunpack.c.h.b16 %v607
        %v1801 = vunpack.c.l.b16 %v608
        %v1802 = vunpack.c.l.b16 %v609
        %v1803 = vunpack.c.h.b16 %v609
        %v1804 = vunpack.c.l.b16 %v610
        %v1805 = vunpack.c.h.b16 %v610
        %v1806 = vunpack.c.l.b16 %v611
        %v1807 = vunpack.c.h.b16 %v611
        %v1808 = vunpack.c.l.b16 %v612
        %v1809 = vunpack.c.h.b16 %v612
        %v1810 = vunpack.c.l.b16 %v613
        %v1811 = vunpack.c.l.b16 %v614
        %v1812 = vunpack.c.h.b16 %v614
        %v1813 = vunpack.c.l.b16 %v615
        %v1814 = vunpack.c.h.b16 %v615
        %v1815 = vunpack.c.l.b16 %v616
        %v1816 = vunpack.c.h.b16 %v616
        %v1817 = vunpack.c.l.b16 %v617
        %v1818 = vunpack.c.h.b16 %v617
        %v1819 = vunpack.c.l.b16 %v618
        %v1820 = vunpack.c.l.b16 %v619
        %v1821 = vunpack.c.h.b16 %v619
        %v1822 = vunpack.c.l.b16 %v620
        %v1823 = vunpack.c.h.b16 %v620
        %v1824 = vunpack.c.l.b16 %v621
        %v1825 = vunpack.c.h.b16 %v621
        %v1826 = vunpack.c.l.b16 %v622
        %v1827 = vunpack.c.h.b16 %v622
        %v1828 = vunpack.c.l.b16 %v623
        %v1829 = vunpack.c.l.b16 %v624
        %v1830 = vunpack.c.h.b16 %v624
        %v1831 = vunpack.c.l.b16 %v625
        %v1832 = vunpack.c.h.b16 %v625
        %v1833 = vunpack.c.l.b16 %v626
        %v1834 = vunpack.c.h.b16 %v626
        %v1835 = vunpack.c.l.b16 %v627
        %v1836 = vunpack.c.h.b16 %v627
        %v1837 = vunpack.c.l.b16 %v628
        %v1838 = vunpack.c.l.b16 %v629
        %v1839 = vunpack.c.h.b16 %v629
        %v1840 = vunpack.c.l.b16 %v630
        %v1841 = vunpack.c.h.b16 %v630
        %v1842 = vunpack.c.l.b16 %v631
        %v1843 = vunpack.c.h.b16 %v631
        %v1844 = vunpack.c.l.b16 %v632
        %v1845 = vunpack.c.h.b16 %v632
        %v1846 = vunpack.c.l.b16 %v633
        %v1847 = vunpack.c.l.b16 %v634
        %v1848 = vunpack.c.h.b16 %v634
        %v1849 = vunpack.c.l.b16 %v635
        %v1850 = vunpack.c.h.b16 %v635
        %v1851 = vunpack.c.l.b16 %v636
        %v1852 = vunpack.c.h.b16 %v636
        %v1853 = vunpack.c.l.b16 %v637
        %v1854 = vunpack.c.h.b16 %v637
        %v1855 = vunpack.c.l.b16 %v638
        %v1856 = vunpack.c.l.b16 %v639
        %v1857 = vunpack.c.h.b16 %v639
        %v1858 = vunpack.c.l.b16 %v640
        %v1859 = vunpack.c.h.b16 %v640
        %v1860 = vunpack.c.l.b16 %v641
        %v1861 = vunpack.c.h.b16 %v641
        %v1862 = vunpack.c.l.b16 %v642
        %v1863 = vunpack.c.h.b16 %v642
        %v1864 = vunpack.c.l.b16 %v643
        %v1865 = vunpack.c.l.b16 %v644
        %v1866 = vunpack.c.h.b16 %v644
        %v1867 = vunpack.c.l.b16 %v645
        %v1868 = vunpack.c.h.b16 %v645
        %v1869 = vunpack.c.l.b16 %v646
        %v1870 = vunpack.c.h.b16 %v646
        %v1871 = vunpack.c.l.b16 %v647
        %v1872 = vunpack.c.h.b16 %v647
        %v1873 = vunpack.c.l.b16 %v648
        %v1874 = vunpack.c.l.b16 %v649
        %v1875 = vunpack.c.h.b16 %v649
        %v1876 = vunpack.c.l.b16 %v650
        %v1877 = vunpack.c.h.b16 %v650
        %v1878 = vunpack.c.l.b16 %v651
        %v1879 = vunpack.c.h.b16 %v651
        %v1880 = vunpack.c.l.b16 %v652
        %v1881 = vunpack.c.h.b16 %v652
        %v1882 = vunpack.c.l.b16 %v653
        %v1883 = vunpack.c.l.b16 %v654
        %v1884 = vunpack.c.h.b16 %v654
        %v1885 = vunpack.c.l.b16 %v655
        %v1886 = vunpack.c.h.b16 %v655
        %v1887 = vunpack.c.l.b16 %v656
        %v1888 = vunpack.c.h.b16 %v656
        %v1889 = vunpack.c.l.b16 %v657
        %v1890 = vunpack.c.h.b16 %v657
        %v1891 = vunpack.c.l.b16 %v658
        %v1892 = vunpack.c.l.b16 %v659
        %v1893 = vunpack.c.h.b16 %v659
        %v1894 = vunpack.c.l.b16 %v660
        %v1895 = vunpack.c.h.b16 %v660
        %v1896 = vunpack.c.l.b16 %v661
        %v1897 = vunpack.c.h.b16 %v661
        %v1898 = vunpack.c.l.b16 %v662
        %v1899 = vunpack.c.h.b16 %v662
        %v1900 = vunpack.c.l.b16 %v663
        %v1901 = vunpack.c.l.b16 %v664
        %v1902 = vunpack.c.h.b16 %v664
        %v1903 = vunpack.c.l.b16 %v665
        %v1904 = vunpack.c.h.b16 %v665
        %v1905 = vunpack.c.l.b16 %v666
        %v1906 = vunpack.c.h.b16 %v666
        %v1907 = vunpack.c.l.b16 %v667
        %v1908 = vunpack.c.h.b16 %v667
        %v1909 = vunpack.c.l.b16 %v668
        %v1910 = vunpack.c.l.b16 %v669
        %v1911 = vunpack.c.h.b16 %v669
        %v1912 = vunpack.c.l.b16 %v670
        %v1913 = vunpack.c.h.b16 %v670
        %v1914 = vunpack.c.l.b16 %v671
        %v1915 = vunpack.c.h.b16 %v671
        %v1916 = vunpack.c.l.b16 %v672
        %v1917 = vunpack.c.h.b16 %v672
        %v1918 = vunpack.c.l.b16 %v673
        %v1919 = vunpack.c.l.b16 %v674
        %v1920 = vunpack.c.h.b16 %v674
        %v1921 = vunpack.c.l.b16 %v675
        %v1922 = vunpack.c.h.b16 %v675
        %v1923 = vunpack.c.l.b16 %v676
        %v1924 = vunpack.c.h.b16 %v676
        %v1925 = vunpack.c.l.b16 %v677
        %v1926 = vunpack.c.h.b16 %v677
        %v1927 = vunpack.c.l.b16 %v678
        %v1928 = vunpack.c.l.b16 %v679
        %v1929 = vunpack.c.h.b16 %v679
        %v1930 = vunpack.c.l.b16 %v680
        %v1931 = vunpack.c.h.b16 %v680
        %v1932 = vunpack.c.l.b16 %v681
        %v1933 = vunpack.c.h.b16 %v681
        %v1934 = vunpack.c.l.b16 %v682
        %v1935 = vunpack.c.h.b16 %v682
        %v1936 = vunpack.c.l.b16 %v683
        %v1937 = vunpack.c.l.b16 %v684
        %v1938 = vunpack.c.h.b16 %v684
        %v1939 = vunpack.c.l.b16 %v685
        %v1940 = vunpack.c.h.b16 %v685
        %v1941 = vunpack.c.l.b16 %v686
        %v1942 = vunpack.c.h.b16 %v686
        %v1943 = vunpack.c.l.b16 %v687
        %v1944 = vunpack.c.h.b16 %v687
        %v1945 = vunpack.c.l.b16 %v688
        %v1946 = vunpack.c.l.b16 %v689
        %v1947 = vunpack.c.h.b16 %v689
        %v1948 = vunpack.c.l.b16 %v690
        %v1949 = vunpack.c.h.b16 %v690
        %v1950 = vunpack.c.l.b16 %v691
        %v1951 = vunpack.c.h.b16 %v691
        %v1952 = vunpack.c.l.b16 %v692
        %v1953 = vunpack.c.h.b16 %v692
        %v1954 = vunpack.c.l.b16 %v693
        %v1955 = vunpack.c.l.b16 %v694
        %v1956 = vunpack.c.h.b16 %v694
        %v1957 = vunpack.c.l.b16 %v695
        %v1958 = vunpack.c.h.b16 %v695
        %v1959 = vunpack.c.l.b16 %v696
        %v1960 = vunpack.c.h.b16 %v696
        %v1961 = vunpack.c.l.b16 %v697
        %v1962 = vunpack.c.h.b16 %v697
        %v1963 = vunpack.c.l.b16 %v698
        %v1964 = vunpack.c.l.b16 %v699
        %v1965 = vunpack.c.h.b16 %v699
        %v1966 = vunpack.c.l.b16 %v700
        %v1967 = vunpack.c.h.b16 %v700
        %v1968 = vunpack.c.l.b16 %v701
        %v1969 = vunpack.c.h.b16 %v701
        %v1970 = vunpack.c.l.b16 %v702
        %v1971 = vunpack.c.h.b16 %v702
        %v1972 = vunpack.c.l.b16 %v703
        %v1973 = vunpack.c.l.b16 %v704
        %v1974 = vunpack.c.h.b16 %v704
        %v1975 = vunpack.c.l.b16 %v705
        %v1976 = vunpack.c.h.b16 %v705
        %v1977 = vunpack.c.l.b16 %v706
        %v1978 = vunpack.c.h.b16 %v706
        %v1979 = vunpack.c.l.b16 %v707
        %v1980 = vunpack.c.h.b16 %v707
        %v1981 = vunpack.c.l.b16 %v708
        %v1982 = vunpack.c.l.b16 %v709
        %v1983 = vunpack.c.h.b16 %v709
        %v1984 = vunpack.c.l.b16 %v710
        %v1985 = vunpack.c.h.b16 %v710
        %v1986 = vunpack.c.l.b16 %v711
        %v1987 = vunpack.c.h.b16 %v711
        %v1988 = vunpack.c.l.b16 %v712
        %v1989 = vunpack.c.h.b16 %v712
        %v1990 = vunpack.c.l.b16 %v713
        %v1991 = vunpack.c.l.b16 %v714
        %v1992 = vunpack.c.h.b16 %v714
        %v1993 = vunpack.c.l.b16 %v715
        %v1994 = vunpack.c.h.b16 %v715
        %v1995 = vunpack.c.l.b16 %v716
        %v1996 = vunpack.c.h.b16 %v716
        %v1997 = vunpack.c.l.b16 %v717
        %v1998 = vunpack.c.h.b16 %v717
        %v1999 = vunpack.c.l.b16 %v718
        %v2000 = vunpack.c.l.b16 %v719
        %v2001 = vunpack.c.h.b16 %v719
        %v2002 = vunpack.c.l.b16 %v720
        %v2003 = vunpack.c.h.b16 %v720
        %v2004 = vunpack.c.l.b16 %v721
        %v2005 = vunpack.c.h.b16 %v721
        %v2006 = vunpack.c.l.b16 %v722
        %v2007 = vunpack.c.h.b16 %v722
        %v2008 = vunpack.c.l.b16 %v723
        %v2009 = vunpack.c.l.b16 %v724
        %v2010 = vunpack.c.h.b16 %v724
        %v2011 = vunpack.c.l.b16 %v725
        %v2012 = vunpack.c.h.b16 %v725
        %v2013 = vunpack.c.l.b16 %v726
        %v2014 = vunpack.c.h.b16 %v726
        %v2015 = vunpack.c.l.b16 %v727
        %v2016 = vunpack.c.h.b16 %v727
        %v2017 = vunpack.c.l.b16 %v728
        %v2018 = vunpack.c.l.b16 %v729
        %v2019 = vunpack.c.h.b16 %v729
        %v2020 = vunpack.c.l.b16 %v730
        %v2021 = vunpack.c.h.b16 %v730
        %v2022 = vunpack.c.l.b16 %v731
        %v2023 = vunpack.c.h.b16 %v731
        %v2024 = vunpack.c.l.b16 %v732
        %v2025 = vunpack.c.h.b16 %v732
        %v2026 = vunpack.c.l.b16 %v733
        %v2027 = vunpack.c.l.b16 %v734
        %v2028 = vunpack.c.h.b16 %v734
        %v2029 = vunpack.c.l.b16 %v735
        %v2030 = vunpack.c.h.b16 %v735
        %v2031 = vunpack.c.l.b16 %v736
        %v2032 = vunpack.c.h.b16 %v736
        %v2033 = vunpack.c.l.b16 %v737
        %v2034 = vunpack.c.h.b16 %v737
        %v2035 = vunpack.c.l.b16 %v738
        %v2036 = vunpack.c.l.b16 %v739
        %v2037 = vunpack.c.h.b16 %v739
        %v2038 = vunpack.c.l.b16 %v740
        %v2039 = vunpack.c.h.b16 %v740
        %v2040 = vunpack.c.l.b16 %v741
        %v2041 = vunpack.c.h.b16 %v741
        %v2042 = vunpack.c.l.b16 %v742
        %v2043 = vunpack.c.h.b16 %v742
        %v2044 = vunpack.c.l.b16 %v743
        %v2045 = vunpack.c.l.b16 %v744
        %v2046 = vunpack.c.h.b16 %v744
        %v2047 = vunpack.c.l.b16 %v745
        %v2048 = vunpack.c.h.b16 %v745
        %v2049 = vunpack.c.l.b16 %v746
        %v2050 = vunpack.c.h.b16 %v746
        %v2051 = vunpack.c.l.b16 %v747
        %v2052 = vunpack.c.h.b16 %v747
        %v2053 = vunpack.c.l.b16 %v748
        %v2054 = vunpack.c.l.b16 %v749
        %v2055 = vunpack.c.h.b16 %v749
        %v2056 = vunpack.c.l.b16 %v750
        %v2057 = vunpack.c.h.b16 %v750
        %v2058 = vunpack.c.l.b16 %v751
        %v2059 = vunpack.c.h.b16 %v751
        %v2060 = vunpack.c.l.b16 %v752
        %v2061 = vunpack.c.h.b16 %v752
        %v2062 = vunpack.c.l.b16 %v753
        %v2063 = vunpack.c.l.b16 %v754
        %v2064 = vunpack.c.h.b16 %v754
        %v2065 = vunpack.c.l.b16 %v755
        %v2066 = vunpack.c.h.b16 %v755
        %v2067 = vunpack.c.l.b16 %v756
        %v2068 = vunpack.c.h.b16 %v756
        %v2069 = vunpack.c.l.b16 %v757
        %v2070 = vunpack.c.h.b16 %v757
        %v2071 = vunpack.c.l.b16 %v758
        %v2072 = vunpack.c.l.b16 %v759
        %v2073 = vunpack.c.h.b16 %v759
        %v2074 = vunpack.c.l.b16 %v760
        %v2075 = vunpack.c.h.b16 %v760
        %v2076 = vunpack.c.l.b16 %v761
        %v2077 = vunpack.c.h.b16 %v761
        %v2078 = vunpack.c.l.b16 %v762
        %v2079 = vunpack.c.h.b16 %v762
        %v2080 = vunpack.c.l.b16 %v763
        %v2081 = vunpack.c.l.b16 %v764
        %v2082 = vunpack.c.h.b16 %v764
        %v2083 = vunpack.c.l.b16 %v765
        %v2084 = vunpack.c.h.b16 %v765
        %v2085 = vunpack.c.l.b16 %v766
        %v2086 = vunpack.c.h.b16 %v766
        %v2087 = vunpack.c.l.b16 %v767
        %v2088 = vunpack.c.h.b16 %v767
        %v2089 = vunpack.c.l.b16 %v768
        %v2090 = vunpack.c.l.b16 %v769
        %v2091 = vunpack.c.h.b16 %v769
        %v2092 = vunpack.c.l.b16 %v770
        %v2093 = vunpack.c.h.b16 %v770
        %v2094 = vunpack.c.l.b16 %v771
        %v2095 = vunpack.c.h.b16 %v771
        %v2096 = vunpack.c.l.b16 %v772
        %v2097 = vunpack.c.h.b16 %v772
        %v2098 = vunpack.c.l.b16 %v773
        %v2099 = vunpack.c.l.b16 %v774
        %v2100 = vunpack.c.h.b16 %v774
        %v2101 = vunpack.c.l.b16 %v775
        %v2102 = vunpack.c.h.b16 %v775
        %v2103 = vunpack.c.l.b16 %v776
        %v2104 = vunpack.c.h.b16 %v776
        %v2105 = vunpack.c.l.b16 %v777
        %v2106 = vunpack.c.h.b16 %v777
        %v2107 = vunpack.c.l.b16 %v778
        %v2108 = vunpack.c.l.b16 %v779
        %v2109 = vunpack.c.h.b16 %v779
        %v2110 = vunpack.c.l.b16 %v780
        %v2111 = vunpack.c.h.b16 %v780
        %v2112 = vunpack.c.l.b16 %v781
        %v2113 = vunpack.c.h.b16 %v781
        %v2114 = vunpack.c.l.b16 %v782
        %v2115 = vunpack.c.h.b16 %v782
        %v2116 = vunpack.c.l.b16 %v783
        %v2117 = vunpack.c.l.b16 %v784
        %v2118 = vunpack.c.h.b16 %v784
        %v2119 = vunpack.c.l.b16 %v785
        %v2120 = vunpack.c.h.b16 %v785
        %v2121 = vunpack.c.l.b16 %v786
        %v2122 = vunpack.c.h.b16 %v786
        %v2123 = vunpack.c.l.b16 %v787
        %v2124 = vunpack.c.h.b16 %v787
        %v2125 = vunpack.c.l.b16 %v788
        %v2126 = vunpack.c.l.b16 %v789
        %v2127 = vunpack.c.h.b16 %v789
        %v2128 = vunpack.c.l.b16 %v790
        %v2129 = vunpack.c.h.b16 %v790
        %v2130 = vunpack.c.l.b16 %v791
        %v2131 = vunpack.c.h.b16 %v791
        %v2132 = vunpack.c.l.b16 %v792
        %v2133 = vunpack.c.h.b16 %v792
        %v2134 = vunpack.c.l.b16 %v793
        %v2135 = vunpack.c.l.b16 %v794
        %v2136 = vunpack.c.h.b16 %v794
        %v2137 = vunpack.c.l.b16 %v795
        %v2138 = vunpack.c.h.b16 %v795
        %v2139 = vunpack.c.l.b16 %v796
        %v2140 = vunpack.c.h.b16 %v796
        %v2141 = vunpack.c.l.b16 %v797
        %v2142 = vunpack.c.h.b16 %v797
        %v2143 = vunpack.c.l.b16 %v798
        %v2144 = vunpack.c.l.b16 %v799
        %v2145 = vunpack.c.h.b16 %v799
        %v2146 = vunpack.c.l.b16 %v800
        %v2147 = vunpack.c.h.b16 %v800
        %v2148 = vunpack.c.l.b16 %v801
        %v2149 = vunpack.c.h.b16 %v801
        %v2150 = vunpack.c.l.b16 %v802
        %v2151 = vunpack.c.h.b16 %v802
        %v2152 = vunpack.c.l.b16 %v803
        %v2153 = vunpack.c.l.b16 %v804
        %v2154 = vunpack.c.h.b16 %v804
        %v2155 = vunpack.c.l.b16 %v805
        %v2156 = vunpack.c.h.b16 %v805
        %v2157 = vunpack.c.l.b16 %v806
        %v2158 = vunpack.c.h.b16 %v806
        %v2159 = vunpack.c.l.b16 %v807
        %v2160 = vunpack.c.h.b16 %v807
        %v2161 = vunpack.c.l.b16 %v808
        %v2162 = vunpack.c.l.b16 %v809
        %v2163 = vunpack.c.h.b16 %v809
        %v2164 = vunpack.c.l.b16 %v810
        %v2165 = vunpack.c.h.b16 %v810
        %v2166 = vunpack.c.l.b16 %v811
        %v2167 = vunpack.c.h.b16 %v811
        %v2168 = vunpack.c.l.b16 %v812
        %v2169 = vunpack.c.h.b16 %v812
        %v2170 = vunpack.c.l.b16 %v813
        %v2171 = vunpack.c.l.b16 %v814
        %v2172 = vunpack.c.h.b16 %v814
        %v2173 = vunpack.c.l.b16 %v815
        %v2174 = vunpack.c.h.b16 %v815
        %v2175 = vunpack.c.l.b16 %v816
        %v2176 = vunpack.c.h.b16 %v816
        %v2177 = vunpack.c.l.b16 %v817
        %v2178 = vunpack.c.h.b16 %v817
        %v2179 = vunpack.c.l.b16 %v818
        %v2180 = vunpack.c.l.b16 %v819
        %v2181 = vunpack.c.h.b16 %v819
        %v2182 = vunpack.c.l.b16 %v820
        %v2183 = vunpack.c.h.b16 %v820
        %v2184 = vunpack.c.l.b16 %v821
        %v2185 = vunpack.c.h.b16 %v821
        %v2186 = vunpack.c.l.b16 %v822
        %v2187 = vunpack.c.h.b16 %v822
        %v2188 = vunpack.c.l.b16 %v823
        %v2189 = vunpack.c.l.b16 %v824
        %v2190 = vunpack.c.h.b16 %v824
        %v2191 = vunpack.c.l.b16 %v825
        %v2192 = vunpack.c.h.b16 %v825
        %v2193 = vunpack.c.l.b16 %v826
        %v2194 = vunpack.c.h.b16 %v826
        %v2195 = vunpack.c.l.b16 %v827
        %v2196 = vunpack.c.h.b16 %v827
        %v2197 = vunpack.c.l.b16 %v828
        %v2198 = vunpack.c.l.b16 %v829
        %v2199 = vunpack.c.h.b16 %v829
        %v2200 = vunpack.c.l.b16 %v830
        %v2201 = vunpack.c.h.b16 %v830
        %v2202 = vunpack.c.l.b16 %v831
        %v2203 = vunpack.c.h.b16 %v831
        %v2204 = vunpack.c.l.b16 %v832
        %v2205 = vunpack.c.h.b16 %v832
        %v2206 = vunpack.c.l.b16 %v833
        %v2207 = vunpack.c.l.b16 %v834
        %v2208 = vunpack.c.h.b16 %v834
        %v2209 = vunpack.c.l.b16 %v835
        %v2210 = vunpack.c.h.b16 %v835
        %v2211 = vunpack.c.l.b16 %v836
        %v2212 = vunpack.c.h.b16 %v836
        %v2213 = vunpack.c.l.b16 %v837
        %v2214 = vunpack.c.h.b16 %v837
        %v2215 = vunpack.c.l.b16 %v838
        %v2216 = vunpack.c.l.b16 %v839
        %v2217 = vunpack.c.h.b16 %v839
        %v2218 = vunpack.c.l.b16 %v840
        %v2219 = vunpack.c.h.b16 %v840
        %v2220 = vunpack.c.l.b16 %v841
        %v2221 = vunpack.c.h.b16 %v841
        %v2222 = vunpack.c.l.b16 %v842
        %v2223 = vunpack.c.h.b16 %v842
        %v2224 = vunpack.c.l.b16 %v843
        %v2225 = vunpack.c.l.b16 %v844
        %v2226 = vunpack.c.h.b16 %v844
        %v2227 = vunpack.c.l.b16 %v845
        %v2228 = vunpack.c.h.b16 %v845
        %v2229 = vunpack.c.l.b16 %v846
        %v2230 = vunpack.c.h.b16 %v846
        %v2231 = vunpack.c.l.b16 %v847
        %v2232 = vunpack.c.h.b16 %v847
        %v2233 = vunpack.c.l.b16 %v848
        %v2234 = vunpack.c.l.b16 %v849
        %v2235 = vunpack.c.h.b16 %v849
        %v2236 = vunpack.c.l.b16 %v850
        %v2237 = vunpack.c.h.b16 %v850
        %v2238 = vunpack.c.l.b16 %v851
        %v2239 = vunpack.c.h.b16 %v851
        %v2240 = vunpack.c.l.b16 %v852
        %v2241 = vunpack.c.h.b16 %v852
        %v2242 = vunpack.c.l.b16 %v853
        %v2243 = vunpack.c.l.b16 %v854
        %v2244 = vunpack.c.h.b16 %v854
        %v2245 = vunpack.c.l.b16 %v855
        %v2246 = vunpack.c.h.b16 %v855
        %v2247 = vunpack.c.l.b16 %v856
        %v2248 = vunpack.c.h.b16 %v856
        %v2249 = vunpack.c.l.b16 %v857
        %v2250 = vunpack.c.h.b16 %v857
        %v2251 = vunpack.c.l.b16 %v858
        %v2252 = vpack.c.b16 %v1397, %v1388
        %v2253 = vpack.c.b16 %v1398, %v1389
        %v2254 = vpack.c.b16 %v1399, %v1390
        %v2255 = vpack.c.b16 %v1400, %v1391
        %v2256 = vpack.c.b16 %v1401, %v1392
        %v2257 = vpack.c.b16 %v1402, %v1393
        %v2258 = vpack.c.b16 %v1403, %v1394
        %v2259 = vpack.c.b16 %v1404, %v1395
        %v2260 = vpack.c.b16 %v1405, %v1396
        %v2261 = vpack.c.b16 %v1415, %v1406
        %v2262 = vpack.c.b16 %v1416, %v1407
        %v2263 = vpack.c.b16 %v1417, %v1408
        %v2264 = vpack.c.b16 %v1418, %v1409
        %v2265 = vpack.c.b16 %v1419, %v1410
        %v2266 = vpack.c.b16 %v1420, %v1411
        %v2267 = vpack.c.b16 %v1421, %v1412
        %v2268 = vpack.c.b16 %v1422, %v1413
        %v2269 = vpack.c.b16 %v1423, %v1414
        %v2270 = vpack.c.b16 %v1433, %v1424
        %v2271 = vpack.c.b16 %v1434, %v1425
        %v2272 = vpack.c.b16 %v1435, %v1426
        %v2273 = vpack.c.b16 %v1436, %v1427
        %v2274 = vpack.c.b16 %v1437, %v1428
        %v2275 = vpack.c.b16 %v1438, %v1429
        %v2276 = vpack.c.b16 %v1439, %v1430
        %v2277 = vpack.c.b16 %v1440, %v1431
        %v2278 = vpack.c.b16 %v1441, %v1432
        %v2279 = vpack.c.b16 %v1451, %v1442
        %v2280 = vpack.c.b16 %v1452, %v1443
        %v2281 = vpack.c.b16 %v1453, %v1444
        %v2282 = vpack.c.b16 %v1454, %v1445
        %v2283 = vpack.c.b16 %v1455, %v1446
        %v2284 = vpack.c.b16 %v1456, %v1447
        %v2285 = vpack.c.b16 %v1457, %v1448
        %v2286 = vpack.c.b16 %v1458, %v1449
        %v2287 = vpack.c.b16 %v1459, %v1450
        %v2288 = vpack.c.b16 %v1469, %v1460
        %v2289 = vpack.c.b16 %v1470, %v1461
        %v2290 = vpack.c.b16 %v1471, %v1462
        %v2291 = vpack.c.b16 %v1472, %v1463
        %v2292 = vpack.c.b16 %v1473, %v1464
        %v2293 = vpack.c.b16 %v1474, %v1465
        %v2294 = vpack.c.b16 %v1475, %v1466
        %v2295 = vpack.c.b16 %v1476, %v1467
        %v2296 = vpack.c.b16 %v1477, %v1468
        %v2297 = vpack.c.b16 %v1487, %v1478
        %v2298 = vpack.c.b16 %v1488, %v1479
        %v2299 = vpack.c.b16 %v1489, %v1480
        %v2300 = vpack.c.b16 %v1490, %v1481
        %v2301 = vpack.c.b16 %v1491, %v1482
        %v2302 = vpack.c.b16 %v1492, %v1483
        %v2303 = vpack.c.b16 %v1493, %v1484
        %v2304 = vpack.c.b16 %v1494, %v1485
        %v2305 = vpack.c.b16 %v1495, %v1486
        %v2306 = vpack.c.b16 %v1505, %v1496
        %v2307 = vpack.c.b16 %v1506, %v1497
        %v2308 = vpack.c.b16 %v1507, %v1498
        %v2309 = vpack.c.b16 %v1508, %v1499
        %v2310 = vpack.c.b16 %v1509, %v1500
        %v2311 = vpack.c.b16 %v1510, %v1501
        %v2312 = vpack.c.b16 %v1511, %v1502
        %v2313 = vpack.c.b16 %v1512, %v1503
        %v2314 = vpack.c.b16 %v1513, %v1504
        %v2315 = vpack.c.b16 %v1523, %v1514
        %v2316 = vpack.c.b16 %v1524, %v1515
        %v2317 = vpack.c.b16 %v1525, %v1516
        %v2318 = vpack.c.b16 %v1526, %v1517
        %v2319 = vpack.c.b16 %v1527, %v1518
        %v2320 = vpack.c.b16 %v1528, %v1519
        %v2321 = vpack.c.b16 %v1529, %v1520
        %v2322 = vpack.c.b16 %v1530, %v1521
        %v2323 = vpack.c.b16 %v1531, %v1522
        %v2324 = vpack.c.b16 %v1541, %v1532
        %v2325 = vpack.c.b16 %v1542, %v1533
        %v2326 = vpack.c.b16 %v1543, %v1534
        %v2327 = vpack.c.b16 %v1544, %v1535
        %v2328 = vpack.c.b16 %v1545, %v1536
        %v2329 = vpack.c.b16 %v1546, %v1537
        %v2330 = vpack.c.b16 %v1547, %v1538
        %v2331 = vpack.c.b16 %v1548, %v1539
        %v2332 = vpack.c.b16 %v1549, %v1540
        %v2333 = vpack.c.b16 %v1559, %v1550
        %v2334 = vpack.c.b16 %v1560, %v1551
        %v2335 = vpack.c.b16 %v1561, %v1552
        %v2336 = vpack.c.b16 %v1562, %v1553
        %v2337 = vpack.c.b16 %v1563, %v1554
        %v2338 = vpack.c.b16 %v1564, %v1555
        %v2339 = vpack.c.b16 %v1565, %v1556
        %v2340 = vpack.c.b16 %v1566, %v1557
        %v2341 = vpack.c.b16 %v1567, %v1558
        %v2342 = vpack.c.b16 %v1577, %v1568
        %v2343 = vpack.c.b16 %v1578, %v1569
        %v2344 = vpack.c.b16 %v1579, %v1570
        %v2345 = vpack.c.b16 %v1580, %v1571
        %v2346 = vpack.c.b16 %v1581, %v1572
        %v2347 = vpack.c.b16 %v1582, %v1573
        %v2348 = vpack.c.b16 %v1583, %v1574
        %v2349 = vpack.c.b16 %v1584, %v1575
        %v2350 = vpack.c.b16 %v1585, %v1576
        %v2351 = vpack.c.b16 %v1595, %v1586
        %v2352 = vpack.c.b16 %v1596, %v1587
        %v2353 = vpack.c.b16 %v1597, %v1588
        %v2354 = vpack.c.b16 %v1598, %v1589
        %v2355 = vpack.c.b16 %v1599, %v1590
        %v2356 = vpack.c.b16 %v1600, %v1591
        %v2357 = vpack.c.b16 %v1601, %v1592
        %v2358 = vpack.c.b16 %v1602, %v1593
        %v2359 = vpack.c.b16 %v1603, %v1594
        %v2360 = vpack.c.b16 %v1613, %v1604
        %v2361 = vpack.c.b16 %v1614, %v1605
        %v2362 = vpack.c.b16 %v1615, %v1606
        %v2363 = vpack.c.b16 %v1616, %v1607
        %v2364 = vpack.c.b16 %v1617, %v1608
        %v2365 = vpack.c.b16 %v1618, %v1609
        %v2366 = vpack.c.b16 %v1619, %v1610
        %v2367 = vpack.c.b16 %v1620, %v1611
        %v2368 = vpack.c.b16 %v1621, %v1612
        %v2369 = vpack.c.b16 %v1631, %v1622
        %v2370 = vpack.c.b16 %v1632, %v1623
        %v2371 = vpack.c.b16 %v1633, %v1624
        %v2372 = vpack.c.b16 %v1634, %v1625
        %v2373 = vpack.c.b16 %v1635, %v1626
        %v2374 = vpack.c.b16 %v1636, %v1627
        %v2375 = vpack.c.b16 %v1637, %v1628
        %v2376 = vpack.c.b16 %v1638, %v1629
        %v2377 = vpack.c.b16 %v1639, %v1630
        %v2378 = vpack.c.b16 %v1649, %v1640
        %v2379 = vpack.c.b16 %v1650, %v1641
        %v2380 = vpack.c.b16 %v1651, %v1642
        %v2381 = vpack.c.b16 %v1652, %v1643
        %v2382 = vpack.c.b16 %v1653, %v1644
        %v2383 = vpack.c.b16 %v1654, %v1645
        %v2384 = vpack.c.b16 %v1655, %v1646
        %v2385 = vpack.c.b16 %v1656, %v1647
        %v2386 = vpack.c.b16 %v1657, %v1648
        %v2387 = vpack.c.b16 %v1667, %v1658
        %v2388 = vpack.c.b16 %v1668, %v1659
        %v2389 = vpack.c.b16 %v1669, %v1660
        %v2390 = vpack.c.b16 %v1670, %v1661
        %v2391 = vpack.c.b16 %v1671, %v1662
        %v2392 = vpack.c.b16 %v1672, %v1663
        %v2393 = vpack.c.b16 %v1673, %v1664
        %v2394 = vpack.c.b16 %v1674, %v1665
        %v2395 = vpack.c.b16 %v1675, %v1666
        %v2396 = vpack.c.b16 %v1685, %v1676
        %v2397 = vpack.c.b16 %v1686, %v1677
        %v2398 = vpack.c.b16 %v1687, %v1678
        %v2399 = vpack.c.b16 %v1688, %v1679
        %v2400 = vpack.c.b16 %v1689, %v1680
        %v2401 = vpack.c.b16 %v1690, %v1681
        %v2402 = vpack.c.b16 %v1691, %v1682
        %v2403 = vpack.c.b16 %v1692, %v1683
        %v2404 = vpack.c.b16 %v1693, %v1684
        %v2405 = vpack.c.b16 %v1703, %v1694
        %v2406 = vpack.c.b16 %v1704, %v1695
        %v2407 = vpack.c.b16 %v1705, %v1696
        %v2408 = vpack.c.b16 %v1706, %v1697
        %v2409 = vpack.c.b16 %v1707, %v1698
        %v2410 = vpack.c.b16 %v1708, %v1699
        %v2411 = vpack.c.b16 %v1709, %v1700
        %v2412 = vpack.c.b16 %v1710, %v1701
        %v2413 = vpack.c.b16 %v1711, %v1702
        %v2414 = vpack.c.b16 %v1721, %v1712
        %v2415 = vpack.c.b16 %v1722, %v1713
        %v2416 = vpack.c.b16 %v1723, %v1714
        %v2417 = vpack.c.b16 %v1724, %v1715
        %v2418 = vpack.c.b16 %v1725, %v1716
        %v2419 = vpack.c.b16 %v1726, %v1717
        %v2420 = vpack.c.b16 %v1727, %v1718
        %v2421 = vpack.c.b16 %v1728, %v1719
        %v2422 = vpack.c.b16 %v1729, %v1720
        %v2423 = vpack.c.b16 %v1739, %v1730
        %v2424 = vpack.c.b16 %v1740, %v1731
        %v2425 = vpack.c.b16 %v1741, %v1732
        %v2426 = vpack.c.b16 %v1742, %v1733
        %v2427 = vpack.c.b16 %v1743, %v1734
        %v2428 = vpack.c.b16 %v1744, %v1735
        %v2429 = vpack.c.b16 %v1745, %v1736
        %v2430 = vpack.c.b16 %v1746, %v1737
        %v2431 = vpack.c.b16 %v1747, %v1738
        %v2432 = vpack.c.b16 %v1757, %v1748
        %v2433 = vpack.c.b16 %v1758, %v1749
        %v2434 = vpack.c.b16 %v1759, %v1750
        %v2435 = vpack.c.b16 %v1760, %v1751
        %v2436 = vpack.c.b16 %v1761, %v1752
        %v2437 = vpack.c.b16 %v1762, %v1753
        %v2438 = vpack.c.b16 %v1763, %v1754
        %v2439 = vpack.c.b16 %v1764, %v1755
        %v2440 = vpack.c.b16 %v1765, %v1756
        %v2441 = vpack.c.b16 %v1775, %v1766
        %v2442 = vpack.c.b16 %v1776, %v1767
        %v2443 = vpack.c.b16 %v1777, %v1768
        %v2444 = vpack.c.b16 %v1778, %v1769
        %v2445 = vpack.c.b16 %v1779, %v1770
        %v2446 = vpack.c.b16 %v1780, %v1771
        %v2447 = vpack.c.b16 %v1781, %v1772
        %v2448 = vpack.c.b16 %v1782, %v1773
        %v2449 = vpack.c.b16 %v1783, %v1774
        %v2450 = vpack.c.b16 %v1793, %v1784
        %v2451 = vpack.c.b16 %v1794, %v1785
        %v2452 = vpack.c.b16 %v1795, %v1786
        %v2453 = vpack.c.b16 %v1796, %v1787
        %v2454 = vpack.c.b16 %v1797, %v1788
        %v2455 = vpack.c.b16 %v1798, %v1789
        %v2456 = vpack.c.b16 %v1799, %v1790
        %v2457 = vpack.c.b16 %v1800, %v1791
        %v2458 = vpack.c.b16 %v1801, %v1792
        %v2459 = vpack.c.b16 %v1811, %v1802
        %v2460 = vpack.c.b16 %v1812, %v1803
        %v2461 = vpack.c.b16 %v1813, %v1804
        %v2462 = vpack.c.b16 %v1814, %v1805
        %v2463 = vpack.c.b16 %v1815, %v1806
        %v2464 = vpack.c.b16 %v1816, %v1807
        %v2465 = vpack.c.b16 %v1817, %v1808
        %v2466 = vpack.c.b16 %v1818, %v1809
        %v2467 = vpack.c.b16 %v1819, %v1810
        %v2468 = vpack.c.b16 %v1829, %v1820
        %v2469 = vpack.c.b16 %v1830, %v1821
        %v2470 = vpack.c.b16 %v1831, %v1822
        %v2471 = vpack.c.b16 %v1832, %v1823
        %v2472 = vpack.c.b16 %v1833, %v1824
        %v2473 = vpack.c.b16 %v1834, %v1825
        %v2474 = vpack.c.b16 %v1835, %v1826
        %v2475 = vpack.c.b16 %v1836, %v1827
        %v2476 = vpack.c.b16 %v1837, %v1828
        %v2477 = vpack.c.b16 %v1847, %v1838
        %v2478 = vpack.c.b16 %v1848, %v1839
        %v2479 = vpack.c.b16 %v1849, %v1840
        %v2480 = vpack.c.b16 %v1850, %v1841
        %v2481 = vpack.c.b16 %v1851, %v1842
        %v2482 = vpack.c.b16 %v1852, %v1843
        %v2483 = vpack.c.b16 %v1853, %v1844
        %v2484 = vpack.c.b16 %v1854, %v1845
        %v2485 = vpack.c.b16 %v1855, %v1846
        %v2486 = vpack.c.b16 %v1865, %v1856
        %v2487 = vpack.c.b16 %v1866, %v1857
        %v2488 = vpack.c.b16 %v1867, %v1858
        %v2489 = vpack.c.b16 %v1868, %v1859
        %v2490 = vpack.c.b16 %v1869, %v1860
        %v2491 = vpack.c.b16 %v1870, %v1861
        %v2492 = vpack.c.b16 %v1871, %v1862
        %v2493 = vpack.c.b16 %v1872, %v1863
        %v2494 = vpack.c.b16 %v1873, %v1864
        %v2495 = vpack.c.b16 %v1883, %v1874
        %v2496 = vpack.c.b16 %v1884, %v1875
        %v2497 = vpack.c.b16 %v1885, %v1876
        %v2498 = vpack.c.b16 %v1886, %v1877
        %v2499 = vpack.c.b16 %v1887, %v1878
        %v2500 = vpack.c.b16 %v1888, %v1879
        %v2501 = vpack.c.b16 %v1889, %v1880
        %v2502 = vpack.c.b16 %v1890, %v1881
        %v2503 = vpack.c.b16 %v1891, %v1882
        %v2504 = vpack.c.b16 %v1901, %v1892
        %v2505 = vpack.c.b16 %v1902, %v1893
        %v2506 = vpack.c.b16 %v1903, %v1894
        %v2507 = vpack.c.b16 %v1904, %v1895
        %v2508 = vpack.c.b16 %v1905, %v1896
        %v2509 = vpack.c.b16 %v1906, %v1897
        %v2510 = vpack.c.b16 %v1907, %v1898
        %v2511 = vpack.c.b16 %v1908, %v1899
        %v2512 = vpack.c.b16 %v1909, %v1900
        %v2513 = vpack.c.b16 %v1919, %v1910
        %v2514 = vpack.c.b16 %v1920, %v1911
        %v2515 = vpack.c.b16 %v1921, %v1912
        %v2516 = vpack.c.b16 %v1922, %v1913
        %v2517 = vpack.c.b16 %v1923, %v1914
        %v2518 = vpack.c.b16 %v1924, %v1915
        %v2519 = vpack.c.b16 %v1925, %v1916
        %v2520 = vpack.c.b16 %v1926, %v1917
        %v2521 = vpack.c.b16 %v1927, %v1918
        %v2522 = vpack.c.b16 %v1937, %v1928
        %v2523 = vpack.c.b16 %v1938, %v1929
        %v2524 = vpack.c.b16 %v1939, %v1930
        %v2525 = vpack.c.b16 %v1940, %v1931
        %v2526 = vpack.c.b16 %v1941, %v1932
        %v2527 = vpack.c.b16 %v1942, %v1933
        %v2528 = vpack.c.b16 %v1943, %v1934
        %v2529 = vpack.c.b16 %v1944, %v1935
        %v2530 = vpack.c.b16 %v1945, %v1936
        %v2531 = vpack.c.b16 %v1955, %v1946
        %v2532 = vpack.c.b16 %v1956, %v1947
        %v2533 = vpack.c.b16 %v1957, %v1948
        %v2534 = vpack.c.b16 %v1958, %v1949
        %v2535 = vpack.c.b16 %v1959, %v1950
        %v2536 = vpack.c.b16 %v1960, %v1951
        %v2537 = vpack.c.b16 %v1961, %v1952
        %v2538 = vpack.c.b16 %v1962, %v1953
        %v2539 = vpack.c.b16 %v1963, %v1954
        %v2540 = vpack.c.b16 %v1973, %v1964
        %v2541 = vpack.c.b16 %v1974, %v1965
        %v2542 = vpack.c.b16 %v1975, %v1966
        %v2543 = vpack.c.b16 %v1976, %v1967
        %v2544 = vpack.c.b16 %v1977, %v1968
        %v2545 = vpack.c.b16 %v1978, %v1969
        %v2546 = vpack.c.b16 %v1979, %v1970
        %v2547 = vpack.c.b16 %v1980, %v1971
        %v2548 = vpack.c.b16 %v1981, %v1972
        %v2549 = vpack.c.b16 %v1991, %v1982
        %v2550 = vpack.c.b16 %v1992, %v1983
        %v2551 = vpack.c.b16 %v1993, %v1984
        %v2552 = vpack.c.b16 %v1994, %v1985
        %v2553 = vpack.c.b16 %v1995, %v1986
        %v2554 = vpack.c.b16 %v1996, %v1987
        %v2555 = vpack.c.b16 %v1997, %v1988
        %v2556 = vpack.c.b16 %v1998, %v1989
        %v2557 = vpack.c.b16 %v1999, %v1990
        %v2558 = vpack.c.b16 %v2009, %v2000
        %v2559 = vpack.c.b16 %v2010, %v2001
        %v2560 = vpack.c.b16 %v2011, %v2002
        %v2561 = vpack.c.b16 %v2012, %v2003
        %v2562 = vpack.c.b16 %v2013, %v2004
        %v2563 = vpack.c.b16 %v2014, %v2005
        %v2564 = vpack.c.b16 %v2015, %v2006
        %v2565 = vpack.c.b16 %v2016, %v2007
        %v2566 = vpack.c.b16 %v2017, %v2008
        %v2567 = vpack.c.b16 %v2027, %v2018
        %v2568 = vpack.c.b16 %v2028, %v2019
        %v2569 = vpack.c.b16 %v2029, %v2020
        %v2570 = vpack.c.b16 %v2030, %v2021
        %v2571 = vpack.c.b16 %v2031, %v2022
        %v2572 = vpack.c.b16 %v2032, %v2023
        %v2573 = vpack.c.b16 %v2033, %v2024
        %v2574 = vpack.c.b16 %v2034, %v2025
        %v2575 = vpack.c.b16 %v2035, %v2026
        %v2576 = vpack.c.b16 %v2045, %v2036
        %v2577 = vpack.c.b16 %v2046, %v2037
        %v2578 = vpack.c.b16 %v2047, %v2038
        %v2579 = vpack.c.b16 %v2048, %v2039
        %v2580 = vpack.c.b16 %v2049, %v2040
        %v2581 = vpack.c.b16 %v2050, %v2041
        %v2582 = vpack.c.b16 %v2051, %v2042
        %v2583 = vpack.c.b16 %v2052, %v2043
        %v2584 = vpack.c.b16 %v2053, %v2044
        %v2585 = vpack.c.b16 %v2063, %v2054
        %v2586 = vpack.c.b16 %v2064, %v2055
        %v2587 = vpack.c.b16 %v2065, %v2056
        %v2588 = vpack.c.b16 %v2066, %v2057
        %v2589 = vpack.c.b16 %v2067, %v2058
        %v2590 = vpack.c.b16 %v2068, %v2059
        %v2591 = vpack.c.b16 %v2069, %v2060
        %v2592 = vpack.c.b16 %v2070, %v2061
        %v2593 = vpack.c.b16 %v2071, %v2062
        %v2594 = vpack.c.b16 %v2081, %v2072
        %v2595 = vpack.c.b16 %v2082, %v2073
        %v2596 = vpack.c.b16 %v2083, %v2074
        %v2597 = vpack.c.b16 %v2084, %v2075
        %v2598 = vpack.c.b16 %v2085, %v2076
        %v2599 = vpack.c.b16 %v2086, %v2077
        %v2600 = vpack.c.b16 %v2087, %v2078
        %v2601 = vpack.c.b16 %v2088, %v2079
        %v2602 = vpack.c.b16 %v2089, %v2080
        %v2603 = vpack.c.b16 %v2099, %v2090
        %v2604 = vpack.c.b16 %v2100, %v2091
        %v2605 = vpack.c.b16 %v2101, %v2092
        %v2606 = vpack.c.b16 %v2102, %v2093
        %v2607 = vpack.c.b16 %v2103, %v2094
        %v2608 = vpack.c.b16 %v2104, %v2095
        %v2609 = vpack.c.b16 %v2105, %v2096
        %v2610 = vpack.c.b16 %v2106, %v2097
        %v2611 = vpack.c.b16 %v2107, %v2098
        %v2612 = vpack.c.b16 %v2117, %v2108
        %v2613 = vpack.c.b16 %v2118, %v2109
        %v2614 = vpack.c.b16 %v2119, %v2110
        %v2615 = vpack.c.b16 %v2120, %v2111
        %v2616 = vpack.c.b16 %v2121, %v2112
        %v2617 = vpack.c.b16 %v2122, %v2113
        %v2618 = vpack.c.b16 %v2123, %v2114
        %v2619 = vpack.c.b16 %v2124, %v2115
        %v2620 = vpack.c.b16 %v2125, %v2116
        %v2621 = vpack.c.b16 %v2135, %v2126
        %v2622 = vpack.c.b16 %v2136, %v2127
        %v2623 = vpack.c.b16 %v2137, %v2128
        %v2624 = vpack.c.b16 %v2138, %v2129
        %v2625 = vpack.c.b16 %v2139, %v2130
        %v2626 = vpack.c.b16 %v2140, %v2131
        %v2627 = vpack.c.b16 %v2141, %v2132
        %v2628 = vpack.c.b16 %v2142, %v2133
        %v2629 = vpack.c.b16 %v2143, %v2134
        %v2630 = vpack.c.b16 %v2153, %v2144
        %v2631 = vpack.c.b16 %v2154, %v2145
        %v2632 = vpack.c.b16 %v2155, %v2146
        %v2633 = vpack.c.b16 %v2156, %v2147
        %v2634 = vpack.c.b16 %v2157, %v2148
        %v2635 = vpack.c.b16 %v2158, %v2149
        %v2636 = vpack.c.b16 %v2159, %v2150
        %v2637 = vpack.c.b16 %v2160, %v2151
        %v2638 = vpack.c.b16 %v2161, %v2152
        %v2639 = vpack.c.b16 %v2171, %v2162
        %v2640 = vpack.c.b16 %v2172, %v2163
        %v2641 = vpack.c.b16 %v2173, %v2164
        %v2642 = vpack.c.b16 %v2174, %v2165
        %v2643 = vpack.c.b16 %v2175, %v2166
        %v2644 = vpack.c.b16 %v2176, %v2167
        %v2645 = vpack.c.b16 %v2177, %v2168
        %v2646 = vpack.c.b16 %v2178, %v2169
        %v2647 = vpack.c.b16 %v2179, %v2170
        %v2648 = vpack.c.b16 %v2189, %v2180
        %v2649 = vpack.c.b16 %v2190, %v2181
        %v2650 = vpack.c.b16 %v2191, %v2182
        %v2651 = vpack.c.b16 %v2192, %v2183
        %v2652 = vpack.c.b16 %v2193, %v2184
        %v2653 = vpack.c.b16 %v2194, %v2185
        %v2654 = vpack.c.b16 %v2195, %v2186
        %v2655 = vpack.c.b16 %v2196, %v2187
        %v2656 = vpack.c.b16 %v2197, %v2188
        %v2657 = vpack.c.b16 %v2207, %v2198
        %v2658 = vpack.c.b16 %v2208, %v2199
        %v2659 = vpack.c.b16 %v2209, %v2200
        %v2660 = vpack.c.b16 %v2210, %v2201
        %v2661 = vpack.c.b16 %v2211, %v2202
        %v2662 = vpack.c.b16 %v2212, %v2203
        %v2663 = vpack.c.b16 %v2213, %v2204
        %v2664 = vpack.c.b16 %v2214, %v2205
        %v2665 = vpack.c.b16 %v2215, %v2206
        %v2666 = vpack.c.b16 %v2225, %v2216
        %v2667 = vpack.c.b16 %v2226, %v2217
        %v2668 = vpack.c.b16 %v2227, %v2218
        %v2669 = vpack.c.b16 %v2228, %v2219
        %v2670 = vpack.c.b16 %v2229, %v2220
        %v2671 = vpack.c.b16 %v2230, %v2221
        %v2672 = vpack.c.b16 %v2231, %v2222
        %v2673 = vpack.c.b16 %v2232, %v2223
        %v2674 = vpack.c.b16 %v2233, %v2224
        %v2675 = vpack.c.b16 %v2243, %v2234
        %v2676 = vpack.c.b16 %v2244, %v2235
        %v2677 = vpack.c.b16 %v2245, %v2236
        %v2678 = vpack.c.b16 %v2246, %v2237
        %v2679 = vpack.c.b16 %v2247, %v2238
        %v2680 = vpack.c.b16 %v2248, %v2239
        %v2681 = vpack.c.b16 %v2249, %v2240
        %v2682 = vpack.c.b16 %v2250, %v2241
        %v2683 = vpack.c.b16 %v2251, %v2242
        %3116 = vmatprep.subr.bf16.mxu0 %v2253
        %3117 = vmatpush1.bf16.msra.mxu0 %v2252
        %3118 = vmatprep.subr.bf16.mxu0 %v2262
        %3119 = vmatpush1.bf16.msra.mxu0 %v2261
        %3120 = vmatprep.subr.bf16.mxu0 %v2271
        %3121 = vmatpush1.bf16.msra.mxu0 %v2270
        %3122 = vmatprep.subr.bf16.mxu0 %v2280
        %3123 = vmatpush1.bf16.msra.mxu0 %v2279
        %3124 = vmatprep.subr.bf16.mxu0 %v2289
        %3125 = vmatpush1.bf16.msra.mxu0 %v2288
        %3126 = vmatprep.subr.bf16.mxu0 %v2298
        %3127 = vmatpush1.bf16.msra.mxu0 %v2297
        %3128 = vmatprep.subr.bf16.mxu0 %v2307
        %3129 = vmatpush1.bf16.msra.mxu0 %v2306
        %3130 = vmatprep.subr.bf16.mxu0 %v2316
        %3131 = vmatpush1.bf16.msra.mxu0 %v2315
        %3132 = vmatprep.subr.bf16.mxu0 %v2325
        %3133 = vmatpush1.bf16.msra.mxu0 %v2324
        %3134 = vmatprep.subr.bf16.mxu0 %v2334
        %3135 = vmatpush1.bf16.msra.mxu0 %v2333
        %3136 = vmatprep.subr.bf16.mxu0 %v2343
        %3137 = vmatpush1.bf16.msra.mxu0 %v2342
        %3138 = vmatprep.subr.bf16.mxu0 %v2352
        %3139 = vmatpush1.bf16.msra.mxu0 %v2351
        %3140 = vmatprep.subr.bf16.mxu0 %v2361
        %3141 = vmatpush1.bf16.msra.mxu0 %v2360
        %3142 = vmatprep.subr.bf16.mxu0 %v2370
        %3143 = vmatpush1.bf16.msra.mxu0 %v2369
        %3144 = vmatprep.subr.bf16.mxu0 %v2379
        %3145 = vmatpush1.bf16.msra.mxu0 %v2378
        %3146 = vmatprep.subr.bf16.mxu0 %v2388
        %3147 = vmatpush1.bf16.msra.mxu0 %v2387
        %3148 = vmatprep.mubr.bf16.mxu0 %v374
        %3149 = vmatmul.mubr.bf16.gmra.mrb[0].mxu0 %v373
        %v3150 = vpop.f32.mrb[0].mxu0
        %v3151 = vadd.f32 %v866, %v3150
        %v3152 = vpop.f32.mrb[0].mxu0
        %v3153 = vadd.f32 %v870, %v3152
        %v3154 = vpop.f32.mrb[0].mxu0
        %v3155 = vadd.f32 %v866, %v3154
        %v3156 = vpop.f32.mrb[0].mxu0
        %v3157 = vadd.f32 %v870, %v3156
        %3158 = vdwg.mxu0
        %3159 = vmatprep.subr.bf16.mxu0 %v2397
        %3160 = vmatpush1.bf16.msra.mxu0 %v2396
        %3161 = vmatprep.subr.bf16.mxu0 %v2406
        %3162 = vmatpush1.bf16.msra.mxu0 %v2405
        %3163 = vmatprep.subr.bf16.mxu0 %v2415
        %3164 = vmatpush1.bf16.msra.mxu0 %v2414
        %3165 = vmatprep.subr.bf16.mxu0 %v2424
        %3166 = vmatpush1.bf16.msra.mxu0 %v2423
        %3167 = vmatprep.subr.bf16.mxu0 %v2433
        %3168 = vmatpush1.bf16.msra.mxu0 %v2432
        %3169 = vmatprep.subr.bf16.mxu0 %v2442
        %3170 = vmatpush1.bf16.msra.mxu0 %v2441
        %3171 = vmatprep.subr.bf16.mxu0 %v2451
        %3172 = vmatpush1.bf16.msra.mxu0 %v2450
        %3173 = vmatprep.subr.bf16.mxu0 %v2460
        %3174 = vmatpush1.bf16.msra.mxu0 %v2459
        %3175 = vmatprep.subr.bf16.mxu0 %v2469
        %3176 = vmatpush1.bf16.msra.mxu0 %v2468
        %3177 = vmatprep.subr.bf16.mxu0 %v2478
        %3178 = vmatpush1.bf16.msra.mxu0 %v2477
        %3179 = vmatprep.subr.bf16.mxu0 %v2487
        %3180 = vmatpush1.bf16.msra.mxu0 %v2486
        %3181 = vmatprep.subr.bf16.mxu0 %v2496
        %3182 = vmatpush1.bf16.msra.mxu0 %v2495
        %3183 = vmatprep.subr.bf16.mxu0 %v2505
        %3184 = vmatpush1.bf16.msra.mxu0 %v2504
        %3185 = vmatprep.subr.bf16.mxu0 %v2514
        %3186 = vmatpush1.bf16.msra.mxu0 %v2513
        %3187 = vmatprep.subr.bf16.mxu0 %v2523
        %3188 = vmatpush1.bf16.msra.mxu0 %v2522
        %3189 = vmatprep.subr.bf16.mxu0 %v2532
        %3190 = vmatpush1.bf16.msra.mxu0 %v2531
        %3191 = vmatprep.mubr.bf16.mxu0 %v376
        %3192 = vmatmul.mubr.bf16.gmra.mrb[0].mxu0 %v375
        %v3193 = vpop.f32.mrb[0].mxu0
        %v3194 = vadd.f32 %v3151, %v3193
        %v3195 = vpop.f32.mrb[0].mxu0
        %v3196 = vadd.f32 %v3153, %v3195
        %v3197 = vpop.f32.mrb[0].mxu0
        %v3198 = vadd.f32 %v3155, %v3197
        %v3199 = vpop.f32.mrb[0].mxu0
        %v3200 = vadd.f32 %v3157, %v3199
        %3201 = vdwg.mxu0
        %3202 = vmatprep.subr.bf16.mxu0 %v2541
        %3203 = vmatpush1.bf16.msra.mxu0 %v2540
        %3204 = vmatprep.subr.bf16.mxu0 %v2550
        %3205 = vmatpush1.bf16.msra.mxu0 %v2549
        %3206 = vmatprep.subr.bf16.mxu0 %v2559
        %3207 = vmatpush1.bf16.msra.mxu0 %v2558
        %3208 = vmatprep.subr.bf16.mxu0 %v2568
        %3209 = vmatpush1.bf16.msra.mxu0 %v2567
        %3210 = vmatprep.subr.bf16.mxu0 %v2577
        %3211 = vmatpush1.bf16.msra.mxu0 %v2576
        %3212 = vmatprep.subr.bf16.mxu0 %v2586
        %3213 = vmatpush1.bf16.msra.mxu0 %v2585
        %3214 = vmatprep.subr.bf16.mxu0 %v2595
        %3215 = vmatpush1.bf16.msra.mxu0 %v2594
        %3216 = vmatprep.subr.bf16.mxu0 %v2604
        %3217 = vmatpush1.bf16.msra.mxu0 %v2603
        %3218 = vmatprep.subr.bf16.mxu0 %v2613
        %3219 = vmatpush1.bf16.msra.mxu0 %v2612
        %3220 = vmatprep.subr.bf16.mxu0 %v2622
        %3221 = vmatpush1.bf16.msra.mxu0 %v2621
        %3222 = vmatprep.subr.bf16.mxu0 %v2631
        %3223 = vmatpush1.bf16.msra.mxu0 %v2630
        %3224 = vmatprep.subr.bf16.mxu0 %v2640
        %3225 = vmatpush1.bf16.msra.mxu0 %v2639
        %3226 = vmatprep.subr.bf16.mxu0 %v2649
        %3227 = vmatpush1.bf16.msra.mxu0 %v2648
        %3228 = vmatprep.subr.bf16.mxu0 %v2658
        %3229 = vmatpush1.bf16.msra.mxu0 %v2657
        %3230 = vmatprep.subr.bf16.mxu0 %v2667
        %3231 = vmatpush1.bf16.msra.mxu0 %v2666
        %3232 = vmatprep.subr.bf16.mxu0 %v2676
        %3233 = vmatpush1.bf16.msra.mxu0 %v2675
        %3234 = vmatprep.mubr.bf16.mxu0 %v378
        %3235 = vmatmul.mubr.bf16.gmra.mrb[0].mxu0 %v377
        %v3236 = vpop.f32.mrb[0].mxu0
        %v3237 = vadd.f32 %v3194, %v3236
        %v3238 = vpop.f32.mrb[0].mxu0
        %v3239 = vadd.f32 %v3196, %v3238
        %v3240 = vpop.f32.mrb[0].mxu0
        %v3241 = vadd.f32 %v3198, %v3240
        %v3242 = vpop.f32.mrb[0].mxu0
        %v3243 = vadd.f32 %v3200, %v3242
        %3244 = vdwg.mxu0
        %3245 = vmatprep.subr.bf16.mxu0 %v2255
        %3246 = vmatpush1.bf16.msra.mxu0 %v2254
        %3247 = vmatprep.subr.bf16.mxu0 %v2264
        %3248 = vmatpush1.bf16.msra.mxu0 %v2263
        %3249 = vmatprep.subr.bf16.mxu0 %v2273
        %3250 = vmatpush1.bf16.msra.mxu0 %v2272
        %3251 = vmatprep.subr.bf16.mxu0 %v2282
        %3252 = vmatpush1.bf16.msra.mxu0 %v2281
        %3253 = vmatprep.subr.bf16.mxu0 %v2291
        %3254 = vmatpush1.bf16.msra.mxu0 %v2290
        %3255 = vmatprep.subr.bf16.mxu0 %v2300
        %3256 = vmatpush1.bf16.msra.mxu0 %v2299
        %3257 = vmatprep.subr.bf16.mxu0 %v2309
        %3258 = vmatpush1.bf16.msra.mxu0 %v2308
        %3259 = vmatprep.subr.bf16.mxu0 %v2318
        %3260 = vmatpush1.bf16.msra.mxu0 %v2317
        %3261 = vmatprep.subr.bf16.mxu0 %v2327
        %3262 = vmatpush1.bf16.msra.mxu0 %v2326
        %3263 = vmatprep.subr.bf16.mxu0 %v2336
        %3264 = vmatpush1.bf16.msra.mxu0 %v2335
        %3265 = vmatprep.subr.bf16.mxu0 %v2345
        %3266 = vmatpush1.bf16.msra.mxu0 %v2344
        %3267 = vmatprep.subr.bf16.mxu0 %v2354
        %3268 = vmatpush1.bf16.msra.mxu0 %v2353
        %3269 = vmatprep.subr.bf16.mxu0 %v2363
        %3270 = vmatpush1.bf16.msra.mxu0 %v2362
        %3271 = vmatprep.subr.bf16.mxu0 %v2372
        %3272 = vmatpush1.bf16.msra.mxu0 %v2371
        %3273 = vmatprep.subr.bf16.mxu0 %v2381
        %3274 = vmatpush1.bf16.msra.mxu0 %v2380
        %3275 = vmatprep.subr.bf16.mxu0 %v2390
        %3276 = vmatpush1.bf16.msra.mxu0 %v2389
        %3277 = vmatprep.mubr.bf16.mxu0 %v374
        %3278 = vmatmul.mubr.bf16.gmra.mrb[0].mxu0 %v373
        %v3279 = vpop.f32.mrb[0].mxu0
        %v3280 = vadd.f32 %v874, %v3279
        %v3281 = vpop.f32.mrb[0].mxu0
        %v3282 = vadd.f32 %v878, %v3281
        %v3283 = vpop.f32.mrb[0].mxu0
        %v3284 = vadd.f32 %v874, %v3283
        %v3285 = vpop.f32.mrb[0].mxu0
        %v3286 = vadd.f32 %v878, %v3285
        %3287 = vdwg.mxu0
        %3288 = vmatprep.subr.bf16.mxu0 %v2399
        %3289 = vmatpush1.bf16.msra.mxu0 %v2398
        %3290 = vmatprep.subr.bf16.mxu0 %v2408
        %3291 = vmatpush1.bf16.msra.mxu0 %v2407
        %3292 = vmatprep.subr.bf16.mxu0 %v2417
        %3293 = vmatpush1.bf16.msra.mxu0 %v2416
        %3294 = vmatprep.subr.bf16.mxu0 %v2426
        %3295 = vmatpush1.bf16.msra.mxu0 %v2425
        %3296 = vmatprep.subr.bf16.mxu0 %v2435
        %3297 = vmatpush1.bf16.msra.mxu0 %v2434
        %3298 = vmatprep.subr.bf16.mxu0 %v2444
        %3299 = vmatpush1.bf16.msra.mxu0 %v2443
        %3300 = vmatprep.subr.bf16.mxu0 %v2453
        %3301 = vmatpush1.bf16.msra.mxu0 %v2452
        %3302 = vmatprep.subr.bf16.mxu0 %v2462
        %3303 = vmatpush1.bf16.msra.mxu0 %v2461
        %3304 = vmatprep.subr.bf16.mxu0 %v2471
        %3305 = vmatpush1.bf16.msra.mxu0 %v2470
        %3306 = vmatprep.subr.bf16.mxu0 %v2480
        %3307 = vmatpush1.bf16.msra.mxu0 %v2479
        %3308 = vmatprep.subr.bf16.mxu0 %v2489
        %3309 = vmatpush1.bf16.msra.mxu0 %v2488
        %3310 = vmatprep.subr.bf16.mxu0 %v2498
        %3311 = vmatpush1.bf16.msra.mxu0 %v2497
        %3312 = vmatprep.subr.bf16.mxu0 %v2507
        %3313 = vmatpush1.bf16.msra.mxu0 %v2506
        %3314 = vmatprep.subr.bf16.mxu0 %v2516
        %3315 = vmatpush1.bf16.msra.mxu0 %v2515
        %3316 = vmatprep.subr.bf16.mxu0 %v2525
        %3317 = vmatpush1.bf16.msra.mxu0 %v2524
        %3318 = vmatprep.subr.bf16.mxu0 %v2534
        %3319 = vmatpush1.bf16.msra.mxu0 %v2533
        %3320 = vmatprep.mubr.bf16.mxu0 %v376
        %3321 = vmatmul.mubr.bf16.gmra.mrb[0].mxu0 %v375
        %v3322 = vpop.f32.mrb[0].mxu0
        %v3323 = vadd.f32 %v3280, %v3322
        %v3324 = vpop.f32.mrb[0].mxu0
        %v3325 = vadd.f32 %v3282, %v3324
        %v3326 = vpop.f32.mrb[0].mxu0
        %v3327 = vadd.f32 %v3284, %v3326
        %v3328 = vpop.f32.mrb[0].mxu0
        %v3329 = vadd.f32 %v3286, %v3328
        %3330 = vdwg.mxu0
        %3331 = vmatprep.subr.bf16.mxu0 %v2543
        %3332 = vmatpush1.bf16.msra.mxu0 %v2542
        %3333 = vmatprep.subr.bf16.mxu0 %v2552
        %3334 = vmatpush1.bf16.msra.mxu0 %v2551
        %3335 = vmatprep.subr.bf16.mxu0 %v2561
        %3336 = vmatpush1.bf16.msra.mxu0 %v2560
        %3337 = vmatprep.subr.bf16.mxu0 %v2570
        %3338 = vmatpush1.bf16.msra.mxu0 %v2569
        %3339 = vmatprep.subr.bf16.mxu0 %v2579
        %3340 = vmatpush1.bf16.msra.mxu0 %v2578
        %3341 = vmatprep.subr.bf16.mxu0 %v2588
        %3342 = vmatpush1.bf16.msra.mxu0 %v2587
        %3343 = vmatprep.subr.bf16.mxu0 %v2597
        %3344 = vmatpush1.bf16.msra.mxu0 %v2596
        %3345 = vmatprep.subr.bf16.mxu0 %v2606
        %3346 = vmatpush1.bf16.msra.mxu0 %v2605
        %3347 = vmatprep.subr.bf16.mxu0 %v2615
        %3348 = vmatpush1.bf16.msra.mxu0 %v2614
        %3349 = vmatprep.subr.bf16.mxu0 %v2624
        %3350 = vmatpush1.bf16.msra.mxu0 %v2623
        %3351 = vmatprep.subr.bf16.mxu0 %v2633
        %3352 = vmatpush1.bf16.msra.mxu0 %v2632
        %3353 = vmatprep.subr.bf16.mxu0 %v2642
        %3354 = vmatpush1.bf16.msra.mxu0 %v2641
        %3355 = vmatprep.subr.bf16.mxu0 %v2651
        %3356 = vmatpush1.bf16.msra.mxu0 %v2650
        %3357 = vmatprep.subr.bf16.mxu0 %v2660
        %3358 = vmatpush1.bf16.msra.mxu0 %v2659
        %3359 = vmatprep.subr.bf16.mxu0 %v2669
        %3360 = vmatpush1.bf16.msra.mxu0 %v2668
        %3361 = vmatprep.subr.bf16.mxu0 %v2678
        %3362 = vmatpush1.bf16.msra.mxu0 %v2677
        %3363 = vmatprep.mubr.bf16.mxu0 %v378
        %3364 = vmatmul.mubr.bf16.gmra.mrb[0].mxu0 %v377
        %v3365 = vpop.f32.mrb[0].mxu0
        %v3366 = vadd.f32 %v3323, %v3365
        %v3367 = vpop.f32.mrb[0].mxu0
        %v3368 = vadd.f32 %v3325, %v3367
        %v3369 = vpop.f32.mrb[0].mxu0
        %v3370 = vadd.f32 %v3327, %v3369
        %v3371 = vpop.f32.mrb[0].mxu0
        %v3372 = vadd.f32 %v3329, %v3371
        %3373 = vdwg.mxu0
        %3374 = vmatprep.subr.bf16.mxu0 %v2257
        %3375 = vmatpush1.bf16.msra.mxu0 %v2256
        %3376 = vmatprep.subr.bf16.mxu0 %v2266
        %3377 = vmatpush1.bf16.msra.mxu0 %v2265
        %3378 = vmatprep.subr.bf16.mxu0 %v2275
        %3379 = vmatpush1.bf16.msra.mxu0 %v2274
        %3380 = vmatprep.subr.bf16.mxu0 %v2284
        %3381 = vmatpush1.bf16.msra.mxu0 %v2283
        %3382 = vmatprep.subr.bf16.mxu0 %v2293
        %3383 = vmatpush1.bf16.msra.mxu0 %v2292
        %3384 = vmatprep.subr.bf16.mxu0 %v2302
        %3385 = vmatpush1.bf16.msra.mxu0 %v2301
        %3386 = vmatprep.subr.bf16.mxu0 %v2311
        %3387 = vmatpush1.bf16.msra.mxu0 %v2310
        %3388 = vmatprep.subr.bf16.mxu0 %v2320
        %3389 = vmatpush1.bf16.msra.mxu0 %v2319
        %3390 = vmatprep.subr.bf16.mxu0 %v2329
        %3391 = vmatpush1.bf16.msra.mxu0 %v2328
        %3392 = vmatprep.subr.bf16.mxu0 %v2338
        %3393 = vmatpush1.bf16.msra.mxu0 %v2337
        %3394 = vmatprep.subr.bf16.mxu0 %v2347
        %3395 = vmatpush1.bf16.msra.mxu0 %v2346
        %3396 = vmatprep.subr.bf16.mxu0 %v2356
        %3397 = vmatpush1.bf16.msra.mxu0 %v2355
        %3398 = vmatprep.subr.bf16.mxu0 %v2365
        %3399 = vmatpush1.bf16.msra.mxu0 %v2364
        %3400 = vmatprep.subr.bf16.mxu0 %v2374
        %3401 = vmatpush1.bf16.msra.mxu0 %v2373
        %3402 = vmatprep.subr.bf16.mxu0 %v2383
        %3403 = vmatpush1.bf16.msra.mxu0 %v2382
        %3404 = vmatprep.subr.bf16.mxu0 %v2392
        %3405 = vmatpush1.bf16.msra.mxu0 %v2391
        %3406 = vmatprep.mubr.bf16.mxu0 %v374
        %3407 = vmatmul.mubr.bf16.gmra.mrb[0].mxu0 %v373
        %v3408 = vpop.f32.mrb[0].mxu0
        %v3409 = vadd.f32 %v882, %v3408
        %v3410 = vpop.f32.mrb[0].mxu0
        %v3411 = vadd.f32 %v886, %v3410
        %v3412 = vpop.f32.mrb[0].mxu0
        %v3413 = vadd.f32 %v882, %v3412
        %v3414 = vpop.f32.mrb[0].mxu0
        %v3415 = vadd.f32 %v886, %v3414
        %3416 = vdwg.mxu0
        %3417 = vmatprep.subr.bf16.mxu0 %v2401
        %3418 = vmatpush1.bf16.msra.mxu0 %v2400
        %3419 = vmatprep.subr.bf16.mxu0 %v2410
        %3420 = vmatpush1.bf16.msra.mxu0 %v2409
        %3421 = vmatprep.subr.bf16.mxu0 %v2419
        %3422 = vmatpush1.bf16.msra.mxu0 %v2418
        %3423 = vmatprep.subr.bf16.mxu0 %v2428
        %3424 = vmatpush1.bf16.msra.mxu0 %v2427
        %3425 = vmatprep.subr.bf16.mxu0 %v2437
        %3426 = vmatpush1.bf16.msra.mxu0 %v2436
        %3427 = vmatprep.subr.bf16.mxu0 %v2446
        %3428 = vmatpush1.bf16.msra.mxu0 %v2445
        %3429 = vmatprep.subr.bf16.mxu0 %v2455
        %3430 = vmatpush1.bf16.msra.mxu0 %v2454
        %3431 = vmatprep.subr.bf16.mxu0 %v2464
        %3432 = vmatpush1.bf16.msra.mxu0 %v2463
        %3433 = vmatprep.subr.bf16.mxu0 %v2473
        %3434 = vmatpush1.bf16.msra.mxu0 %v2472
        %3435 = vmatprep.subr.bf16.mxu0 %v2482
        %3436 = vmatpush1.bf16.msra.mxu0 %v2481
        %3437 = vmatprep.subr.bf16.mxu0 %v2491
        %3438 = vmatpush1.bf16.msra.mxu0 %v2490
        %3439 = vmatprep.subr.bf16.mxu0 %v2500
        %3440 = vmatpush1.bf16.msra.mxu0 %v2499
        %3441 = vmatprep.subr.bf16.mxu0 %v2509
        %3442 = vmatpush1.bf16.msra.mxu0 %v2508
        %3443 = vmatprep.subr.bf16.mxu0 %v2518
        %3444 = vmatpush1.bf16.msra.mxu0 %v2517
        %3445 = vmatprep.subr.bf16.mxu0 %v2527
        %3446 = vmatpush1.bf16.msra.mxu0 %v2526
        %3447 = vmatprep.subr.bf16.mxu0 %v2536
        %3448 = vmatpush1.bf16.msra.mxu0 %v2535
        %3449 = vmatprep.mubr.bf16.mxu0 %v376
        %3450 = vmatmul.mubr.bf16.gmra.mrb[0].mxu0 %v375
        %v3451 = vpop.f32.mrb[0].mxu0
        %v3452 = vadd.f32 %v3409, %v3451
        %v3453 = vpop.f32.mrb[0].mxu0
        %v3454 = vadd.f32 %v3411, %v3453
        %v3455 = vpop.f32.mrb[0].mxu0
        %v3456 = vadd.f32 %v3413, %v3455
        %v3457 = vpop.f32.mrb[0].mxu0
        %v3458 = vadd.f32 %v3415, %v3457
        %3459 = vdwg.mxu0
        %3460 = vmatprep.subr.bf16.mxu0 %v2545
        %3461 = vmatpush1.bf16.msra.mxu0 %v2544
        %3462 = vmatprep.subr.bf16.mxu0 %v2554
        %3463 = vmatpush1.bf16.msra.mxu0 %v2553
        %3464 = vmatprep.subr.bf16.mxu0 %v2563
        %3465 = vmatpush1.bf16.msra.mxu0 %v2562
        %3466 = vmatprep.subr.bf16.mxu0 %v2572
        %3467 = vmatpush1.bf16.msra.mxu0 %v2571
        %3468 = vmatprep.subr.bf16.mxu0 %v2581
        %3469 = vmatpush1.bf16.msra.mxu0 %v2580
        %3470 = vmatprep.subr.bf16.mxu0 %v2590
        %3471 = vmatpush1.bf16.msra.mxu0 %v2589
        %3472 = vmatprep.subr.bf16.mxu0 %v2599
        %3473 = vmatpush1.bf16.msra.mxu0 %v2598
        %3474 = vmatprep.subr.bf16.mxu0 %v2608
        %3475 = vmatpush1.bf16.msra.mxu0 %v2607
        %3476 = vmatprep.subr.bf16.mxu0 %v2617
        %3477 = vmatpush1.bf16.msra.mxu0 %v2616
        %3478 = vmatprep.subr.bf16.mxu0 %v2626
        %3479 = vmatpush1.bf16.msra.mxu0 %v2625
        %3480 = vmatprep.subr.bf16.mxu0 %v2635
        %3481 = vmatpush1.bf16.msra.mxu0 %v2634
        %3482 = vmatprep.subr.bf16.mxu0 %v2644
        %3483 = vmatpush1.bf16.msra.mxu0 %v2643
        %3484 = vmatprep.subr.bf16.mxu0 %v2653
        %3485 = vmatpush1.bf16.msra.mxu0 %v2652
        %3486 = vmatprep.subr.bf16.mxu0 %v2662
        %3487 = vmatpush1.bf16.msra.mxu0 %v2661
        %3488 = vmatprep.subr.bf16.mxu0 %v2671
        %3489 = vmatpush1.bf16.msra.mxu0 %v2670
        %3490 = vmatprep.subr.bf16.mxu0 %v2680
        %3491 = vmatpush1.bf16.msra.mxu0 %v2679
        %3492 = vmatprep.mubr.bf16.mxu0 %v378
        %3493 = vmatmul.mubr.bf16.gmra.mrb[0].mxu0 %v377
        %v3494 = vpop.f32.mrb[0].mxu0
        %v3495 = vadd.f32 %v3452, %v3494
        %v3496 = vpop.f32.mrb[0].mxu0
        %v3497 = vadd.f32 %v3454, %v3496
        %v3498 = vpop.f32.mrb[0].mxu0
        %v3499 = vadd.f32 %v3456, %v3498
        %v3500 = vpop.f32.mrb[0].mxu0
        %v3501 = vadd.f32 %v3458, %v3500
        %3502 = vdwg.mxu0
        %3503 = vmatprep.subr.bf16.mxu0 %v2259
        %3504 = vmatpush1.bf16.msra.mxu0 %v2258
        %3505 = vmatprep.subr.bf16.mxu0 %v2268
        %3506 = vmatpush1.bf16.msra.mxu0 %v2267
        %3507 = vmatprep.subr.bf16.mxu0 %v2277
        %3508 = vmatpush1.bf16.msra.mxu0 %v2276
        %3509 = vmatprep.subr.bf16.mxu0 %v2286
        %3510 = vmatpush1.bf16.msra.mxu0 %v2285
        %3511 = vmatprep.subr.bf16.mxu0 %v2295
        %3512 = vmatpush1.bf16.msra.mxu0 %v2294
        %3513 = vmatprep.subr.bf16.mxu0 %v2304
        %3514 = vmatpush1.bf16.msra.mxu0 %v2303
        %3515 = vmatprep.subr.bf16.mxu0 %v2313
        %3516 = vmatpush1.bf16.msra.mxu0 %v2312
        %3517 = vmatprep.subr.bf16.mxu0 %v2322
        %3518 = vmatpush1.bf16.msra.mxu0 %v2321
        %3519 = vmatprep.subr.bf16.mxu0 %v2331
        %3520 = vmatpush1.bf16.msra.mxu0 %v2330
        %3521 = vmatprep.subr.bf16.mxu0 %v2340
        %3522 = vmatpush1.bf16.msra.mxu0 %v2339
        %3523 = vmatprep.subr.bf16.mxu0 %v2349
        %3524 = vmatpush1.bf16.msra.mxu0 %v2348
        %3525 = vmatprep.subr.bf16.mxu0 %v2358
        %3526 = vmatpush1.bf16.msra.mxu0 %v2357
        %3527 = vmatprep.subr.bf16.mxu0 %v2367
        %3528 = vmatpush1.bf16.msra.mxu0 %v2366
        %3529 = vmatprep.subr.bf16.mxu0 %v2376
        %3530 = vmatpush1.bf16.msra.mxu0 %v2375
        %3531 = vmatprep.subr.bf16.mxu0 %v2385
        %3532 = vmatpush1.bf16.msra.mxu0 %v2384
        %3533 = vmatprep.subr.bf16.mxu0 %v2394
        %3534 = vmatpush1.bf16.msra.mxu0 %v2393
        %3535 = vmatprep.mubr.bf16.mxu0 %v374
        %3536 = vmatmul.mubr.bf16.gmra.mrb[0].mxu0 %v373
        %v3537 = vpop.f32.mrb[0].mxu0
        %v3538 = vadd.f32 %v890, %v3537
        %v3539 = vpop.f32.mrb[0].mxu0
        %v3540 = vadd.f32 %v894, %v3539
        %v3541 = vpop.f32.mrb[0].mxu0
        %v3542 = vadd.f32 %v890, %v3541
        %v3543 = vpop.f32.mrb[0].mxu0
        %v3544 = vadd.f32 %v894, %v3543
        %3545 = vdwg.mxu0
        %3546 = vmatprep.subr.bf16.mxu0 %v2403
        %3547 = vmatpush1.bf16.msra.mxu0 %v2402
        %3548 = vmatprep.subr.bf16.mxu0 %v2412
        %3549 = vmatpush1.bf16.msra.mxu0 %v2411
        %3550 = vmatprep.subr.bf16.mxu0 %v2421
        %3551 = vmatpush1.bf16.msra.mxu0 %v2420
        %3552 = vmatprep.subr.bf16.mxu0 %v2430
        %3553 = vmatpush1.bf16.msra.mxu0 %v2429
        %3554 = vmatprep.subr.bf16.mxu0 %v2439
        %3555 = vmatpush1.bf16.msra.mxu0 %v2438
        %3556 = vmatprep.subr.bf16.mxu0 %v2448
        %3557 = vmatpush1.bf16.msra.mxu0 %v2447
        %3558 = vmatprep.subr.bf16.mxu0 %v2457
        %3559 = vmatpush1.bf16.msra.mxu0 %v2456
        %3560 = vmatprep.subr.bf16.mxu0 %v2466
        %3561 = vmatpush1.bf16.msra.mxu0 %v2465
        %3562 = vmatprep.subr.bf16.mxu0 %v2475
        %3563 = vmatpush1.bf16.msra.mxu0 %v2474
        %3564 = vmatprep.subr.bf16.mxu0 %v2484
        %3565 = vmatpush1.bf16.msra.mxu0 %v2483
        %3566 = vmatprep.subr.bf16.mxu0 %v2493
        %3567 = vmatpush1.bf16.msra.mxu0 %v2492
        %3568 = vmatprep.subr.bf16.mxu0 %v2502
        %3569 = vmatpush1.bf16.msra.mxu0 %v2501
        %3570 = vmatprep.subr.bf16.mxu0 %v2511
        %3571 = vmatpush1.bf16.msra.mxu0 %v2510
        %3572 = vmatprep.subr.bf16.mxu0 %v2520
        %3573 = vmatpush1.bf16.msra.mxu0 %v2519
        %3574 = vmatprep.subr.bf16.mxu0 %v2529
        %3575 = vmatpush1.bf16.msra.mxu0 %v2528
        %3576 = vmatprep.subr.bf16.mxu0 %v2538
        %3577 = vmatpush1.bf16.msra.mxu0 %v2537
        %3578 = vmatprep.mubr.bf16.mxu0 %v376
        %3579 = vmatmul.mubr.bf16.gmra.mrb[0].mxu0 %v375
        %v3580 = vpop.f32.mrb[0].mxu0
        %v3581 = vadd.f32 %v3538, %v3580
        %v3582 = vpop.f32.mrb[0].mxu0
        %v3583 = vadd.f32 %v3540, %v3582
        %v3584 = vpop.f32.mrb[0].mxu0
        %v3585 = vadd.f32 %v3542, %v3584
        %v3586 = vpop.f32.mrb[0].mxu0
        %v3587 = vadd.f32 %v3544, %v3586
        %3588 = vdwg.mxu0
        %3589 = vmatprep.subr.bf16.mxu0 %v2547
        %3590 = vmatpush1.bf16.msra.mxu0 %v2546
        %3591 = vmatprep.subr.bf16.mxu0 %v2556
        %3592 = vmatpush1.bf16.msra.mxu0 %v2555
        %3593 = vmatprep.subr.bf16.mxu0 %v2565
        %3594 = vmatpush1.bf16.msra.mxu0 %v2564
        %3595 = vmatprep.subr.bf16.mxu0 %v2574
        %3596 = vmatpush1.bf16.msra.mxu0 %v2573
        %3597 = vmatprep.subr.bf16.mxu0 %v2583
        %3598 = vmatpush1.bf16.msra.mxu0 %v2582
        %3599 = vmatprep.subr.bf16.mxu0 %v2592
        %3600 = vmatpush1.bf16.msra.mxu0 %v2591
        %3601 = vmatprep.subr.bf16.mxu0 %v2601
        %3602 = vmatpush1.bf16.msra.mxu0 %v2600
        %3603 = vmatprep.subr.bf16.mxu0 %v2610
        %3604 = vmatpush1.bf16.msra.mxu0 %v2609
        %3605 = vmatprep.subr.bf16.mxu0 %v2619
        %3606 = vmatpush1.bf16.msra.mxu0 %v2618
        %3607 = vmatprep.subr.bf16.mxu0 %v2628
        %3608 = vmatpush1.bf16.msra.mxu0 %v2627
        %3609 = vmatprep.subr.bf16.mxu0 %v2637
        %3610 = vmatpush1.bf16.msra.mxu0 %v2636
        %3611 = vmatprep.subr.bf16.mxu0 %v2646
        %3612 = vmatpush1.bf16.msra.mxu0 %v2645
        %3613 = vmatprep.subr.bf16.mxu0 %v2655
        %3614 = vmatpush1.bf16.msra.mxu0 %v2654
        %3615 = vmatprep.subr.bf16.mxu0 %v2664
        %3616 = vmatpush1.bf16.msra.mxu0 %v2663
        %3617 = vmatprep.subr.bf16.mxu0 %v2673
        %3618 = vmatpush1.bf16.msra.mxu0 %v2672
        %3619 = vmatprep.subr.bf16.mxu0 %v2682
        %3620 = vmatpush1.bf16.msra.mxu0 %v2681
        %3621 = vmatprep.mubr.bf16.mxu0 %v378
        %3622 = vmatmul.mubr.bf16.gmra.mrb[0].mxu0 %v377
        %v3623 = vpop.f32.mrb[0].mxu0
        %v3624 = vadd.f32 %v3581, %v3623
        %v3625 = vpop.f32.mrb[0].mxu0
        %v3626 = vadd.f32 %v3583, %v3625
        %v3627 = vpop.f32.mrb[0].mxu0
        %v3628 = vadd.f32 %v3585, %v3627
        %v3629 = vpop.f32.mrb[0].mxu0
        %v3630 = vadd.f32 %v3587, %v3629
        %3631 = vdwg.mxu0
        %3632 = vmatprep.subr.bf16.mxu0 0
        %3633 = vmatpush1.bf16.msra.mxu0 %v2260
        %3634 = vmatprep.subr.bf16.mxu0 0
        %3635 = vmatpush1.bf16.msra.mxu0 %v2269
        %3636 = vmatprep.subr.bf16.mxu0 0
        %3637 = vmatpush1.bf16.msra.mxu0 %v2278
        %3638 = vmatprep.subr.bf16.mxu0 0
        %3639 = vmatpush1.bf16.msra.mxu0 %v2287
        %3640 = vmatprep.subr.bf16.mxu0 0
        %3641 = vmatpush1.bf16.msra.mxu0 %v2296
        %3642 = vmatprep.subr.bf16.mxu0 0
        %3643 = vmatpush1.bf16.msra.mxu0 %v2305
        %3644 = vmatprep.subr.bf16.mxu0 0
        %3645 = vmatpush1.bf16.msra.mxu0 %v2314
        %3646 = vmatprep.subr.bf16.mxu0 0
        %3647 = vmatpush1.bf16.msra.mxu0 %v2323
        %3648 = vmatprep.subr.bf16.mxu0 0
        %3649 = vmatpush1.bf16.msra.mxu0 %v2332
        %3650 = vmatprep.subr.bf16.mxu0 0
        %3651 = vmatpush1.bf16.msra.mxu0 %v2341
        %3652 = vmatprep.subr.bf16.mxu0 0
        %3653 = vmatpush1.bf16.msra.mxu0 %v2350
        %3654 = vmatprep.subr.bf16.mxu0 0
        %3655 = vmatpush1.bf16.msra.mxu0 %v2359
        %3656 = vmatprep.subr.bf16.mxu0 0
        %3657 = vmatpush1.bf16.msra.mxu0 %v2368
        %3658 = vmatprep.subr.bf16.mxu0 0
        %3659 = vmatpush1.bf16.msra.mxu0 %v2377
        %3660 = vmatprep.subr.bf16.mxu0 0
        %3661 = vmatpush1.bf16.msra.mxu0 %v2386
        %3662 = vmatprep.subr.bf16.mxu0 0
        %3663 = vmatpush1.bf16.msra.mxu0 %v2395
        %3664 = vmatprep.mubr.bf16.mxu0 %v374
        %3665 = vmatmul.mubr.bf16.gmra.mrb[0].mxu0 %v373
        %v3666 = vpop.f32.mrb[0].mxu0
        %v3667 = vadd.f32 %v898, %v3666
        %v3668 = vpop.f32.mrb[0].mxu0
        %v3669 = vpop.f32.mrb[0].mxu0
        %v3670 = vadd.f32 %v898, %v3669
        %v3671 = vpop.f32.mrb[0].mxu0
        %3672 = vdwg.mxu0
        %3673 = vmatprep.subr.bf16.mxu0 0
        %3674 = vmatpush1.bf16.msra.mxu0 %v2404
        %3675 = vmatprep.subr.bf16.mxu0 0
        %3676 = vmatpush1.bf16.msra.mxu0 %v2413
        %3677 = vmatprep.subr.bf16.mxu0 0
        %3678 = vmatpush1.bf16.msra.mxu0 %v2422
        %3679 = vmatprep.subr.bf16.mxu0 0
        %3680 = vmatpush1.bf16.msra.mxu0 %v2431
        %3681 = vmatprep.subr.bf16.mxu0 0
        %3682 = vmatpush1.bf16.msra.mxu0 %v2440
        %3683 = vmatprep.subr.bf16.mxu0 0
        %3684 = vmatpush1.bf16.msra.mxu0 %v2449
        %3685 = vmatprep.subr.bf16.mxu0 0
        %3686 = vmatpush1.bf16.msra.mxu0 %v2458
        %3687 = vmatprep.subr.bf16.mxu0 0
        %3688 = vmatpush1.bf16.msra.mxu0 %v2467
        %3689 = vmatprep.subr.bf16.mxu0 0
        %3690 = vmatpush1.bf16.msra.mxu0 %v2476
        %3691 = vmatprep.subr.bf16.mxu0 0
        %3692 = vmatpush1.bf16.msra.mxu0 %v2485
        %3693 = vmatprep.subr.bf16.mxu0 0
        %3694 = vmatpush1.bf16.msra.mxu0 %v2494
        %3695 = vmatprep.subr.bf16.mxu0 0
        %3696 = vmatpush1.bf16.msra.mxu0 %v2503
        %3697 = vmatprep.subr.bf16.mxu0 0
        %3698 = vmatpush1.bf16.msra.mxu0 %v2512
        %3699 = vmatprep.subr.bf16.mxu0 0
        %3700 = vmatpush1.bf16.msra.mxu0 %v2521
        %3701 = vmatprep.subr.bf16.mxu0 0
        %3702 = vmatpush1.bf16.msra.mxu0 %v2530
        %3703 = vmatprep.subr.bf16.mxu0 0
        %3704 = vmatpush1.bf16.msra.mxu0 %v2539
        %3705 = vmatprep.mubr.bf16.mxu0 %v376
        %3706 = vmatmul.mubr.bf16.gmra.mrb[0].mxu0 %v375
        %v3707 = vpop.f32.mrb[0].mxu0
        %v3708 = vadd.f32 %v3667, %v3707
        %v3709 = vpop.f32.mrb[0].mxu0
        %v3710 = vpop.f32.mrb[0].mxu0
        %v3711 = vadd.f32 %v3670, %v3710
        %v3712 = vpop.f32.mrb[0].mxu0
        %3713 = vdwg.mxu0
        %3714 = vmatprep.subr.bf16.mxu0 0
        %3715 = vmatpush1.bf16.msra.mxu0 %v2548
        %3716 = vmatprep.subr.bf16.mxu0 0
        %3717 = vmatpush1.bf16.msra.mxu0 %v2557
        %3718 = vmatprep.subr.bf16.mxu0 0
        %3719 = vmatpush1.bf16.msra.mxu0 %v2566
        %3720 = vmatprep.subr.bf16.mxu0 0
        %3721 = vmatpush1.bf16.msra.mxu0 %v2575
        %3722 = vmatprep.subr.bf16.mxu0 0
        %3723 = vmatpush1.bf16.msra.mxu0 %v2584
        %3724 = vmatprep.subr.bf16.mxu0 0
        %3725 = vmatpush1.bf16.msra.mxu0 %v2593
        %3726 = vmatprep.subr.bf16.mxu0 0
        %3727 = vmatpush1.bf16.msra.mxu0 %v2602
        %3728 = vmatprep.subr.bf16.mxu0 0
        %3729 = vmatpush1.bf16.msra.mxu0 %v2611
        %3730 = vmatprep.subr.bf16.mxu0 0
        %3731 = vmatpush1.bf16.msra.mxu0 %v2620
        %3732 = vmatprep.subr.bf16.mxu0 0
        %3733 = vmatpush1.bf16.msra.mxu0 %v2629
        %3734 = vmatprep.subr.bf16.mxu0 0
        %3735 = vmatpush1.bf16.msra.mxu0 %v2638
        %3736 = vmatprep.subr.bf16.mxu0 0
        %3737 = vmatpush1.bf16.msra.mxu0 %v2647
        %3738 = vmatprep.subr.bf16.mxu0 0
        %3739 = vmatpush1.bf16.msra.mxu0 %v2656
        %3740 = vmatprep.subr.bf16.mxu0 0
        %3741 = vmatpush1.bf16.msra.mxu0 %v2665
        %3742 = vmatprep.subr.bf16.mxu0 0
        %3743 = vmatpush1.bf16.msra.mxu0 %v2674
        %3744 = vmatprep.subr.bf16.mxu0 0
        %3745 = vmatpush1.bf16.msra.mxu0 %v2683
        %3746 = vmatprep.mubr.bf16.mxu0 %v378
        %3747 = vmatmul.mubr.bf16.gmra.mrb[0].mxu0 %v377
        %v3748 = vpop.f32.mrb[0].mxu0
        %v3749 = vadd.f32 %v3708, %v3748
        %v3750 = vpop.f32.mrb[0].mxu0
        %v3751 = vpop.f32.mrb[0].mxu0
        %v3752 = vadd.f32 %v3711, %v3751
        %v3753 = vpop.f32.mrb[0].mxu0
        %3754 = vdwg.mxu0
        %v3755 = vld [vmem:[#allocation5] sm:$0x1]
        %v3756 = vld [vmem:[#allocation7] sm:$0x1]
        %v3758 = vlaneseq
        %v3759 = vshrl.u32 %v3758, 7
        %v3760 = vsub.s32 0, %v3759
        %v3761 = vrot.slane %v3755, %v3760
        %vm3763 = vcmask 523264
        %v3765 = vsel %vm3763, %v3237, 0
        %v3768 = vsel %vm3763, %v3241, 0
        %v3771 = vsel %vm3763, %v3368, 0
        %v3774 = vsel %vm3763, %v3372, 0
        %3776 = vmatprep.subr.mxu0 0.0
        %3777 = vmatpush1.xpose.msra.mxu0 %v3771
        %3778 = vmatprep.subr.mxu0 0.0
        %3779 = vmatpush1.xpose.msra.mxu0 %v3774
        %3780 = vmatprep.subr.mxu0 0.0
        %3781 = vmatpush1.xpose.msra.mxu0 0.0
        %3782 = vmatprep.subr.mxu0 0.0
        %3783 = vmatpush1.xpose.msra.mxu0 0.0
        %3784 = vmatprep.subr.mxu0 0.0
        %3785 = vmatpush1.xpose.msra.mxu0 0.0
        %3786 = vmatprep.subr.mxu0 0.0
        %3787 = vmatpush1.xpose.msra.mxu0 0.0
        %3788 = vmatprep.subr.mxu0 0.0
        %3789 = vmatpush1.xpose.msra.mxu0 0.0
        %3790 = vmatprep.subr.mxu0 0.0
        %3791 = vmatpush1.xpose.msra.mxu0 0.0
        %3792 = vmatprep.subr.mxu0 0.0
        %3793 = vmatpush1.xpose.msra.mxu0 0.0
        %3794 = vmatprep.subr.mxu0 0.0
        %3795 = vmatpush1.xpose.msra.mxu0 0.0
        %3796 = vmatprep.subr.mxu0 0.0
        %3797 = vmatpush1.xpose.msra.mxu0 0.0
        %3798 = vmatprep.subr.mxu0 0.0
        %3799 = vmatpush1.xpose.msra.mxu0 0.0
        %3800 = vmatprep.subr.mxu0 0.0
        %3801 = vmatpush1.xpose.msra.mxu0 0.0
        %3802 = vmatprep.subr.mxu0 0.0
        %3803 = vmatpush1.xpose.msra.mxu0 0.0
        %3804 = vmatprep.subr.mxu0 0.0
        %3805 = vmatpush1.xpose.msra.mxu0 0.0
        %3806 = vmatprep.subr.mxu0 0.0
        %3807 = vmatpush1.xpose.msra.mxu0 0.0
        %3808 = vmatprep.subr.mxu0 0.0
        %3809 = vmatpush1.xpose.msra.mxu0 0.0
        %3810 = vmatprep.subr.mxu0 0.0
        %3811 = vmatpush1.xpose.msra.mxu0 0.0
        %3812 = vmatprep.subr.mxu0 0.0
        %3813 = vmatpush1.xpose.msra.mxu0 0.0
        %3814 = vmatprep.subr.mxu0 0.0
        %3815 = vmatpush1.xpose.msra.mxu0 0.0
        %3816 = vmatprep.subr.mxu0 0.0
        %3817 = vmatpush1.xpose.msra.mxu0 0.0
        %3818 = vmatprep.subr.mxu0 0.0
        %3819 = vmatpush1.xpose.msra.mxu0 0.0
        %3820 = vmatprep.subr.mxu0 0.0
        %3821 = vmatpush1.xpose.msra.mxu0 0.0
        %3822 = vmatprep.subr.mxu0 0.0
        %3823 = vmatpush1.xpose.msra.mxu0 0.0
        %3824 = vmatprep.subr.mxu0 0.0
        %3825 = vmatpush1.xpose.msra.mxu0 0.0
        %3826 = vmatprep.subr.mxu0 0.0
        %3827 = vmatpush1.xpose.msra.mxu0 0.0
        %3828 = vmatprep.subr.mxu0 0.0
        %3829 = vmatpush1.xpose.msra.mxu0 0.0
        %3830 = vmatprep.subr.mxu0 0.0
        %3831 = vmatpush1.xpose.msra.mxu0 0.0
        %3832 = vmatprep.subr.mxu0 0.0
        %3833 = vmatpush1.xpose.msra.mxu0 0.0
        %3834 = vmatprep.subr.mxu0 0.0
        %3835 = vmatpush1.xpose.msra.mxu0 0.0
        %3836 = vmatprep.subr.mxu0 0.0
        %3837 = vmatpush1.xpose.msra.mxu0 0.0
        %3838 = vmatprep.subr.mxu0 0.0
        %3839 = vmatpush1.xpose.msra.mxu0 0.0
        %3840 = vmatprep.mubr.f32.mxu0 0.0
        %3841 = vmatmul.mubr.f32.gmra.mrb[0].mxu0 %v3765
        %v3842 = vpop.f32.mrb[0].mxu0
        %v3843 = vadd.f32 %v3761, %v3842
        %v3844 = vpop.f32.mrb[0].mxu0
        %3845 = vmatprep.mubr.f32.mxu0 0.0
        %3846 = vmatmul.mubr.f32.gmra.mrb[0].mxu0 %v3768
        %v3847 = vpop.f32.mrb[0].mxu0
        %v3848 = vadd.f32 %v3761, %v3847
        %v3849 = vpop.f32.mrb[0].mxu0
        %3850 = vdwg.mxu0
        %vm3851 = vcmask 97280
        %v3852 = vsel %vm3851, %v3843, -inf
        %3853 = vmax.xlane.f32.xlu0 %v3852
        %v3854 = vpop.xlane.xlu0 %3853
        %vm3855 = vcmask 93184
        %v3856 = vsel %vm3855, %v3848, -inf
        %3857 = vmax.xlane.f32.xlu0 %v3856
        %v3858 = vpop.xlane.xlu0 %3857
        %v3859 = vsub.f32 %v3843, %v3854
        %v3860 = vsub.f32 %v3848, %v3858
        %v3861 = vmul.f32 %v3859, 1.442695
        %v3862 = vpow.pop %v3861
        %v3863 = vmul.f32 %v3860, 1.442695
        %v3864 = vpow.pop %v3863
        %v3865 = vsel %vm3851, %v3862, 0.0
        %3866 = vadd.xlane.f32.xlu0 %v3865
        %v3867 = vpop.xlane.xlu0 %3866
        %v3868 = vsel %vm3855, %v3864, 0.0
        %3869 = vadd.xlane.f32.xlu0 %v3868
        %v3870 = vpop.xlane.xlu0 %3869
        %v3871 = vrcp.pop %v3867
        %v3872 = vrcp.pop %v3870
        %v3873 = vmul.f32 %v3862, %v3871
        %v3874 = vmul.f32 %v3864, %v3872
        %v3876 = vlaneseq
        %v3877 = vshrl.u32 %v3876, 7
        %v3878 = vsub.s32 0, %v3877
        %v3879 = vrot.slane %v3756, %v3878
        %v3881 = vmul.f32 %v3873, %v3879
        %v3882 = vmul.f32 %v3874, %v3879
        %3883 = vst.msk [vmem:[%s355] sm:$0xff] %vm3851, %v3881
        %3884 = vst.msk [vmem:[%s355 + $0x8] sm:$0xf] %vm3855, %v3882
        %v3886 = vsel %vm3851, %v3881, 0
        %v3889 = vsel %vm3851, %v3882, 0
        %vm3891 = vcmask 1043456
        %v3893 = vsel %vm3891, %v3628, 0
        %3895 = vmatprep.subr.mxu0 0.0
        %3896 = vmatpush1.msra.mxu0 %v3624
        %3897 = vmatprep.subr.mxu0 0.0
        %3898 = vmatpush1.msra.mxu0 %v3893
        %3899 = vmatprep.subr.mxu0 0.0
        %3900 = vmatpush1.msra.mxu0 0.0
        %3901 = vmatprep.subr.mxu0 0.0
        %3902 = vmatpush1.msra.mxu0 0.0
        %3903 = vmatprep.subr.mxu0 0.0
        %3904 = vmatpush1.msra.mxu0 0.0
        %3905 = vmatprep.subr.mxu0 0.0
        %3906 = vmatpush1.msra.mxu0 0.0
        %3907 = vmatprep.subr.mxu0 0.0
        %3908 = vmatpush1.msra.mxu0 0.0
        %3909 = vmatprep.subr.mxu0 0.0
        %3910 = vmatpush1.msra.mxu0 0.0
        %3911 = vmatprep.subr.mxu0 0.0
        %3912 = vmatpush1.msra.mxu0 0.0
        %3913 = vmatprep.subr.mxu0 0.0
        %3914 = vmatpush1.msra.mxu0 0.0
        %3915 = vmatprep.subr.mxu0 0.0
        %3916 = vmatpush1.msra.mxu0 0.0
        %3917 = vmatprep.subr.mxu0 0.0
        %3918 = vmatpush1.msra.mxu0 0.0
        %3919 = vmatprep.subr.mxu0 0.0
        %3920 = vmatpush1.msra.mxu0 0.0
        %3921 = vmatprep.subr.mxu0 0.0
        %3922 = vmatpush1.msra.mxu0 0.0
        %3923 = vmatprep.subr.mxu0 0.0
        %3924 = vmatpush1.msra.mxu0 0.0
        %3925 = vmatprep.subr.mxu0 0.0
        %3926 = vmatpush1.msra.mxu0 0.0
        %3927 = vmatprep.subr.mxu0 0.0
        %3928 = vmatpush1.msra.mxu0 0.0
        %3929 = vmatprep.subr.mxu0 0.0
        %3930 = vmatpush1.msra.mxu0 0.0
        %3931 = vmatprep.subr.mxu0 0.0
        %3932 = vmatpush1.msra.mxu0 0.0
        %3933 = vmatprep.subr.mxu0 0.0
        %3934 = vmatpush1.msra.mxu0 0.0
        %3935 = vmatprep.subr.mxu0 0.0
        %3936 = vmatpush1.msra.mxu0 0.0
        %3937 = vmatprep.subr.mxu0 0.0
        %3938 = vmatpush1.msra.mxu0 0.0
        %3939 = vmatprep.subr.mxu0 0.0
        %3940 = vmatpush1.msra.mxu0 0.0
        %3941 = vmatprep.subr.mxu0 0.0
        %3942 = vmatpush1.msra.mxu0 0.0
        %3943 = vmatprep.subr.mxu0 0.0
        %3944 = vmatpush1.msra.mxu0 0.0
        %3945 = vmatprep.subr.mxu0 0.0
        %3946 = vmatpush1.msra.mxu0 0.0
        %3947 = vmatprep.subr.mxu0 0.0
        %3948 = vmatpush1.msra.mxu0 0.0
        %3949 = vmatprep.subr.mxu0 0.0
        %3950 = vmatpush1.msra.mxu0 0.0
        %3951 = vmatprep.subr.mxu0 0.0
        %3952 = vmatpush1.msra.mxu0 0.0
        %3953 = vmatprep.subr.mxu0 0.0
        %3954 = vmatpush1.msra.mxu0 0.0
        %3955 = vmatprep.subr.mxu0 0.0
        %3956 = vmatpush1.msra.mxu0 0.0
        %3957 = vmatprep.subr.mxu0 0.0
        %3958 = vmatpush1.msra.mxu0 0.0
        %3959 = vmatprep.mubr.f32.mxu0 0.0
        %3960 = vmatmul.mubr.f32.gmra.mrb[0].mxu0 %v3886
        %v3961 = vpop.f32.mrb[0].mxu0
        %v3962 = vadd.f32 0.0, %v3961
        %v3963 = vpop.f32.mrb[0].mxu0
        %3964 = vmatprep.mubr.f32.mxu0 0.0
        %3965 = vmatmul.mubr.f32.gmra.mrb[0].mxu0 %v3889
        %v3966 = vpop.f32.mrb[0].mxu0
        %v3967 = vadd.f32 0.0, %v3966
        %v3968 = vpop.f32.mrb[0].mxu0
        %3969 = vdwg.mxu0
        %3970 = vrot.lane.b32.xlu0 %v3237, 64
        %v3971 = vpop.permute.xlu0 %3970
        %3972 = vrot.lane.b32.xlu0 %v3241, 64
        %v3973 = vpop.permute.xlu0 %3972
        %3974 = vrot.lane.b32.xlu0 %v3368, 64
        %v3975 = vpop.permute.xlu0 %3974
        %3976 = vrot.lane.b32.xlu0 %v3372, 64
        %v3977 = vpop.permute.xlu0 %3976
        %v3978 = vsel %vm3763, %v3971, 0
        %v3980 = vsel %vm3763, %v3973, 0
        %v3982 = vsel %vm3763, %v3975, 0
        %v3984 = vsel %vm3763, %v3977, 0
        %3986 = vmatprep.subr.mxu0 0.0
        %3987 = vmatpush1.xpose.msra.mxu0 %v3982
        %3988 = vmatprep.subr.mxu0 0.0
        %3989 = vmatpush1.xpose.msra.mxu0 %v3984
        %3990 = vmatprep.subr.mxu0 0.0
        %3991 = vmatpush1.xpose.msra.mxu0 0.0
        %3992 = vmatprep.subr.mxu0 0.0
        %3993 = vmatpush1.xpose.msra.mxu0 0.0
        %3994 = vmatprep.subr.mxu0 0.0
        %3995 = vmatpush1.xpose.msra.mxu0 0.0
        %3996 = vmatprep.subr.mxu0 0.0
        %3997 = vmatpush1.xpose.msra.mxu0 0.0
        %3998 = vmatprep.subr.mxu0 0.0
        %3999 = vmatpush1.xpose.msra.mxu0 0.0
        %4000 = vmatprep.subr.mxu0 0.0
        %4001 = vmatpush1.xpose.msra.mxu0 0.0
        %4002 = vmatprep.subr.mxu0 0.0
        %4003 = vmatpush1.xpose.msra.mxu0 0.0
        %4004 = vmatprep.subr.mxu0 0.0
        %4005 = vmatpush1.xpose.msra.mxu0 0.0
        %4006 = vmatprep.subr.mxu0 0.0
        %4007 = vmatpush1.xpose.msra.mxu0 0.0
        %4008 = vmatprep.subr.mxu0 0.0
        %4009 = vmatpush1.xpose.msra.mxu0 0.0
        %4010 = vmatprep.subr.mxu0 0.0
        %4011 = vmatpush1.xpose.msra.mxu0 0.0
        %4012 = vmatprep.subr.mxu0 0.0
        %4013 = vmatpush1.xpose.msra.mxu0 0.0
        %4014 = vmatprep.subr.mxu0 0.0
        %4015 = vmatpush1.xpose.msra.mxu0 0.0
        %4016 = vmatprep.subr.mxu0 0.0
        %4017 = vmatpush1.xpose.msra.mxu0 0.0
        %4018 = vmatprep.subr.mxu0 0.0
        %4019 = vmatpush1.xpose.msra.mxu0 0.0
        %4020 = vmatprep.subr.mxu0 0.0
        %4021 = vmatpush1.xpose.msra.mxu0 0.0
        %4022 = vmatprep.subr.mxu0 0.0
        %4023 = vmatpush1.xpose.msra.mxu0 0.0
        %4024 = vmatprep.subr.mxu0 0.0
        %4025 = vmatpush1.xpose.msra.mxu0 0.0
        %4026 = vmatprep.subr.mxu0 0.0
        %4027 = vmatpush1.xpose.msra.mxu0 0.0
        %4028 = vmatprep.subr.mxu0 0.0
        %4029 = vmatpush1.xpose.msra.mxu0 0.0
        %4030 = vmatprep.subr.mxu0 0.0
        %4031 = vmatpush1.xpose.msra.mxu0 0.0
        %4032 = vmatprep.subr.mxu0 0.0
        %4033 = vmatpush1.xpose.msra.mxu0 0.0
        %4034 = vmatprep.subr.mxu0 0.0
        %4035 = vmatpush1.xpose.msra.mxu0 0.0
        %4036 = vmatprep.subr.mxu0 0.0
        %4037 = vmatpush1.xpose.msra.mxu0 0.0
        %4038 = vmatprep.subr.mxu0 0.0
        %4039 = vmatpush1.xpose.msra.mxu0 0.0
        %4040 = vmatprep.subr.mxu0 0.0
        %4041 = vmatpush1.xpose.msra.mxu0 0.0
        %4042 = vmatprep.subr.mxu0 0.0
        %4043 = vmatpush1.xpose.msra.mxu0 0.0
        %4044 = vmatprep.subr.mxu0 0.0
        %4045 = vmatpush1.xpose.msra.mxu0 0.0
        %4046 = vmatprep.subr.mxu0 0.0
        %4047 = vmatpush1.xpose.msra.mxu0 0.0
        %4048 = vmatprep.subr.mxu0 0.0
        %4049 = vmatpush1.xpose.msra.mxu0 0.0
        %4050 = vmatprep.mubr.f32.mxu0 0.0
        %4051 = vmatmul.mubr.f32.gmra.mrb[0].mxu0 %v3978
        %v4052 = vpop.f32.mrb[0].mxu0
        %v4053 = vadd.f32 %v3761, %v4052
        %v4054 = vpop.f32.mrb[0].mxu0
        %4055 = vmatprep.mubr.f32.mxu0 0.0
        %4056 = vmatmul.mubr.f32.gmra.mrb[0].mxu0 %v3980
        %v4057 = vpop.f32.mrb[0].mxu0
        %v4058 = vadd.f32 %v3761, %v4057
        %v4059 = vpop.f32.mrb[0].mxu0
        %4060 = vdwg.mxu0
        %v4061 = vsel %vm3851, %v4053, -inf
        %4062 = vmax.xlane.f32.xlu0 %v4061
        %v4063 = vpop.xlane.xlu0 %4062
        %v4064 = vsel %vm3855, %v4058, -inf
        %4065 = vmax.xlane.f32.xlu0 %v4064
        %v4066 = vpop.xlane.xlu0 %4065
        %v4067 = vsub.f32 %v4053, %v4063
        %v4068 = vsub.f32 %v4058, %v4066
        %v4069 = vmul.f32 %v4067, 1.442695
        %v4070 = vpow.pop %v4069
        %v4071 = vmul.f32 %v4068, 1.442695
        %v4072 = vpow.pop %v4071
        %v4073 = vsel %vm3851, %v4070, 0.0
        %4074 = vadd.xlane.f32.xlu0 %v4073
        %v4075 = vpop.xlane.xlu0 %4074
        %v4076 = vsel %vm3855, %v4072, 0.0
        %4077 = vadd.xlane.f32.xlu0 %v4076
        %v4078 = vpop.xlane.xlu0 %4077
        %v4079 = vrcp.pop %v4075
        %v4080 = vrcp.pop %v4078
        %v4081 = vmul.f32 %v4070, %v4079
        %v4082 = vmul.f32 %v4072, %v4080
        %v4083 = vmul.f32 %v4081, %v3879
        %v4084 = vmul.f32 %v4082, %v3879
        %s4085 = scalar_lea.vmem %s355, 16 [#allocation12]
        %4086 = vst.msk [vmem:[%s4085] sm:$0xff] %vm3851, %v4083
        %4087 = vst.msk [vmem:[%s4085 + $0x8] sm:$0xf] %vm3855, %v4084
        %4089 = vrot.lane.b32.xlu0 %v3624, 64
        %v4090 = vpop.permute.xlu0 %4089
        %4091 = vrot.lane.b32.xlu0 %v3628, 64
        %v4092 = vpop.permute.xlu0 %4091
        %v4095 = vsel %vm3851, %v4083, 0
        %v4098 = vsel %vm3851, %v4084, 0
        %v4100 = vsel %vm3891, %v4092, 0
        %4102 = vmatprep.subr.mxu0 0.0
        %4103 = vmatpush1.msra.mxu0 %v4090
        %4104 = vmatprep.subr.mxu0 0.0
        %4105 = vmatpush1.msra.mxu0 %v4100
        %4106 = vmatprep.subr.mxu0 0.0
        %4107 = vmatpush1.msra.mxu0 0.0
        %4108 = vmatprep.subr.mxu0 0.0
        %4109 = vmatpush1.msra.mxu0 0.0
        %4110 = vmatprep.subr.mxu0 0.0
        %4111 = vmatpush1.msra.mxu0 0.0
        %4112 = vmatprep.subr.mxu0 0.0
        %4113 = vmatpush1.msra.mxu0 0.0
        %4114 = vmatprep.subr.mxu0 0.0
        %4115 = vmatpush1.msra.mxu0 0.0
        %4116 = vmatprep.subr.mxu0 0.0
        %4117 = vmatpush1.msra.mxu0 0.0
        %4118 = vmatprep.subr.mxu0 0.0
        %4119 = vmatpush1.msra.mxu0 0.0
        %4120 = vmatprep.subr.mxu0 0.0
        %4121 = vmatpush1.msra.mxu0 0.0
        %4122 = vmatprep.subr.mxu0 0.0
        %4123 = vmatpush1.msra.mxu0 0.0
        %4124 = vmatprep.subr.mxu0 0.0
        %4125 = vmatpush1.msra.mxu0 0.0
        %4126 = vmatprep.subr.mxu0 0.0
        %4127 = vmatpush1.msra.mxu0 0.0
        %4128 = vmatprep.subr.mxu0 0.0
        %4129 = vmatpush1.msra.mxu0 0.0
        %4130 = vmatprep.subr.mxu0 0.0
        %4131 = vmatpush1.msra.mxu0 0.0
        %4132 = vmatprep.subr.mxu0 0.0
        %4133 = vmatpush1.msra.mxu0 0.0
        %4134 = vmatprep.subr.mxu0 0.0
        %4135 = vmatpush1.msra.mxu0 0.0
        %4136 = vmatprep.subr.mxu0 0.0
        %4137 = vmatpush1.msra.mxu0 0.0
        %4138 = vmatprep.subr.mxu0 0.0
        %4139 = vmatpush1.msra.mxu0 0.0
        %4140 = vmatprep.subr.mxu0 0.0
        %4141 = vmatpush1.msra.mxu0 0.0
        %4142 = vmatprep.subr.mxu0 0.0
        %4143 = vmatpush1.msra.mxu0 0.0
        %4144 = vmatprep.subr.mxu0 0.0
        %4145 = vmatpush1.msra.mxu0 0.0
        %4146 = vmatprep.subr.mxu0 0.0
        %4147 = vmatpush1.msra.mxu0 0.0
        %4148 = vmatprep.subr.mxu0 0.0
        %4149 = vmatpush1.msra.mxu0 0.0
        %4150 = vmatprep.subr.mxu0 0.0
        %4151 = vmatpush1.msra.mxu0 0.0
        %4152 = vmatprep.subr.mxu0 0.0
        %4153 = vmatpush1.msra.mxu0 0.0
        %4154 = vmatprep.subr.mxu0 0.0
        %4155 = vmatpush1.msra.mxu0 0.0
        %4156 = vmatprep.subr.mxu0 0.0
        %4157 = vmatpush1.msra.mxu0 0.0
        %4158 = vmatprep.subr.mxu0 0.0
        %4159 = vmatpush1.msra.mxu0 0.0
        %4160 = vmatprep.subr.mxu0 0.0
        %4161 = vmatpush1.msra.mxu0 0.0
        %4162 = vmatprep.subr.mxu0 0.0
        %4163 = vmatpush1.msra.mxu0 0.0
        %4164 = vmatprep.subr.mxu0 0.0
        %4165 = vmatpush1.msra.mxu0 0.0
        %4166 = vmatprep.mubr.f32.mxu0 0.0
        %4167 = vmatmul.mubr.f32.gmra.mrb[0].mxu0 %v4095
        %v4168 = vpop.f32.mrb[0].mxu0
        %v4169 = vadd.f32 0.0, %v4168
        %v4170 = vpop.f32.mrb[0].mxu0
        %4171 = vmatprep.mubr.f32.mxu0 0.0
        %4172 = vmatmul.mubr.f32.gmra.mrb[0].mxu0 %v4098
        %v4173 = vpop.f32.mrb[0].mxu0
        %v4174 = vadd.f32 0.0, %v4173
        %v4175 = vpop.f32.mrb[0].mxu0
        %4176 = vdwg.mxu0
        %v4178 = vsel %vm3763, %v3239, 0
        %v4181 = vsel %vm3763, %v3243, 0
        %v4184 = vsel %vm3763, %v3495, 0
        %v4187 = vsel %vm3763, %v3499, 0
        %4189 = vmatprep.subr.mxu0 0.0
        %4190 = vmatpush1.xpose.msra.mxu0 %v4184
        %4191 = vmatprep.subr.mxu0 0.0
        %4192 = vmatpush1.xpose.msra.mxu0 %v4187
        %4193 = vmatprep.subr.mxu0 0.0
        %4194 = vmatpush1.xpose.msra.mxu0 0.0
        %4195 = vmatprep.subr.mxu0 0.0
        %4196 = vmatpush1.xpose.msra.mxu0 0.0
        %4197 = vmatprep.subr.mxu0 0.0
        %4198 = vmatpush1.xpose.msra.mxu0 0.0
        %4199 = vmatprep.subr.mxu0 0.0
        %4200 = vmatpush1.xpose.msra.mxu0 0.0
        %4201 = vmatprep.subr.mxu0 0.0
        %4202 = vmatpush1.xpose.msra.mxu0 0.0
        %4203 = vmatprep.subr.mxu0 0.0
        %4204 = vmatpush1.xpose.msra.mxu0 0.0
        %4205 = vmatprep.subr.mxu0 0.0
        %4206 = vmatpush1.xpose.msra.mxu0 0.0
        %4207 = vmatprep.subr.mxu0 0.0
        %4208 = vmatpush1.xpose.msra.mxu0 0.0
        %4209 = vmatprep.subr.mxu0 0.0
        %4210 = vmatpush1.xpose.msra.mxu0 0.0
        %4211 = vmatprep.subr.mxu0 0.0
        %4212 = vmatpush1.xpose.msra.mxu0 0.0
        %4213 = vmatprep.subr.mxu0 0.0
        %4214 = vmatpush1.xpose.msra.mxu0 0.0
        %4215 = vmatprep.subr.mxu0 0.0
        %4216 = vmatpush1.xpose.msra.mxu0 0.0
        %4217 = vmatprep.subr.mxu0 0.0
        %4218 = vmatpush1.xpose.msra.mxu0 0.0
        %4219 = vmatprep.subr.mxu0 0.0
        %4220 = vmatpush1.xpose.msra.mxu0 0.0
        %4221 = vmatprep.subr.mxu0 0.0
        %4222 = vmatpush1.xpose.msra.mxu0 0.0
        %4223 = vmatprep.subr.mxu0 0.0
        %4224 = vmatpush1.xpose.msra.mxu0 0.0
        %4225 = vmatprep.subr.mxu0 0.0
        %4226 = vmatpush1.xpose.msra.mxu0 0.0
        %4227 = vmatprep.subr.mxu0 0.0
        %4228 = vmatpush1.xpose.msra.mxu0 0.0
        %4229 = vmatprep.subr.mxu0 0.0
        %4230 = vmatpush1.xpose.msra.mxu0 0.0
        %4231 = vmatprep.subr.mxu0 0.0
        %4232 = vmatpush1.xpose.msra.mxu0 0.0
        %4233 = vmatprep.subr.mxu0 0.0
        %4234 = vmatpush1.xpose.msra.mxu0 0.0
        %4235 = vmatprep.subr.mxu0 0.0
        %4236 = vmatpush1.xpose.msra.mxu0 0.0
        %4237 = vmatprep.subr.mxu0 0.0
        %4238 = vmatpush1.xpose.msra.mxu0 0.0
        %4239 = vmatprep.subr.mxu0 0.0
        %4240 = vmatpush1.xpose.msra.mxu0 0.0
        %4241 = vmatprep.subr.mxu0 0.0
        %4242 = vmatpush1.xpose.msra.mxu0 0.0
        %4243 = vmatprep.subr.mxu0 0.0
        %4244 = vmatpush1.xpose.msra.mxu0 0.0
        %4245 = vmatprep.subr.mxu0 0.0
        %4246 = vmatpush1.xpose.msra.mxu0 0.0
        %4247 = vmatprep.subr.mxu0 0.0
        %4248 = vmatpush1.xpose.msra.mxu0 0.0
        %4249 = vmatprep.subr.mxu0 0.0
        %4250 = vmatpush1.xpose.msra.mxu0 0.0
        %4251 = vmatprep.subr.mxu0 0.0
        %4252 = vmatpush1.xpose.msra.mxu0 0.0
        %4253 = vmatprep.mubr.f32.mxu0 0.0
        %4254 = vmatmul.mubr.f32.gmra.mrb[0].mxu0 %v4178
        %v4255 = vpop.f32.mrb[0].mxu0
        %v4256 = vadd.f32 %v3761, %v4255
        %v4257 = vpop.f32.mrb[0].mxu0
        %4258 = vmatprep.mubr.f32.mxu0 0.0
        %4259 = vmatmul.mubr.f32.gmra.mrb[0].mxu0 %v4181
        %v4260 = vpop.f32.mrb[0].mxu0
        %v4261 = vadd.f32 %v3761, %v4260
        %v4262 = vpop.f32.mrb[0].mxu0
        %4263 = vdwg.mxu0
        %v4264 = vsel %vm3851, %v4256, -inf
        %4265 = vmax.xlane.f32.xlu0 %v4264
        %v4266 = vpop.xlane.xlu0 %4265
        %v4267 = vsel %vm3855, %v4261, -inf
        %4268 = vmax.xlane.f32.xlu0 %v4267
        %v4269 = vpop.xlane.xlu0 %4268
        %v4270 = vsub.f32 %v4256, %v4266
        %v4271 = vsub.f32 %v4261, %v4269
        %v4272 = vmul.f32 %v4270, 1.442695
        %v4273 = vpow.pop %v4272
        %v4274 = vmul.f32 %v4271, 1.442695
        %v4275 = vpow.pop %v4274
        %v4276 = vsel %vm3851, %v4273, 0.0
        %4277 = vadd.xlane.f32.xlu0 %v4276
        %v4278 = vpop.xlane.xlu0 %4277
        %v4279 = vsel %vm3855, %v4275, 0.0
        %4280 = vadd.xlane.f32.xlu0 %v4279
        %v4281 = vpop.xlane.xlu0 %4280
        %v4282 = vrcp.pop %v4278
        %v4283 = vrcp.pop %v4281
        %v4284 = vmul.f32 %v4273, %v4282
        %v4285 = vmul.f32 %v4275, %v4283
        %v4286 = vmul.f32 %v4284, %v3879
        %v4287 = vmul.f32 %v4285, %v3879
        %s4288 = scalar_lea.vmem %s355, 32 [#allocation12]
        %4289 = vst.msk [vmem:[%s4288] sm:$0xff] %vm3851, %v4286
        %4290 = vst.msk [vmem:[%s4288 + $0x8] sm:$0xf] %vm3855, %v4287
        %v4292 = vsel %vm3851, %v4286, 0
        %v4295 = vsel %vm3851, %v4287, 0
        %v4298 = vsel %vm3891, %v3630, 0
        %4300 = vmatprep.subr.mxu0 0.0
        %4301 = vmatpush1.msra.mxu0 %v3626
        %4302 = vmatprep.subr.mxu0 0.0
        %4303 = vmatpush1.msra.mxu0 %v4298
        %4304 = vmatprep.subr.mxu0 0.0
        %4305 = vmatpush1.msra.mxu0 0.0
        %4306 = vmatprep.subr.mxu0 0.0
        %4307 = vmatpush1.msra.mxu0 0.0
        %4308 = vmatprep.subr.mxu0 0.0
        %4309 = vmatpush1.msra.mxu0 0.0
        %4310 = vmatprep.subr.mxu0 0.0
        %4311 = vmatpush1.msra.mxu0 0.0
        %4312 = vmatprep.subr.mxu0 0.0
        %4313 = vmatpush1.msra.mxu0 0.0
        %4314 = vmatprep.subr.mxu0 0.0
        %4315 = vmatpush1.msra.mxu0 0.0
        %4316 = vmatprep.subr.mxu0 0.0
        %4317 = vmatpush1.msra.mxu0 0.0
        %4318 = vmatprep.subr.mxu0 0.0
        %4319 = vmatpush1.msra.mxu0 0.0
        %4320 = vmatprep.subr.mxu0 0.0
        %4321 = vmatpush1.msra.mxu0 0.0
        %4322 = vmatprep.subr.mxu0 0.0
        %4323 = vmatpush1.msra.mxu0 0.0
        %4324 = vmatprep.subr.mxu0 0.0
        %4325 = vmatpush1.msra.mxu0 0.0
        %4326 = vmatprep.subr.mxu0 0.0
        %4327 = vmatpush1.msra.mxu0 0.0
        %4328 = vmatprep.subr.mxu0 0.0
        %4329 = vmatpush1.msra.mxu0 0.0
        %4330 = vmatprep.subr.mxu0 0.0
        %4331 = vmatpush1.msra.mxu0 0.0
        %4332 = vmatprep.subr.mxu0 0.0
        %4333 = vmatpush1.msra.mxu0 0.0
        %4334 = vmatprep.subr.mxu0 0.0
        %4335 = vmatpush1.msra.mxu0 0.0
        %4336 = vmatprep.subr.mxu0 0.0
        %4337 = vmatpush1.msra.mxu0 0.0
        %4338 = vmatprep.subr.mxu0 0.0
        %4339 = vmatpush1.msra.mxu0 0.0
        %4340 = vmatprep.subr.mxu0 0.0
        %4341 = vmatpush1.msra.mxu0 0.0
        %4342 = vmatprep.subr.mxu0 0.0
        %4343 = vmatpush1.msra.mxu0 0.0
        %4344 = vmatprep.subr.mxu0 0.0
        %4345 = vmatpush1.msra.mxu0 0.0
        %4346 = vmatprep.subr.mxu0 0.0
        %4347 = vmatpush1.msra.mxu0 0.0
        %4348 = vmatprep.subr.mxu0 0.0
        %4349 = vmatpush1.msra.mxu0 0.0
        %4350 = vmatprep.subr.mxu0 0.0
        %4351 = vmatpush1.msra.mxu0 0.0
        %4352 = vmatprep.subr.mxu0 0.0
        %4353 = vmatpush1.msra.mxu0 0.0
        %4354 = vmatprep.subr.mxu0 0.0
        %4355 = vmatpush1.msra.mxu0 0.0
        %4356 = vmatprep.subr.mxu0 0.0
        %4357 = vmatpush1.msra.mxu0 0.0
        %4358 = vmatprep.subr.mxu0 0.0
        %4359 = vmatpush1.msra.mxu0 0.0
        %4360 = vmatprep.subr.mxu0 0.0
        %4361 = vmatpush1.msra.mxu0 0.0
        %4362 = vmatprep.subr.mxu0 0.0
        %4363 = vmatpush1.msra.mxu0 0.0
        %4364 = vmatprep.mubr.f32.mxu0 0.0
        %4365 = vmatmul.mubr.f32.gmra.mrb[0].mxu0 %v4292
        %v4366 = vpop.f32.mrb[0].mxu0
        %v4367 = vadd.f32 0.0, %v4366
        %v4368 = vpop.f32.mrb[0].mxu0
        %4369 = vmatprep.mubr.f32.mxu0 0.0
        %4370 = vmatmul.mubr.f32.gmra.mrb[0].mxu0 %v4295
        %v4371 = vpop.f32.mrb[0].mxu0
        %v4372 = vadd.f32 0.0, %v4371
        %v4373 = vpop.f32.mrb[0].mxu0
        %4374 = vdwg.mxu0
        %4375 = vrot.lane.b32.xlu0 %v3239, 64
        %v4376 = vpop.permute.xlu0 %4375
        %4377 = vrot.lane.b32.xlu0 %v3243, 64
        %v4378 = vpop.permute.xlu0 %4377
        %4379 = vrot.lane.b32.xlu0 %v3495, 64
        %v4380 = vpop.permute.xlu0 %4379
        %4381 = vrot.lane.b32.xlu0 %v3499, 64
        %v4382 = vpop.permute.xlu0 %4381
        %v4383 = vsel %vm3763, %v4376, 0
        %v4385 = vsel %vm3763, %v4378, 0
        %v4387 = vsel %vm3763, %v4380, 0
        %v4389 = vsel %vm3763, %v4382, 0
        %4391 = vmatprep.subr.mxu0 0.0
        %4392 = vmatpush1.xpose.msra.mxu0 %v4387
        %4393 = vmatprep.subr.mxu0 0.0
        %4394 = vmatpush1.xpose.msra.mxu0 %v4389
        %4395 = vmatprep.subr.mxu0 0.0
        %4396 = vmatpush1.xpose.msra.mxu0 0.0
        %4397 = vmatprep.subr.mxu0 0.0
        %4398 = vmatpush1.xpose.msra.mxu0 0.0
        %4399 = vmatprep.subr.mxu0 0.0
        %4400 = vmatpush1.xpose.msra.mxu0 0.0
        %4401 = vmatprep.subr.mxu0 0.0
        %4402 = vmatpush1.xpose.msra.mxu0 0.0
        %4403 = vmatprep.subr.mxu0 0.0
        %4404 = vmatpush1.xpose.msra.mxu0 0.0
        %4405 = vmatprep.subr.mxu0 0.0
        %4406 = vmatpush1.xpose.msra.mxu0 0.0
        %4407 = vmatprep.subr.mxu0 0.0
        %4408 = vmatpush1.xpose.msra.mxu0 0.0
        %4409 = vmatprep.subr.mxu0 0.0
        %4410 = vmatpush1.xpose.msra.mxu0 0.0
        %4411 = vmatprep.subr.mxu0 0.0
        %4412 = vmatpush1.xpose.msra.mxu0 0.0
        %4413 = vmatprep.subr.mxu0 0.0
        %4414 = vmatpush1.xpose.msra.mxu0 0.0
        %4415 = vmatprep.subr.mxu0 0.0
        %4416 = vmatpush1.xpose.msra.mxu0 0.0
        %4417 = vmatprep.subr.mxu0 0.0
        %4418 = vmatpush1.xpose.msra.mxu0 0.0
        %4419 = vmatprep.subr.mxu0 0.0
        %4420 = vmatpush1.xpose.msra.mxu0 0.0
        %4421 = vmatprep.subr.mxu0 0.0
        %4422 = vmatpush1.xpose.msra.mxu0 0.0
        %4423 = vmatprep.subr.mxu0 0.0
        %4424 = vmatpush1.xpose.msra.mxu0 0.0
        %4425 = vmatprep.subr.mxu0 0.0
        %4426 = vmatpush1.xpose.msra.mxu0 0.0
        %4427 = vmatprep.subr.mxu0 0.0
        %4428 = vmatpush1.xpose.msra.mxu0 0.0
        %4429 = vmatprep.subr.mxu0 0.0
        %4430 = vmatpush1.xpose.msra.mxu0 0.0
        %4431 = vmatprep.subr.mxu0 0.0
        %4432 = vmatpush1.xpose.msra.mxu0 0.0
        %4433 = vmatprep.subr.mxu0 0.0
        %4434 = vmatpush1.xpose.msra.mxu0 0.0
        %4435 = vmatprep.subr.mxu0 0.0
        %4436 = vmatpush1.xpose.msra.mxu0 0.0
        %4437 = vmatprep.subr.mxu0 0.0
        %4438 = vmatpush1.xpose.msra.mxu0 0.0
        %4439 = vmatprep.subr.mxu0 0.0
        %4440 = vmatpush1.xpose.msra.mxu0 0.0
        %4441 = vmatprep.subr.mxu0 0.0
        %4442 = vmatpush1.xpose.msra.mxu0 0.0
        %4443 = vmatprep.subr.mxu0 0.0
        %4444 = vmatpush1.xpose.msra.mxu0 0.0
        %4445 = vmatprep.subr.mxu0 0.0
        %4446 = vmatpush1.xpose.msra.mxu0 0.0
        %4447 = vmatprep.subr.mxu0 0.0
        %4448 = vmatpush1.xpose.msra.mxu0 0.0
        %4449 = vmatprep.subr.mxu0 0.0
        %4450 = vmatpush1.xpose.msra.mxu0 0.0
        %4451 = vmatprep.subr.mxu0 0.0
        %4452 = vmatpush1.xpose.msra.mxu0 0.0
        %4453 = vmatprep.subr.mxu0 0.0
        %4454 = vmatpush1.xpose.msra.mxu0 0.0
        %4455 = vmatprep.mubr.f32.mxu0 0.0
        %4456 = vmatmul.mubr.f32.gmra.mrb[0].mxu0 %v4383
        %v4457 = vpop.f32.mrb[0].mxu0
        %v4458 = vadd.f32 %v3761, %v4457
        %v4459 = vpop.f32.mrb[0].mxu0
        %4460 = vmatprep.mubr.f32.mxu0 0.0
        %4461 = vmatmul.mubr.f32.gmra.mrb[0].mxu0 %v4385
        %v4462 = vpop.f32.mrb[0].mxu0
        %v4463 = vadd.f32 %v3761, %v4462
        %v4464 = vpop.f32.mrb[0].mxu0
        %4465 = vdwg.mxu0
        %v4466 = vsel %vm3851, %v4458, -inf
        %4467 = vmax.xlane.f32.xlu0 %v4466
        %v4468 = vpop.xlane.xlu0 %4467
        %v4469 = vsel %vm3855, %v4463, -inf
        %4470 = vmax.xlane.f32.xlu0 %v4469
        %v4471 = vpop.xlane.xlu0 %4470
        %v4472 = vsub.f32 %v4458, %v4468
        %v4473 = vsub.f32 %v4463, %v4471
        %v4474 = vmul.f32 %v4472, 1.442695
        %v4475 = vpow.pop %v4474
        %v4476 = vmul.f32 %v4473, 1.442695
        %v4477 = vpow.pop %v4476
        %v4478 = vsel %vm3851, %v4475, 0.0
        %4479 = vadd.xlane.f32.xlu0 %v4478
        %v4480 = vpop.xlane.xlu0 %4479
        %v4481 = vsel %vm3855, %v4477, 0.0
        %4482 = vadd.xlane.f32.xlu0 %v4481
        %v4483 = vpop.xlane.xlu0 %4482
        %v4484 = vrcp.pop %v4480
        %v4485 = vrcp.pop %v4483
        %v4486 = vmul.f32 %v4475, %v4484
        %v4487 = vmul.f32 %v4477, %v4485
        %v4488 = vmul.f32 %v4486, %v3879
        %v4489 = vmul.f32 %v4487, %v3879
        %s4490 = scalar_lea.vmem %s355, 48 [#allocation12]
        %4491 = vst.msk [vmem:[%s4490] sm:$0xff] %vm3851, %v4488
        %4492 = vst.msk [vmem:[%s4490 + $0x8] sm:$0xf] %vm3855, %v4489
        %4494 = vrot.lane.b32.xlu0 %v3626, 64
        %v4495 = vpop.permute.xlu0 %4494
        %4496 = vrot.lane.b32.xlu0 %v3630, 64
        %v4497 = vpop.permute.xlu0 %4496
        %v4500 = vsel %vm3851, %v4488, 0
        %v4503 = vsel %vm3851, %v4489, 0
        %v4505 = vsel %vm3891, %v4497, 0
        %4507 = vmatprep.subr.mxu0 0.0
        %4508 = vmatpush1.msra.mxu0 %v4495
        %4509 = vmatprep.subr.mxu0 0.0
        %4510 = vmatpush1.msra.mxu0 %v4505
        %4511 = vmatprep.subr.mxu0 0.0
        %4512 = vmatpush1.msra.mxu0 0.0
        %4513 = vmatprep.subr.mxu0 0.0
        %4514 = vmatpush1.msra.mxu0 0.0
        %4515 = vmatprep.subr.mxu0 0.0
        %4516 = vmatpush1.msra.mxu0 0.0
        %4517 = vmatprep.subr.mxu0 0.0
        %4518 = vmatpush1.msra.mxu0 0.0
        %4519 = vmatprep.subr.mxu0 0.0
        %4520 = vmatpush1.msra.mxu0 0.0
        %4521 = vmatprep.subr.mxu0 0.0
        %4522 = vmatpush1.msra.mxu0 0.0
        %4523 = vmatprep.subr.mxu0 0.0
        %4524 = vmatpush1.msra.mxu0 0.0
        %4525 = vmatprep.subr.mxu0 0.0
        %4526 = vmatpush1.msra.mxu0 0.0
        %4527 = vmatprep.subr.mxu0 0.0
        %4528 = vmatpush1.msra.mxu0 0.0
        %4529 = vmatprep.subr.mxu0 0.0
        %4530 = vmatpush1.msra.mxu0 0.0
        %4531 = vmatprep.subr.mxu0 0.0
        %4532 = vmatpush1.msra.mxu0 0.0
        %4533 = vmatprep.subr.mxu0 0.0
        %4534 = vmatpush1.msra.mxu0 0.0
        %4535 = vmatprep.subr.mxu0 0.0
        %4536 = vmatpush1.msra.mxu0 0.0
        %4537 = vmatprep.subr.mxu0 0.0
        %4538 = vmatpush1.msra.mxu0 0.0
        %4539 = vmatprep.subr.mxu0 0.0
        %4540 = vmatpush1.msra.mxu0 0.0
        %4541 = vmatprep.subr.mxu0 0.0
        %4542 = vmatpush1.msra.mxu0 0.0
        %4543 = vmatprep.subr.mxu0 0.0
        %4544 = vmatpush1.msra.mxu0 0.0
        %4545 = vmatprep.subr.mxu0 0.0
        %4546 = vmatpush1.msra.mxu0 0.0
        %4547 = vmatprep.subr.mxu0 0.0
        %4548 = vmatpush1.msra.mxu0 0.0
        %4549 = vmatprep.subr.mxu0 0.0
        %4550 = vmatpush1.msra.mxu0 0.0
        %4551 = vmatprep.subr.mxu0 0.0
        %4552 = vmatpush1.msra.mxu0 0.0
        %4553 = vmatprep.subr.mxu0 0.0
        %4554 = vmatpush1.msra.mxu0 0.0
        %4555 = vmatprep.subr.mxu0 0.0
        %4556 = vmatpush1.msra.mxu0 0.0
        %4557 = vmatprep.subr.mxu0 0.0
        %4558 = vmatpush1.msra.mxu0 0.0
        %4559 = vmatprep.subr.mxu0 0.0
        %4560 = vmatpush1.msra.mxu0 0.0
        %4561 = vmatprep.subr.mxu0 0.0
        %4562 = vmatpush1.msra.mxu0 0.0
        %4563 = vmatprep.subr.mxu0 0.0
        %4564 = vmatpush1.msra.mxu0 0.0
        %4565 = vmatprep.subr.mxu0 0.0
        %4566 = vmatpush1.msra.mxu0 0.0
        %4567 = vmatprep.subr.mxu0 0.0
        %4568 = vmatpush1.msra.mxu0 0.0
        %4569 = vmatprep.subr.mxu0 0.0
        %4570 = vmatpush1.msra.mxu0 0.0
        %4571 = vmatprep.mubr.f32.mxu0 0.0
        %4572 = vmatmul.mubr.f32.gmra.mrb[0].mxu0 %v4500
        %v4573 = vpop.f32.mrb[0].mxu0
        %v4574 = vadd.f32 0.0, %v4573
        %v4575 = vpop.f32.mrb[0].mxu0
        %4576 = vmatprep.mubr.f32.mxu0 0.0
        %4577 = vmatmul.mubr.f32.gmra.mrb[0].mxu0 %v4503
        %v4578 = vpop.f32.mrb[0].mxu0
        %v4579 = vadd.f32 0.0, %v4578
        %v4580 = vpop.f32.mrb[0].mxu0
        %4581 = vdwg.mxu0
        %v4583 = vsel %vm3763, %v3366, 0
        %v4586 = vsel %vm3763, %v3370, 0
        %v4589 = vsel %vm3763, %v3497, 0
        %v4592 = vsel %vm3763, %v3501, 0
        %4594 = vmatprep.subr.mxu0 0.0
        %4595 = vmatpush1.xpose.msra.mxu0 %v4589
        %4596 = vmatprep.subr.mxu0 0.0
        %4597 = vmatpush1.xpose.msra.mxu0 %v4592
        %4598 = vmatprep.subr.mxu0 0.0
        %4599 = vmatpush1.xpose.msra.mxu0 0.0
        %4600 = vmatprep.subr.mxu0 0.0
        %4601 = vmatpush1.xpose.msra.mxu0 0.0
        %4602 = vmatprep.subr.mxu0 0.0
        %4603 = vmatpush1.xpose.msra.mxu0 0.0
        %4604 = vmatprep.subr.mxu0 0.0
        %4605 = vmatpush1.xpose.msra.mxu0 0.0
        %4606 = vmatprep.subr.mxu0 0.0
        %4607 = vmatpush1.xpose.msra.mxu0 0.0
        %4608 = vmatprep.subr.mxu0 0.0
        %4609 = vmatpush1.xpose.msra.mxu0 0.0
        %4610 = vmatprep.subr.mxu0 0.0
        %4611 = vmatpush1.xpose.msra.mxu0 0.0
        %4612 = vmatprep.subr.mxu0 0.0
        %4613 = vmatpush1.xpose.msra.mxu0 0.0
        %4614 = vmatprep.subr.mxu0 0.0
        %4615 = vmatpush1.xpose.msra.mxu0 0.0
        %4616 = vmatprep.subr.mxu0 0.0
        %4617 = vmatpush1.xpose.msra.mxu0 0.0
        %4618 = vmatprep.subr.mxu0 0.0
        %4619 = vmatpush1.xpose.msra.mxu0 0.0
        %4620 = vmatprep.subr.mxu0 0.0
        %4621 = vmatpush1.xpose.msra.mxu0 0.0
        %4622 = vmatprep.subr.mxu0 0.0
        %4623 = vmatpush1.xpose.msra.mxu0 0.0
        %4624 = vmatprep.subr.mxu0 0.0
        %4625 = vmatpush1.xpose.msra.mxu0 0.0
        %4626 = vmatprep.subr.mxu0 0.0
        %4627 = vmatpush1.xpose.msra.mxu0 0.0
        %4628 = vmatprep.subr.mxu0 0.0
        %4629 = vmatpush1.xpose.msra.mxu0 0.0
        %4630 = vmatprep.subr.mxu0 0.0
        %4631 = vmatpush1.xpose.msra.mxu0 0.0
        %4632 = vmatprep.subr.mxu0 0.0
        %4633 = vmatpush1.xpose.msra.mxu0 0.0
        %4634 = vmatprep.subr.mxu0 0.0
        %4635 = vmatpush1.xpose.msra.mxu0 0.0
        %4636 = vmatprep.subr.mxu0 0.0
        %4637 = vmatpush1.xpose.msra.mxu0 0.0
        %4638 = vmatprep.subr.mxu0 0.0
        %4639 = vmatpush1.xpose.msra.mxu0 0.0
        %4640 = vmatprep.subr.mxu0 0.0
        %4641 = vmatpush1.xpose.msra.mxu0 0.0
        %4642 = vmatprep.subr.mxu0 0.0
        %4643 = vmatpush1.xpose.msra.mxu0 0.0
        %4644 = vmatprep.subr.mxu0 0.0
        %4645 = vmatpush1.xpose.msra.mxu0 0.0
        %4646 = vmatprep.subr.mxu0 0.0
        %4647 = vmatpush1.xpose.msra.mxu0 0.0
        %4648 = vmatprep.subr.mxu0 0.0
        %4649 = vmatpush1.xpose.msra.mxu0 0.0
        %4650 = vmatprep.subr.mxu0 0.0
        %4651 = vmatpush1.xpose.msra.mxu0 0.0
        %4652 = vmatprep.subr.mxu0 0.0
        %4653 = vmatpush1.xpose.msra.mxu0 0.0
        %4654 = vmatprep.subr.mxu0 0.0
        %4655 = vmatpush1.xpose.msra.mxu0 0.0
        %4656 = vmatprep.subr.mxu0 0.0
        %4657 = vmatpush1.xpose.msra.mxu0 0.0
        %4658 = vmatprep.mubr.f32.mxu0 0.0
        %4659 = vmatmul.mubr.f32.gmra.mrb[0].mxu0 %v4583
        %v4660 = vpop.f32.mrb[0].mxu0
        %v4661 = vadd.f32 %v3761, %v4660
        %v4662 = vpop.f32.mrb[0].mxu0
        %4663 = vmatprep.mubr.f32.mxu0 0.0
        %4664 = vmatmul.mubr.f32.gmra.mrb[0].mxu0 %v4586
        %v4665 = vpop.f32.mrb[0].mxu0
        %v4666 = vadd.f32 %v3761, %v4665
        %v4667 = vpop.f32.mrb[0].mxu0
        %4668 = vdwg.mxu0
        %v4669 = vsel %vm3851, %v4661, -inf
        %4670 = vmax.xlane.f32.xlu0 %v4669
        %v4671 = vpop.xlane.xlu0 %4670
        %v4672 = vsel %vm3855, %v4666, -inf
        %4673 = vmax.xlane.f32.xlu0 %v4672
        %v4674 = vpop.xlane.xlu0 %4673
        %v4675 = vsub.f32 %v4661, %v4671
        %v4676 = vsub.f32 %v4666, %v4674
        %v4677 = vmul.f32 %v4675, 1.442695
        %v4678 = vpow.pop %v4677
        %v4679 = vmul.f32 %v4676, 1.442695
        %v4680 = vpow.pop %v4679
        %v4681 = vsel %vm3851, %v4678, 0.0
        %4682 = vadd.xlane.f32.xlu0 %v4681
        %v4683 = vpop.xlane.xlu0 %4682
        %v4684 = vsel %vm3855, %v4680, 0.0
        %4685 = vadd.xlane.f32.xlu0 %v4684
        %v4686 = vpop.xlane.xlu0 %4685
        %v4687 = vrcp.pop %v4683
        %v4688 = vrcp.pop %v4686
        %v4689 = vmul.f32 %v4678, %v4687
        %v4690 = vmul.f32 %v4680, %v4688
        %v4691 = vmul.f32 %v4689, %v3879
        %v4692 = vmul.f32 %v4690, %v3879
        %s4693 = scalar_lea.vmem %s355, 64 [#allocation12]
        %4694 = vst.msk [vmem:[%s4693] sm:$0xff] %vm3851, %v4691
        %4695 = vst.msk [vmem:[%s4693 + $0x8] sm:$0xf] %vm3855, %v4692
        %v4697 = vsel %vm3851, %v4691, 0
        %v4700 = vsel %vm3851, %v4692, 0
        %v4703 = vsel %vm3891, %v3752, 0
        %4705 = vmatprep.subr.mxu0 0.0
        %4706 = vmatpush1.msra.mxu0 %v3749
        %4707 = vmatprep.subr.mxu0 0.0
        %4708 = vmatpush1.msra.mxu0 %v4703
        %4709 = vmatprep.subr.mxu0 0.0
        %4710 = vmatpush1.msra.mxu0 0.0
        %4711 = vmatprep.subr.mxu0 0.0
        %4712 = vmatpush1.msra.mxu0 0.0
        %4713 = vmatprep.subr.mxu0 0.0
        %4714 = vmatpush1.msra.mxu0 0.0
        %4715 = vmatprep.subr.mxu0 0.0
        %4716 = vmatpush1.msra.mxu0 0.0
        %4717 = vmatprep.subr.mxu0 0.0
        %4718 = vmatpush1.msra.mxu0 0.0
        %4719 = vmatprep.subr.mxu0 0.0
        %4720 = vmatpush1.msra.mxu0 0.0
        %4721 = vmatprep.subr.mxu0 0.0
        %4722 = vmatpush1.msra.mxu0 0.0
        %4723 = vmatprep.subr.mxu0 0.0
        %4724 = vmatpush1.msra.mxu0 0.0
        %4725 = vmatprep.subr.mxu0 0.0
        %4726 = vmatpush1.msra.mxu0 0.0
        %4727 = vmatprep.subr.mxu0 0.0
        %4728 = vmatpush1.msra.mxu0 0.0
        %4729 = vmatprep.subr.mxu0 0.0
        %4730 = vmatpush1.msra.mxu0 0.0
        %4731 = vmatprep.subr.mxu0 0.0
        %4732 = vmatpush1.msra.mxu0 0.0
        %4733 = vmatprep.subr.mxu0 0.0
        %4734 = vmatpush1.msra.mxu0 0.0
        %4735 = vmatprep.subr.mxu0 0.0
        %4736 = vmatpush1.msra.mxu0 0.0
        %4737 = vmatprep.subr.mxu0 0.0
        %4738 = vmatpush1.msra.mxu0 0.0
        %4739 = vmatprep.subr.mxu0 0.0
        %4740 = vmatpush1.msra.mxu0 0.0
        %4741 = vmatprep.subr.mxu0 0.0
        %4742 = vmatpush1.msra.mxu0 0.0
        %4743 = vmatprep.subr.mxu0 0.0
        %4744 = vmatpush1.msra.mxu0 0.0
        %4745 = vmatprep.subr.mxu0 0.0
        %4746 = vmatpush1.msra.mxu0 0.0
        %4747 = vmatprep.subr.mxu0 0.0
        %4748 = vmatpush1.msra.mxu0 0.0
        %4749 = vmatprep.subr.mxu0 0.0
        %4750 = vmatpush1.msra.mxu0 0.0
        %4751 = vmatprep.subr.mxu0 0.0
        %4752 = vmatpush1.msra.mxu0 0.0
        %4753 = vmatprep.subr.mxu0 0.0
        %4754 = vmatpush1.msra.mxu0 0.0
        %4755 = vmatprep.subr.mxu0 0.0
        %4756 = vmatpush1.msra.mxu0 0.0
        %4757 = vmatprep.subr.mxu0 0.0
        %4758 = vmatpush1.msra.mxu0 0.0
        %4759 = vmatprep.subr.mxu0 0.0
        %4760 = vmatpush1.msra.mxu0 0.0
        %4761 = vmatprep.subr.mxu0 0.0
        %4762 = vmatpush1.msra.mxu0 0.0
        %4763 = vmatprep.subr.mxu0 0.0
        %4764 = vmatpush1.msra.mxu0 0.0
        %4765 = vmatprep.subr.mxu0 0.0
        %4766 = vmatpush1.msra.mxu0 0.0
        %4767 = vmatprep.subr.mxu0 0.0
        %4768 = vmatpush1.msra.mxu0 0.0
        %4769 = vmatprep.mubr.f32.mxu0 0.0
        %4770 = vmatmul.mubr.f32.gmra.mrb[0].mxu0 %v4697
        %v4771 = vpop.f32.mrb[0].mxu0
        %v4772 = vadd.f32 0.0, %v4771
        %v4773 = vpop.f32.mrb[0].mxu0
        %4774 = vmatprep.mubr.f32.mxu0 0.0
        %4775 = vmatmul.mubr.f32.gmra.mrb[0].mxu0 %v4700
        %v4776 = vpop.f32.mrb[0].mxu0
        %v4777 = vadd.f32 0.0, %v4776
        %v4778 = vpop.f32.mrb[0].mxu0
        %4779 = vdwg.mxu0
        %4780 = vrot.lane.b32.xlu0 %v3366, 64
        %v4781 = vpop.permute.xlu0 %4780
        %4782 = vrot.lane.b32.xlu0 %v3370, 64
        %v4783 = vpop.permute.xlu0 %4782
        %4784 = vrot.lane.b32.xlu0 %v3497, 64
        %v4785 = vpop.permute.xlu0 %4784
        %4786 = vrot.lane.b32.xlu0 %v3501, 64
        %v4787 = vpop.permute.xlu0 %4786
        %v4788 = vsel %vm3763, %v4781, 0
        %v4790 = vsel %vm3763, %v4783, 0
        %v4792 = vsel %vm3763, %v4785, 0
        %v4794 = vsel %vm3763, %v4787, 0
        %4796 = vmatprep.subr.mxu0 0.0
        %4797 = vmatpush1.xpose.msra.mxu0 %v4792
        %4798 = vmatprep.subr.mxu0 0.0
        %4799 = vmatpush1.xpose.msra.mxu0 %v4794
        %4800 = vmatprep.subr.mxu0 0.0
        %4801 = vmatpush1.xpose.msra.mxu0 0.0
        %4802 = vmatprep.subr.mxu0 0.0
        %4803 = vmatpush1.xpose.msra.mxu0 0.0
        %4804 = vmatprep.subr.mxu0 0.0
        %4805 = vmatpush1.xpose.msra.mxu0 0.0
        %4806 = vmatprep.subr.mxu0 0.0
        %4807 = vmatpush1.xpose.msra.mxu0 0.0
        %4808 = vmatprep.subr.mxu0 0.0
        %4809 = vmatpush1.xpose.msra.mxu0 0.0
        %4810 = vmatprep.subr.mxu0 0.0
        %4811 = vmatpush1.xpose.msra.mxu0 0.0
        %4812 = vmatprep.subr.mxu0 0.0
        %4813 = vmatpush1.xpose.msra.mxu0 0.0
        %4814 = vmatprep.subr.mxu0 0.0
        %4815 = vmatpush1.xpose.msra.mxu0 0.0
        %4816 = vmatprep.subr.mxu0 0.0
        %4817 = vmatpush1.xpose.msra.mxu0 0.0
        %4818 = vmatprep.subr.mxu0 0.0
        %4819 = vmatpush1.xpose.msra.mxu0 0.0
        %4820 = vmatprep.subr.mxu0 0.0
        %4821 = vmatpush1.xpose.msra.mxu0 0.0
        %4822 = vmatprep.subr.mxu0 0.0
        %4823 = vmatpush1.xpose.msra.mxu0 0.0
        %4824 = vmatprep.subr.mxu0 0.0
        %4825 = vmatpush1.xpose.msra.mxu0 0.0
        %4826 = vmatprep.subr.mxu0 0.0
        %4827 = vmatpush1.xpose.msra.mxu0 0.0
        %4828 = vmatprep.subr.mxu0 0.0
        %4829 = vmatpush1.xpose.msra.mxu0 0.0
        %4830 = vmatprep.subr.mxu0 0.0
        %4831 = vmatpush1.xpose.msra.mxu0 0.0
        %4832 = vmatprep.subr.mxu0 0.0
        %4833 = vmatpush1.xpose.msra.mxu0 0.0
        %4834 = vmatprep.subr.mxu0 0.0
        %4835 = vmatpush1.xpose.msra.mxu0 0.0
        %4836 = vmatprep.subr.mxu0 0.0
        %4837 = vmatpush1.xpose.msra.mxu0 0.0
        %4838 = vmatprep.subr.mxu0 0.0
        %4839 = vmatpush1.xpose.msra.mxu0 0.0
        %4840 = vmatprep.subr.mxu0 0.0
        %4841 = vmatpush1.xpose.msra.mxu0 0.0
        %4842 = vmatprep.subr.mxu0 0.0
        %4843 = vmatpush1.xpose.msra.mxu0 0.0
        %4844 = vmatprep.subr.mxu0 0.0
        %4845 = vmatpush1.xpose.msra.mxu0 0.0
        %4846 = vmatprep.subr.mxu0 0.0
        %4847 = vmatpush1.xpose.msra.mxu0 0.0
        %4848 = vmatprep.subr.mxu0 0.0
        %4849 = vmatpush1.xpose.msra.mxu0 0.0
        %4850 = vmatprep.subr.mxu0 0.0
        %4851 = vmatpush1.xpose.msra.mxu0 0.0
        %4852 = vmatprep.subr.mxu0 0.0
        %4853 = vmatpush1.xpose.msra.mxu0 0.0
        %4854 = vmatprep.subr.mxu0 0.0
        %4855 = vmatpush1.xpose.msra.mxu0 0.0
        %4856 = vmatprep.subr.mxu0 0.0
        %4857 = vmatpush1.xpose.msra.mxu0 0.0
        %4858 = vmatprep.subr.mxu0 0.0
        %4859 = vmatpush1.xpose.msra.mxu0 0.0
        %4860 = vmatprep.mubr.f32.mxu0 0.0
        %4861 = vmatmul.mubr.f32.gmra.mrb[0].mxu0 %v4788
        %v4862 = vpop.f32.mrb[0].mxu0
        %v4863 = vadd.f32 %v3761, %v4862
        %v4864 = vpop.f32.mrb[0].mxu0
        %4865 = vmatprep.mubr.f32.mxu0 0.0
        %4866 = vmatmul.mubr.f32.gmra.mrb[0].mxu0 %v4790
        %v4867 = vpop.f32.mrb[0].mxu0
        %v4868 = vadd.f32 %v3761, %v4867
        %v4869 = vpop.f32.mrb[0].mxu0
        %4870 = vdwg.mxu0
        %v4871 = vsel %vm3851, %v4863, -inf
        %4872 = vmax.xlane.f32.xlu0 %v4871
        %v4873 = vpop.xlane.xlu0 %4872
        %v4874 = vsel %vm3855, %v4868, -inf
        %4875 = vmax.xlane.f32.xlu0 %v4874
        %v4876 = vpop.xlane.xlu0 %4875
        %v4877 = vsub.f32 %v4863, %v4873
        %v4878 = vsub.f32 %v4868, %v4876
        %v4879 = vmul.f32 %v4877, 1.442695
        %v4880 = vpow.pop %v4879
        %v4881 = vmul.f32 %v4878, 1.442695
        %v4882 = vpow.pop %v4881
        %v4883 = vsel %vm3851, %v4880, 0.0
        %4884 = vadd.xlane.f32.xlu0 %v4883
        %v4885 = vpop.xlane.xlu0 %4884
        %v4886 = vsel %vm3855, %v4882, 0.0
        %4887 = vadd.xlane.f32.xlu0 %v4886
        %v4888 = vpop.xlane.xlu0 %4887
        %v4889 = vrcp.pop %v4885
        %v4890 = vrcp.pop %v4888
        %v4891 = vmul.f32 %v4880, %v4889
        %v4892 = vmul.f32 %v4882, %v4890
        %v4893 = vmul.f32 %v4891, %v3879
        %v4894 = vmul.f32 %v4892, %v3879
        %s4895 = scalar_lea.vmem %s355, 80 [#allocation12]
        %4896 = vst.msk [vmem:[%s4895] sm:$0xff] %vm3851, %v4893
        %4897 = vst.msk [vmem:[%s4895 + $0x8] sm:$0xf] %vm3855, %v4894
        %4899 = vrot.lane.b32.xlu0 %v3749, 64
        %v4900 = vpop.permute.xlu0 %4899
        %4901 = vrot.lane.b32.xlu0 %v3752, 64
        %v4902 = vpop.permute.xlu0 %4901
        %v4905 = vsel %vm3851, %v4893, 0
        %v4908 = vsel %vm3851, %v4894, 0
        %v4910 = vsel %vm3891, %v4902, 0
        %4912 = vmatprep.subr.mxu0 0.0
        %4913 = vmatpush1.msra.mxu0 %v4900
        %4914 = vmatprep.subr.mxu0 0.0
        %4915 = vmatpush1.msra.mxu0 %v4910
        %4916 = vmatprep.subr.mxu0 0.0
        %4917 = vmatpush1.msra.mxu0 0.0
        %4918 = vmatprep.subr.mxu0 0.0
        %4919 = vmatpush1.msra.mxu0 0.0
        %4920 = vmatprep.subr.mxu0 0.0
        %4921 = vmatpush1.msra.mxu0 0.0
        %4922 = vmatprep.subr.mxu0 0.0
        %4923 = vmatpush1.msra.mxu0 0.0
        %4924 = vmatprep.subr.mxu0 0.0
        %4925 = vmatpush1.msra.mxu0 0.0
        %4926 = vmatprep.subr.mxu0 0.0
        %4927 = vmatpush1.msra.mxu0 0.0
        %4928 = vmatprep.subr.mxu0 0.0
        %4929 = vmatpush1.msra.mxu0 0.0
        %4930 = vmatprep.subr.mxu0 0.0
        %4931 = vmatpush1.msra.mxu0 0.0
        %4932 = vmatprep.subr.mxu0 0.0
        %4933 = vmatpush1.msra.mxu0 0.0
        %4934 = vmatprep.subr.mxu0 0.0
        %4935 = vmatpush1.msra.mxu0 0.0
        %4936 = vmatprep.subr.mxu0 0.0
        %4937 = vmatpush1.msra.mxu0 0.0
        %4938 = vmatprep.subr.mxu0 0.0
        %4939 = vmatpush1.msra.mxu0 0.0
        %4940 = vmatprep.subr.mxu0 0.0
        %4941 = vmatpush1.msra.mxu0 0.0
        %4942 = vmatprep.subr.mxu0 0.0
        %4943 = vmatpush1.msra.mxu0 0.0
        %4944 = vmatprep.subr.mxu0 0.0
        %4945 = vmatpush1.msra.mxu0 0.0
        %4946 = vmatprep.subr.mxu0 0.0
        %4947 = vmatpush1.msra.mxu0 0.0
        %4948 = vmatprep.subr.mxu0 0.0
        %4949 = vmatpush1.msra.mxu0 0.0
        %4950 = vmatprep.subr.mxu0 0.0
        %4951 = vmatpush1.msra.mxu0 0.0
        %4952 = vmatprep.subr.mxu0 0.0
        %4953 = vmatpush1.msra.mxu0 0.0
        %4954 = vmatprep.subr.mxu0 0.0
        %4955 = vmatpush1.msra.mxu0 0.0
        %4956 = vmatprep.subr.mxu0 0.0
        %4957 = vmatpush1.msra.mxu0 0.0
        %4958 = vmatprep.subr.mxu0 0.0
        %4959 = vmatpush1.msra.mxu0 0.0
        %4960 = vmatprep.subr.mxu0 0.0
        %4961 = vmatpush1.msra.mxu0 0.0
        %4962 = vmatprep.subr.mxu0 0.0
        %4963 = vmatpush1.msra.mxu0 0.0
        %4964 = vmatprep.subr.mxu0 0.0
        %4965 = vmatpush1.msra.mxu0 0.0
        %4966 = vmatprep.subr.mxu0 0.0
        %4967 = vmatpush1.msra.mxu0 0.0
        %4968 = vmatprep.subr.mxu0 0.0
        %4969 = vmatpush1.msra.mxu0 0.0
        %4970 = vmatprep.subr.mxu0 0.0
        %4971 = vmatpush1.msra.mxu0 0.0
        %4972 = vmatprep.subr.mxu0 0.0
        %4973 = vmatpush1.msra.mxu0 0.0
        %4974 = vmatprep.subr.mxu0 0.0
        %4975 = vmatpush1.msra.mxu0 0.0
        %4976 = vmatprep.mubr.f32.mxu0 0.0
        %4977 = vmatmul.mubr.f32.gmra.mrb[0].mxu0 %v4905
        %v4978 = vpop.f32.mrb[0].mxu0
        %v4979 = vadd.f32 0.0, %v4978
        %v4980 = vpop.f32.mrb[0].mxu0
        %4981 = vmatprep.mubr.f32.mxu0 0.0
        %4982 = vmatmul.mubr.f32.gmra.mrb[0].mxu0 %v4908
        %v4983 = vpop.f32.mrb[0].mxu0
        %v4984 = vadd.f32 0.0, %v4983
        %v4985 = vpop.f32.mrb[0].mxu0
        %4986 = vdwg.mxu0
        %4989 = vrot.lane.b32.xlu0 %v4169, 64
        %v4990 = vpop.permute.xlu0 %4989
        %4991 = vrot.lane.b32.xlu0 %v4174, 64
        %v4992 = vpop.permute.xlu0 %4991
        %4997 = vrot.lane.b32.xlu0 %v4574, 64
        %v4998 = vpop.permute.xlu0 %4997
        %4999 = vrot.lane.b32.xlu0 %v4579, 64
        %v5000 = vpop.permute.xlu0 %4999
        %5005 = vrot.lane.b32.xlu0 %v4979, 64
        %v5006 = vpop.permute.xlu0 %5005
        %5007 = vrot.lane.b32.xlu0 %v4984, 64
        %v5008 = vpop.permute.xlu0 %5007
        %v5011 = vsel %vm3763, %v3962, %v4990
        %v5012 = vsel %vm3763, %v3967, %v4992
        %v5013 = vsel %vm3763, %v4367, %v4998
        %v5014 = vsel %vm3763, %v4372, %v5000
        %v5015 = vsel %vm3763, %v4772, %v5006
        %v5016 = vsel %vm3763, %v4777, %v5008
        %5017 = vst [vmem:[%s348] sm:$0xff] %v5011
        %5018 = vst [vmem:[%s348 + $0x8] sm:$0xff] %v5013
        %5019 = vst [vmem:[%s348 + $0x10] sm:$0xff] %v5015
        %5020 = vst [vmem:[%s348 + $0x18] sm:$0xf] %v5012
        %5021 = vst [vmem:[%s348 + $0x20] sm:$0xf] %v5014
        %5022 = vst [vmem:[%s348 + $0x28] sm:$0xf] %v5016
        %s5023 = sand.u32 %s152, 1
        %s5024 = scalar_lea.sflag [#allocation4], %s5023
        %s5025 = sand.u32 %s152, 1
        %s5026 = smul.addr %s5025, 48
        %s5027 = scalar_lea.vmem [#allocation11], %s5026
        %s5028 = sand.u32 %s178, 1
        %s5029 = scalar_lea.sflag [#allocation13], %s5028
        %s5030 = sand.u32 %s178, 1
        %s5031 = smul.addr %s5030, 96
        %s5032 = scalar_lea.vmem [#allocation12], %s5031
        // Predicated region
        $region61: #{tpu_custom_call.1} parent=39 // pred_check
          %p5033 = pneg %p162
        $region62: #{tpu_custom_call.1} parent=39 // pred_check_branch
          %5035 = sbr.rel (%p5033) target = $region64
        $region63: #{tpu_custom_call.1} parent=39 // pred_region
          %s5036 = smul.u32 3, %s29
          %s5038 = ssub.s32 768, 768
          %5039 = vsyncadd %s5024, %s5038
          %s5040 = smul.addr %s5036, 128
          %s5041 = scalar_lea.hbm %s5, %s5040
          %s5042 = sshll.u32 %s5027, 4
          %s5043 = int_to_ptr.vmem [resolvable:$true] %s5042
          %5048 = dma.vmem_to_hbm [thread:$0]  %s5043, 768, %s5041, %s5024, 384, 768, 24
        $region64: #{tpu_custom_call.1} parent=39 // pred_fallthru
          _
        // Predicated region
        $region65: #{tpu_custom_call.1} parent=39 // pred_check
          %p5049 = pneg %p188
        $region66: #{tpu_custom_call.1} parent=39 // pred_check_branch
          %5051 = sbr.rel (%p5049) target = $region68
        $region67: #{tpu_custom_call.1} parent=39 // pred_region
          %s5052 = smul.u32 6, %s29
          %s5054 = ssub.s32 1536, 1536
          %5055 = vsyncadd %s5029, %s5054
          %s5056 = smul.addr %s5052, 2
          %s5057 = smul.addr %s5056, 128
          %s5058 = scalar_lea.hbm %s6, %s5057
          %s5059 = sshll.u32 %s5032, 4
          %s5060 = int_to_ptr.vmem [resolvable:$true] %s5059
          %5065 = dma.vmem_to_hbm [thread:$0]  %s5060, 1536, %s5058, %s5029, 128, 128, 8
        $region68: #{tpu_custom_call.1} parent=39 // pred_fallthru
          _
      $region40: #{tpu_custom_call.1} parent=5 // pred_fallthru
        _
      %p5066 = scmp.le.s32.totalorder 2, %s24
      // Predicated region
      $region69: #{tpu_custom_call.1} parent=5 // pred_check
        %p5067 = pneg %p5066
      $region70: #{tpu_custom_call.1} parent=5 // pred_check_branch
        %5069 = sbr.rel (%p5067) target = $region72
      $region71: #{tpu_custom_call.1} parent=5 // pred_region
        %s5070 = ssub.s32 %s24, 2
        // Predicated region
        $region73: #{tpu_custom_call.1} parent=71 // pred_check
          %p5071 = pneg %p168
        $region74: #{tpu_custom_call.1} parent=71 // pred_check_branch
          %5073 = sbr.rel (%p5071) target = $region76
        $region75: #{tpu_custom_call.1} parent=71 // pred_region
          %s5074 = sand.u32 %s153, 1
          %s5075 = scalar_lea.sflag [#allocation4], %s5074
          %s5076 = sand.u32 %s153, 1
          %s5077 = smul.addr %s5076, 48
          %s5078 = scalar_lea.vmem [#allocation11], %s5077
          %5079 = dma.done %s5075, 768
        $region76: #{tpu_custom_call.1} parent=71 // pred_fallthru
          _
        // Predicated region
        $region77: #{tpu_custom_call.1} parent=71 // pred_check
          %p5080 = pneg %p194
        $region78: #{tpu_custom_call.1} parent=71 // pred_check_branch
          %5082 = sbr.rel (%p5080) target = $region80
        $region79: #{tpu_custom_call.1} parent=71 // pred_region
          %s5083 = sand.u32 %s179, 1
          %s5084 = scalar_lea.sflag [#allocation13], %s5083
          %s5085 = sand.u32 %s179, 1
          %s5086 = smul.addr %s5085, 96
          %s5087 = scalar_lea.vmem [#allocation12], %s5086
          %5088 = dma.done %s5084, 1536
        $region80: #{tpu_custom_call.1} parent=71 // pred_fallthru
          _
      $region72: #{tpu_custom_call.1} parent=5 // pred_fallthru
        _
    $region6: #{tpu_custom_call.1} parent=1 // loop_footer
      %s28 = sadd.s32 1, %s24
    $region7: #{tpu_custom_call.1} parent=1 // loop_footer_branch
      %23 = sbr.rel target = $region3
    $region8: #{tpu_custom_call.1} parent=1 // loop_exit
      _
    %5089 = vsyncpa [#allocation3], 1
    %s5090 = scalar_lea.sflag [#allocation3], 1
    %5091 = vsyncpa %s5090, 1
    %5092 = vsyncpa [#allocation6], 1
    %5093 = vsyncpa [#allocation9], 1
    %s5094 = scalar_lea.sflag [#allocation9], 1
    %5095 = vsyncpa %s5094, 1
    %5096 = vsyncpa [#allocation4], 1
    %s5097 = scalar_lea.sflag [#allocation4], 1
    %5098 = vsyncpa %s5097, 1
    %5099 = vsyncpa [#allocation13], 1
    %s5100 = scalar_lea.sflag [#allocation13], 1
    %5101 = vsyncpa %s5100, 1

</llo_original>
